<compile_context>
chip_gen: v7x
topology: tpu7x:2x2x1
jax: 0.10.0
libtpu: 0.0.40
codegen_flags: <defaults>
</compile_context>

<pallas_src>
import math

import jax
import jax.numpy as jnp
from jax import lax
from jax.experimental import pallas as pl
from jax.experimental.pallas import tpu as pltpu

# ---------------- Block hyper-parameters (small test size) -----------------
DIM = 32            # C
NUM_HEADS = 4
HEAD_DIM = DIM // NUM_HEADS
MLP_RATIO = 4.0
HIDDEN = int(DIM * MLP_RATIO)
SCALE = HEAD_DIM ** (-0.5)
EPS = 1e-5          # nn.LayerNorm default
B = 2
H_SP, W_SP = 8, 8
N_TOK = H_SP * W_SP


def _layernorm_t(z_t, g_col, b_col):
    # Channel-major LayerNorm: channels on the sublane axis, tokens on lanes.
    mu = jnp.mean(z_t, axis=0, keepdims=True)
    var = jnp.mean((z_t - mu) ** 2, axis=0, keepdims=True)
    return (z_t - mu) * lax.rsqrt(var + EPS) * g_col + b_col


def _gelu_exact(z):
    # torch.nn.GELU default (approximate='none')
    return 0.5 * z * (1.0 + lax.erf(z * (1.0 / math.sqrt(2.0))))


def block_kernel(x_ref,
                 g1_ref, be1_ref,
                 wqkv_ref,
                 wp_ref, bp_ref,
                 g2_ref, be2_ref,
                 w1_ref, bf1_ref,
                 w2_ref, bf2_ref,
                 o_ref):
    bk, n_tok, c = x_ref.shape
    nh = NUM_HEADS
    hd = c // nh
    bn = bk * n_tok

    # (Bk, N, C) -> (Bk*N, C) (leading merge, free) -> (C, Bk*N) channel-major.
    x_t = x_ref[...].reshape(bn, c).T                                   # (C, BN) f32, lane-dense

    # ---- norm1 ----
    xn_t = _layernorm_t(x_t, g1_ref[...], be1_ref[...])
    xn16_t = xn_t.astype(jnp.bfloat16)

    # ---- fused QKV projection: one MXU dispatch (SCALE folded into Q rows) ----
    qkv_t = jnp.dot(wqkv_ref[...], xn16_t,
                    preferred_element_type=jnp.float32)                 # (3C, BN) f32
    q_tok = qkv_t[0:c, :].T                                             # (BN, C) token-major
    k_t = qkv_t[c:2 * c, :]                                             # (C, BN) channel-major
    v_t = qkv_t[2 * c:3 * c, :]                                         # (C, BN)

    # ---- per-(head, batch) attention on small dense 2-D tiles ----
    ctx_heads = []
    for h in range(nh):
        ctx_b = []
        for b in range(bk):
            qhb = q_tok[b * n_tok:(b + 1) * n_tok,
                        h * hd:(h + 1) * hd].astype(jnp.bfloat16)       # (N, D)
            khb = k_t[h * hd:(h + 1) * hd,
                      b * n_tok:(b + 1) * n_tok].astype(jnp.bfloat16)   # (D, N)
            vhb = v_t[h * hd:(h + 1) * hd,
                      b * n_tok:(b + 1) * n_tok].astype(jnp.bfloat16)   # (D, N)

            s = jnp.dot(qhb, khb, preferred_element_type=jnp.float32)   # (N, N) f32
            s = s - jnp.max(s, axis=-1, keepdims=True)
            p = jnp.exp(s)
            p = p * pl.reciprocal(jnp.sum(p, axis=-1, keepdims=True), approx=True)
            # ctx_t[d, n] = sum_m v_t[d, m] * p[n, m]   (NT-form matmul)
            ctx_b.append(lax.dot_general(
                vhb, p.astype(jnp.bfloat16),
                dimension_numbers=(((1,), (1,)), ((), ())),
                preferred_element_type=jnp.float32))                    # (D, N)
        ctx_heads.append(jnp.concatenate(ctx_b, axis=1))                # (D, BN)
    ctx_t = jnp.concatenate(ctx_heads, axis=0).astype(jnp.bfloat16)     # (C, BN)

    # ---- fused output projection: one MXU dispatch ----
    proj_t = jnp.dot(wp_ref[...], ctx_t,
                     preferred_element_type=jnp.float32)                # (C, BN) f32
    x1_t = x_t + proj_t + bp_ref[...]                                   # residual (dropouts identity)

    # ---- norm2 + MLP ----
    xn2_t = _layernorm_t(x1_t, g2_ref[...], be2_ref[...]).astype(jnp.bfloat16)
    h1_t = jnp.dot(w1_ref[...], xn2_t,
                   preferred_element_type=jnp.float32) + bf1_ref[...]   # (HIDDEN, BN)
    h1_t = _gelu_exact(h1_t).astype(jnp.bfloat16)
    y_t = jnp.dot(w2_ref[...], h1_t,
                  preferred_element_type=jnp.float32) + bf2_ref[...]    # (C, BN)

    out_t = x1_t + y_t                                                  # (C, BN) f32
    o_ref[...] = out_t.T.reshape(bk, n_tok, c)


def prepare_params(params):
    """One-time weight repack (hoisted out of the per-call wrapper).

    Packs Q/K/V into a single (3C, C) bf16 weight with SCALE folded into the Q
    rows, transposes all matmul weights for the channel-major kernel layout, and
    reshapes 1-D parameters into (dim, 1) f32 columns (lane-broadcast in-kernel).
    """
    bf16 = jnp.bfloat16
    f32 = jnp.float32
    col = lambda v: v.reshape(-1, 1).astype(f32)
    wqkv_t = jnp.concatenate(
        [(params["wq"] * SCALE).T, params["wk"].T, params["wv"].T],
        axis=0).astype(bf16)                                            # (3C, C)
    return {
        "g1": col(params["g1"]), "be1": col(params["be1"]),
        "wqkv_t": wqkv_t,
        "wp_t": params["wp"].T.astype(bf16),                            # (C, C)
        "bp": col(params["bp"]),
        "g2": col(params["g2"]), "be2": col(params["be2"]),
        "w1_t": params["w1"].T.astype(bf16),                            # (HIDDEN, C)
        "bf1": col(params["bf1"]),
        "w2_t": params["w2"].T.astype(bf16),                            # (C, HIDDEN)
        "bf2": col(params["bf2"]),
    }


def rest_block(x, prep, *, batch_block=None):
    Bb, N, C = x.shape

    if batch_block is None:
        # Single grid step covering all batch elements: lowest per-step overhead
        # (this size is overhead/latency-bound).  On v7x, batch_block=1 enables a
        # megacore split — benchmark it; per-core fixed overhead rivals the compute.
        batch_block = Bb
    assert Bb % batch_block == 0

    def full_spec(arr):
        nd = arr.ndim
        return pl.BlockSpec(arr.shape, lambda g, _nd=nd: (0,) * _nd)

    in_specs = [
        pl.BlockSpec((batch_block, N, C), lambda g: (g, 0, 0)),         # x
        full_spec(prep["g1"]), full_spec(prep["be1"]),                  # norm1 gamma/beta (C,1)
        full_spec(prep["wqkv_t"]),                                      # packed QKV (3C, C)
        full_spec(prep["wp_t"]), full_spec(prep["bp"]),                 # proj
        full_spec(prep["g2"]), full_spec(prep["be2"]),                  # norm2 gamma/beta
        full_spec(prep["w1_t"]), full_spec(prep["bf1"]),                # fc1
        full_spec(prep["w2_t"]), full_spec(prep["bf2"]),                # fc2
    ]
    out_specs = pl.BlockSpec((batch_block, N, C), lambda g: (g, 0, 0))

    return pl.pallas_call(
        block_kernel,
        out_shape=jax.ShapeDtypeStruct((Bb, N, C), jnp.float32),
        grid=(Bb // batch_block,),
        in_specs=in_specs,
        out_specs=out_specs,
        compiler_params=pltpu.CompilerParams(dimension_semantics=("parallel",)),
    )(x,
      prep["g1"], prep["be1"],
      prep["wqkv_t"],
      prep["wp_t"], prep["bp"],
      prep["g2"], prep["be2"],
      prep["w1_t"], prep["bf1"],
      prep["w2_t"], prep["bf2"])


# ------------------------- pure-JAX reference (f32) -----------------------------
def rest_block_ref(x, params):
    def ln(z, g, b):
        mu = jnp.mean(z, axis=-1, keepdims=True)
        var = jnp.mean((z - mu) ** 2, axis=-1, keepdims=True)
        return (z - mu) / jnp.sqrt(var + EPS) * g + b

    Bb, N, C = x.shape
    xn = ln(x, params["g1"], params["be1"])
    q = (xn @ params["wq"]).reshape(Bb, N, NUM_HEADS, HEAD_DIM).transpose(0, 2, 1, 3)
    k = (xn @ params["wk"]).reshape(Bb, N, NUM_HEADS, HEAD_DIM).transpose(0, 2, 1, 3)
    v = (xn @ params["wv"]).reshape(Bb, N, NUM_HEADS, HEAD_DIM).transpose(0, 2, 1, 3)
    attn = jnp.einsum("bhnd,bhmd->bhnm", q, k) * SCALE
    attn = jax.nn.softmax(attn, axis=-1)
    o = jnp.einsum("bhnm,bhmd->bhnd", attn, v).transpose(0, 2, 1, 3).reshape(Bb, N, C)
    x1 = x + (o @ params["wp"] + params["bp"])
    xn2 = ln(x1, params["g2"], params["be2"])
    h1 = xn2 @ params["w1"] + params["bf1"]
    h1 = 0.5 * h1 * (1.0 + lax.erf(h1 / math.sqrt(2.0)))
    return x1 + (h1 @ params["w2"] + params["bf2"])


if __name__ == "__main__":
    key = jax.random.PRNGKey(0)
    ks = jax.random.split(key, 13)
    std = 0.02
    params = {
        "g1":  1.0 + std * jax.random.normal(ks[0], (1, DIM), jnp.float32),
        "be1": std * jax.random.normal(ks[1], (1, DIM), jnp.float32),
        # Linear weights stored pre-transposed: y = x @ W  (W is (in, out))
        "wq":  std * jax.random.normal(ks[2], (DIM, DIM), jnp.float32),   # q (bias=False)
        "wk":  std * jax.random.normal(ks[3], (DIM, DIM), jnp.float32),   # kv[:dim]
        "wv":  std * jax.random.normal(ks[4], (DIM, DIM), jnp.float32),   # kv[dim:]
        "wp":  std * jax.random.normal(ks[5], (DIM, DIM), jnp.float32),   # proj
        "bp":  std * jax.random.normal(ks[6], (1, DIM), jnp.float32),
        "g2":  1.0 + std * jax.random.normal(ks[7], (1, DIM), jnp.float32),
        "be2": std * jax.random.normal(ks[8], (1, DIM), jnp.float32),
        "w1":  std * jax.random.normal(ks[9], (DIM, HIDDEN), jnp.float32),
        "bf1": std * jax.random.normal(ks[10], (1, HIDDEN), jnp.float32),
        "w2":  std * jax.random.normal(ks[11], (HIDDEN, DIM), jnp.float32),
        "bf2": jnp.zeros((1, DIM), jnp.float32),
    }
    x = jax.random.normal(ks[12], (B, N_TOK, DIM), jnp.float32)

    # Weight repack done ONCE (not per forward call).
    prep = jax.tree_util.tree_map(jax.block_until_ready, prepare_params(params))

    out = jax.block_until_ready(rest_block(x, prep))
    ref = rest_block_ref(x, params)

    # bf16 MXU operands + approx reciprocal -> relaxed tolerance vs f32 reference.
    err = float(jnp.max(jnp.abs(out - ref)))
    assert jnp.allclose(out, ref, atol=2e-2, rtol=2e-2), err
    print("KERNEL_OK")
</pallas_src>

<mosaic_0001>
module attributes {stable_mosaic.version = 11 : i64} {
  func.func @block_kernel(%arg0: i32, %arg1: memref<2x64x32xf32, #tpu.memory_space<vmem>>, %arg2: memref<32x1xf32, #tpu.memory_space<vmem>>, %arg3: memref<32x1xf32, #tpu.memory_space<vmem>>, %arg4: memref<96x32xbf16, #tpu.memory_space<vmem>>, %arg5: memref<32x32xbf16, #tpu.memory_space<vmem>>, %arg6: memref<32x1xf32, #tpu.memory_space<vmem>>, %arg7: memref<32x1xf32, #tpu.memory_space<vmem>>, %arg8: memref<32x1xf32, #tpu.memory_space<vmem>>, %arg9: memref<128x32xbf16, #tpu.memory_space<vmem>>, %arg10: memref<128x1xf32, #tpu.memory_space<vmem>>, %arg11: memref<32x128xbf16, #tpu.memory_space<vmem>>, %arg12: memref<32x1xf32, #tpu.memory_space<vmem>>, %arg13: memref<2x64x32xf32, #tpu.memory_space<vmem>>) attributes {dimension_semantics = [#tpu.dimension_semantics<parallel>], iteration_bounds = array<i64: 1>, scalar_prefetch = 0 : i64, scratch_operands = 0 : i64, tpu.core_type = #tpu.core_type<tc>, window_params = [{transform_indices = @transform_0, window_bounds = array<i64: 2, 64, 32>}, {pipeline_mode = #tpu.pipeline_mode<synchronous>, transform_indices = @transform_1, window_bounds = array<i64: 32, 1>}, {pipeline_mode = #tpu.pipeline_mode<synchronous>, transform_indices = @transform_2, window_bounds = array<i64: 32, 1>}, {pipeline_mode = #tpu.pipeline_mode<synchronous>, transform_indices = @transform_3, window_bounds = array<i64: 96, 32>}, {pipeline_mode = #tpu.pipeline_mode<synchronous>, transform_indices = @transform_4, window_bounds = array<i64: 32, 32>}, {pipeline_mode = #tpu.pipeline_mode<synchronous>, transform_indices = @transform_5, window_bounds = array<i64: 32, 1>}, {pipeline_mode = #tpu.pipeline_mode<synchronous>, transform_indices = @transform_6, window_bounds = array<i64: 32, 1>}, {pipeline_mode = #tpu.pipeline_mode<synchronous>, transform_indices = @transform_7, window_bounds = array<i64: 32, 1>}, {pipeline_mode = #tpu.pipeline_mode<synchronous>, transform_indices = @transform_8, window_bounds = array<i64: 128, 32>}, {pipeline_mode = #tpu.pipeline_mode<synchronous>, transform_indices = @transform_9, window_bounds = array<i64: 128, 1>}, {pipeline_mode = #tpu.pipeline_mode<synchronous>, transform_indices = @transform_10, window_bounds = array<i64: 32, 128>}, {pipeline_mode = #tpu.pipeline_mode<synchronous>, transform_indices = @transform_11, window_bounds = array<i64: 32, 1>}, {transform_indices = @transform_12, window_bounds = array<i64: 2, 64, 32>}]} {
    %c0 = arith.constant 0 : index
    %c0_0 = arith.constant 0 : index
    %c0_1 = arith.constant 0 : index
    %0 = vector.load %arg1[%c0, %c0_0, %c0_1] : memref<2x64x32xf32, #tpu.memory_space<vmem>>, vector<2x64x32xf32>
    %1 = vector.shape_cast %0 : vector<2x64x32xf32> to vector<128x32xf32>
    %2 = tpu.transpose %1, [1, 0] : vector<128x32xf32> -> vector<32x128xf32>
    %c0_2 = arith.constant 0 : index
    %c0_3 = arith.constant 0 : index
    %3 = vector.load %arg2[%c0_2, %c0_3] : memref<32x1xf32, #tpu.memory_space<vmem>>, vector<32x1xf32>
    %c0_4 = arith.constant 0 : index
    %c0_5 = arith.constant 0 : index
    %4 = vector.load %arg3[%c0_4, %c0_5] : memref<32x1xf32, #tpu.memory_space<vmem>>, vector<32x1xf32>
    %cst = arith.constant dense<0.000000e+00> : vector<128xf32>
    %5 = vector.multi_reduction <add>, %2, %cst [0] : vector<32x128xf32> to vector<128xf32>
    %6 = vector.shape_cast %5 : vector<128xf32> to vector<1x128xf32>
    %cst_6 = arith.constant 3.200000e+01 : f32
    %7 = vector.broadcast %cst_6 : f32 to vector<1x128xf32>
    %8 = arith.divf %6, %7 : vector<1x128xf32>
    %9 = vector.broadcast %8 : vector<1x128xf32> to vector<32x128xf32>
    %10 = arith.subf %2, %9 : vector<32x128xf32>
    %11 = arith.mulf %10, %10 : vector<32x128xf32>
    %cst_7 = arith.constant dense<0.000000e+00> : vector<128xf32>
    %12 = vector.multi_reduction <add>, %11, %cst_7 [0] : vector<32x128xf32> to vector<128xf32>
    %13 = vector.shape_cast %12 : vector<128xf32> to vector<1x128xf32>
    %cst_8 = arith.constant 3.200000e+01 : f32
    %14 = vector.broadcast %cst_8 : f32 to vector<1x128xf32>
    %15 = arith.divf %13, %14 : vector<1x128xf32>
    %16 = vector.broadcast %8 : vector<1x128xf32> to vector<32x128xf32>
    %17 = arith.subf %2, %16 : vector<32x128xf32>
    %cst_9 = arith.constant 9.99999974E-6 : f32
    %18 = vector.broadcast %cst_9 : f32 to vector<1x128xf32>
    %19 = arith.addf %15, %18 : vector<1x128xf32>
    %20 = math.rsqrt %19 : vector<1x128xf32>
    %21 = vector.broadcast %20 : vector<1x128xf32> to vector<32x128xf32>
    %22 = arith.mulf %17, %21 : vector<32x128xf32>
    %23 = vector.broadcast %3 : vector<32x1xf32> to vector<32x128xf32>
    %24 = arith.mulf %22, %23 : vector<32x128xf32>
    %25 = vector.broadcast %4 : vector<32x1xf32> to vector<32x128xf32>
    %26 = arith.addf %24, %25 : vector<32x128xf32>
    %27 = arith.truncf %26 : vector<32x128xf32> to vector<32x128xbf16>
    %c0_10 = arith.constant 0 : index
    %c0_11 = arith.constant 0 : index
    %28 = vector.load %arg4[%c0_10, %c0_11] : memref<96x32xbf16, #tpu.memory_space<vmem>>, vector<96x32xbf16>
    %cst_12 = arith.constant dense<0.000000e+00> : vector<96x128xf32>
    %29 = tpu.matmul %28, %27, %cst_12 {dimension_numbers = #tpu.dot_dimension_numbers<[1], [0], [0], [1], [0, 0, 1, 1], [], []>} : vector<96x32xbf16>, vector<32x128xbf16>, vector<96x128xf32> -> vector<96x128xf32>
    %30 = vector.extract_strided_slice %29 {offsets = [0, 0], sizes = [32, 128], strides = [1, 1]} : vector<96x128xf32> to vector<32x128xf32>
    %31 = tpu.transpose %30, [1, 0] : vector<32x128xf32> -> vector<128x32xf32>
    %32 = vector.extract_strided_slice %29 {offsets = [32, 0], sizes = [32, 128], strides = [1, 1]} : vector<96x128xf32> to vector<32x128xf32>
    %33 = vector.extract_strided_slice %29 {offsets = [64, 0], sizes = [32, 128], strides = [1, 1]} : vector<96x128xf32> to vector<32x128xf32>
    %34 = vector.extract_strided_slice %31 {offsets = [0, 0], sizes = [64, 8], strides = [1, 1]} : vector<128x32xf32> to vector<64x8xf32>
    %35 = arith.truncf %34 : vector<64x8xf32> to vector<64x8xbf16>
    %36 = vector.extract_strided_slice %32 {offsets = [0, 0], sizes = [8, 64], strides = [1, 1]} : vector<32x128xf32> to vector<8x64xf32>
    %37 = arith.truncf %36 : vector<8x64xf32> to vector<8x64xbf16>
    %38 = vector.extract_strided_slice %33 {offsets = [0, 0], sizes = [8, 64], strides = [1, 1]} : vector<32x128xf32> to vector<8x64xf32>
    %39 = arith.truncf %38 : vector<8x64xf32> to vector<8x64xbf16>
    %cst_13 = arith.constant dense<0.000000e+00> : vector<64x64xf32>
    %40 = tpu.matmul %35, %37, %cst_13 {dimension_numbers = #tpu.dot_dimension_numbers<[1], [0], [0], [1], [0, 0, 1, 1], [], []>} : vector<64x8xbf16>, vector<8x64xbf16>, vector<64x64xf32> -> vector<64x64xf32>
    %cst_14 = arith.constant dense<0xFF800000> : vector<64xf32>
    %41 = vector.multi_reduction <maximumf>, %40, %cst_14 [1] : vector<64x64xf32> to vector<64xf32>
    %42 = vector.shape_cast %41 : vector<64xf32> to vector<64x1xf32>
    %43 = vector.broadcast %42 : vector<64x1xf32> to vector<64x64xf32>
    %44 = arith.subf %40, %43 : vector<64x64xf32>
    %45 = math.exp %44 : vector<64x64xf32>
    %cst_15 = arith.constant dense<0.000000e+00> : vector<64xf32>
    %46 = vector.multi_reduction <add>, %45, %cst_15 [1] : vector<64x64xf32> to vector<64xf32>
    %47 = vector.shape_cast %46 : vector<64xf32> to vector<64x1xf32>
    %48 = tpu.reciprocal %47 {approx = true} : vector<64x1xf32> -> vector<64x1xf32>
    %49 = vector.broadcast %48 : vector<64x1xf32> to vector<64x64xf32>
    %50 = arith.mulf %45, %49 : vector<64x64xf32>
    %51 = arith.truncf %50 : vector<64x64xf32> to vector<64x64xbf16>
    %cst_16 = arith.constant dense<0.000000e+00> : vector<8x64xf32>
    %52 = tpu.matmul %39, %51, %cst_16 {dimension_numbers = #tpu.dot_dimension_numbers<[1], [1], [0], [0], [0, 0, 1, 0], [], []>} : vector<8x64xbf16>, vector<64x64xbf16>, vector<8x64xf32> -> vector<8x64xf32>
    %53 = vector.extract_strided_slice %31 {offsets = [64, 0], sizes = [64, 8], strides = [1, 1]} : vector<128x32xf32> to vector<64x8xf32>
    %54 = arith.truncf %53 : vector<64x8xf32> to vector<64x8xbf16>
    %55 = vector.extract_strided_slice %32 {offsets = [0, 64], sizes = [8, 64], strides = [1, 1]} : vector<32x128xf32> to vector<8x64xf32>
    %56 = arith.truncf %55 : vector<8x64xf32> to vector<8x64xbf16>
    %57 = vector.extract_strided_slice %33 {offsets = [0, 64], sizes = [8, 64], strides = [1, 1]} : vector<32x128xf32> to vector<8x64xf32>
    %58 = arith.truncf %57 : vector<8x64xf32> to vector<8x64xbf16>
    %cst_17 = arith.constant dense<0.000000e+00> : vector<64x64xf32>
    %59 = tpu.matmul %54, %56, %cst_17 {dimension_numbers = #tpu.dot_dimension_numbers<[1], [0], [0], [1], [0, 0, 1, 1], [], []>} : vector<64x8xbf16>, vector<8x64xbf16>, vector<64x64xf32> -> vector<64x64xf32>
    %cst_18 = arith.constant dense<0xFF800000> : vector<64xf32>
    %60 = vector.multi_reduction <maximumf>, %59, %cst_18 [1] : vector<64x64xf32> to vector<64xf32>
    %61 = vector.shape_cast %60 : vector<64xf32> to vector<64x1xf32>
    %62 = vector.broadcast %61 : vector<64x1xf32> to vector<64x64xf32>
    %63 = arith.subf %59, %62 : vector<64x64xf32>
    %64 = math.exp %63 : vector<64x64xf32>
    %cst_19 = arith.constant dense<0.000000e+00> : vector<64xf32>
    %65 = vector.multi_reduction <add>, %64, %cst_19 [1] : vector<64x64xf32> to vector<64xf32>
    %66 = vector.shape_cast %65 : vector<64xf32> to vector<64x1xf32>
    %67 = tpu.reciprocal %66 {approx = true} : vector<64x1xf32> -> vector<64x1xf32>
    %68 = vector.broadcast %67 : vector<64x1xf32> to vector<64x64xf32>
    %69 = arith.mulf %64, %68 : vector<64x64xf32>
    %70 = arith.truncf %69 : vector<64x64xf32> to vector<64x64xbf16>
    %cst_20 = arith.constant dense<0.000000e+00> : vector<8x64xf32>
    %71 = tpu.matmul %58, %70, %cst_20 {dimension_numbers = #tpu.dot_dimension_numbers<[1], [1], [0], [0], [0, 0, 1, 0], [], []>} : vector<8x64xbf16>, vector<64x64xbf16>, vector<8x64xf32> -> vector<8x64xf32>
    %72 = tpu.concatenate %52, %71 in 1 : vector<8x64xf32>, vector<8x64xf32> -> vector<8x128xf32>
    %73 = vector.extract_strided_slice %31 {offsets = [0, 8], sizes = [64, 8], strides = [1, 1]} : vector<128x32xf32> to vector<64x8xf32>
    %74 = arith.truncf %73 : vector<64x8xf32> to vector<64x8xbf16>
    %75 = vector.extract_strided_slice %32 {offsets = [8, 0], sizes = [8, 64], strides = [1, 1]} : vector<32x128xf32> to vector<8x64xf32>
    %76 = arith.truncf %75 : vector<8x64xf32> to vector<8x64xbf16>
    %77 = vector.extract_strided_slice %33 {offsets = [8, 0], sizes = [8, 64], strides = [1, 1]} : vector<32x128xf32> to vector<8x64xf32>
    %78 = arith.truncf %77 : vector<8x64xf32> to vector<8x64xbf16>
    %cst_21 = arith.constant dense<0.000000e+00> : vector<64x64xf32>
    %79 = tpu.matmul %74, %76, %cst_21 {dimension_numbers = #tpu.dot_dimension_numbers<[1], [0], [0], [1], [0, 0, 1, 1], [], []>} : vector<64x8xbf16>, vector<8x64xbf16>, vector<64x64xf32> -> vector<64x64xf32>
    %cst_22 = arith.constant dense<0xFF800000> : vector<64xf32>
    %80 = vector.multi_reduction <maximumf>, %79, %cst_22 [1] : vector<64x64xf32> to vector<64xf32>
    %81 = vector.shape_cast %80 : vector<64xf32> to vector<64x1xf32>
    %82 = vector.broadcast %81 : vector<64x1xf32> to vector<64x64xf32>
    %83 = arith.subf %79, %82 : vector<64x64xf32>
    %84 = math.exp %83 : vector<64x64xf32>
    %cst_23 = arith.constant dense<0.000000e+00> : vector<64xf32>
    %85 = vector.multi_reduction <add>, %84, %cst_23 [1] : vector<64x64xf32> to vector<64xf32>
    %86 = vector.shape_cast %85 : vector<64xf32> to vector<64x1xf32>
    %87 = tpu.reciprocal %86 {approx = true} : vector<64x1xf32> -> vector<64x1xf32>
    %88 = vector.broadcast %87 : vector<64x1xf32> to vector<64x64xf32>
    %89 = arith.mulf %84, %88 : vector<64x64xf32>
    %90 = arith.truncf %89 : vector<64x64xf32> to vector<64x64xbf16>
    %cst_24 = arith.constant dense<0.000000e+00> : vector<8x64xf32>
    %91 = tpu.matmul %78, %90, %cst_24 {dimension_numbers = #tpu.dot_dimension_numbers<[1], [1], [0], [0], [0, 0, 1, 0], [], []>} : vector<8x64xbf16>, vector<64x64xbf16>, vector<8x64xf32> -> vector<8x64xf32>
    %92 = vector.extract_strided_slice %31 {offsets = [64, 8], sizes = [64, 8], strides = [1, 1]} : vector<128x32xf32> to vector<64x8xf32>
    %93 = arith.truncf %92 : vector<64x8xf32> to vector<64x8xbf16>
    %94 = vector.extract_strided_slice %32 {offsets = [8, 64], sizes = [8, 64], strides = [1, 1]} : vector<32x128xf32> to vector<8x64xf32>
    %95 = arith.truncf %94 : vector<8x64xf32> to vector<8x64xbf16>
    %96 = vector.extract_strided_slice %33 {offsets = [8, 64], sizes = [8, 64], strides = [1, 1]} : vector<32x128xf32> to vector<8x64xf32>
    %97 = arith.truncf %96 : vector<8x64xf32> to vector<8x64xbf16>
    %cst_25 = arith.constant dense<0.000000e+00> : vector<64x64xf32>
    %98 = tpu.matmul %93, %95, %cst_25 {dimension_numbers = #tpu.dot_dimension_numbers<[1], [0], [0], [1], [0, 0, 1, 1], [], []>} : vector<64x8xbf16>, vector<8x64xbf16>, vector<64x64xf32> -> vector<64x64xf32>
    %cst_26 = arith.constant dense<0xFF800000> : vector<64xf32>
    %99 = vector.multi_reduction <maximumf>, %98, %cst_26 [1] : vector<64x64xf32> to vector<64xf32>
    %100 = vector.shape_cast %99 : vector<64xf32> to vector<64x1xf32>
    %101 = vector.broadcast %100 : vector<64x1xf32> to vector<64x64xf32>
    %102 = arith.subf %98, %101 : vector<64x64xf32>
    %103 = math.exp %102 : vector<64x64xf32>
    %cst_27 = arith.constant dense<0.000000e+00> : vector<64xf32>
    %104 = vector.multi_reduction <add>, %103, %cst_27 [1] : vector<64x64xf32> to vector<64xf32>
    %105 = vector.shape_cast %104 : vector<64xf32> to vector<64x1xf32>
    %106 = tpu.reciprocal %105 {approx = true} : vector<64x1xf32> -> vector<64x1xf32>
    %107 = vector.broadcast %106 : vector<64x1xf32> to vector<64x64xf32>
    %108 = arith.mulf %103, %107 : vector<64x64xf32>
    %109 = arith.truncf %108 : vector<64x64xf32> to vector<64x64xbf16>
    %cst_28 = arith.constant dense<0.000000e+00> : vector<8x64xf32>
    %110 = tpu.matmul %97, %109, %cst_28 {dimension_numbers = #tpu.dot_dimension_numbers<[1], [1], [0], [0], [0, 0, 1, 0], [], []>} : vector<8x64xbf16>, vector<64x64xbf16>, vector<8x64xf32> -> vector<8x64xf32>
    %111 = tpu.concatenate %91, %110 in 1 : vector<8x64xf32>, vector<8x64xf32> -> vector<8x128xf32>
    %112 = vector.extract_strided_slice %31 {offsets = [0, 16], sizes = [64, 8], strides = [1, 1]} : vector<128x32xf32> to vector<64x8xf32>
    %113 = arith.truncf %112 : vector<64x8xf32> to vector<64x8xbf16>
    %114 = vector.extract_strided_slice %32 {offsets = [16, 0], sizes = [8, 64], strides = [1, 1]} : vector<32x128xf32> to vector<8x64xf32>
    %115 = arith.truncf %114 : vector<8x64xf32> to vector<8x64xbf16>
    %116 = vector.extract_strided_slice %33 {offsets = [16, 0], sizes = [8, 64], strides = [1, 1]} : vector<32x128xf32> to vector<8x64xf32>
    %117 = arith.truncf %116 : vector<8x64xf32> to vector<8x64xbf16>
    %cst_29 = arith.constant dense<0.000000e+00> : vector<64x64xf32>
    %118 = tpu.matmul %113, %115, %cst_29 {dimension_numbers = #tpu.dot_dimension_numbers<[1], [0], [0], [1], [0, 0, 1, 1], [], []>} : vector<64x8xbf16>, vector<8x64xbf16>, vector<64x64xf32> -> vector<64x64xf32>
    %cst_30 = arith.constant dense<0xFF800000> : vector<64xf32>
    %119 = vector.multi_reduction <maximumf>, %118, %cst_30 [1] : vector<64x64xf32> to vector<64xf32>
    %120 = vector.shape_cast %119 : vector<64xf32> to vector<64x1xf32>
    %121 = vector.broadcast %120 : vector<64x1xf32> to vector<64x64xf32>
    %122 = arith.subf %118, %121 : vector<64x64xf32>
    %123 = math.exp %122 : vector<64x64xf32>
    %cst_31 = arith.constant dense<0.000000e+00> : vector<64xf32>
    %124 = vector.multi_reduction <add>, %123, %cst_31 [1] : vector<64x64xf32> to vector<64xf32>
    %125 = vector.shape_cast %124 : vector<64xf32> to vector<64x1xf32>
    %126 = tpu.reciprocal %125 {approx = true} : vector<64x1xf32> -> vector<64x1xf32>
    %127 = vector.broadcast %126 : vector<64x1xf32> to vector<64x64xf32>
    %128 = arith.mulf %123, %127 : vector<64x64xf32>
    %129 = arith.truncf %128 : vector<64x64xf32> to vector<64x64xbf16>
    %cst_32 = arith.constant dense<0.000000e+00> : vector<8x64xf32>
    %130 = tpu.matmul %117, %129, %cst_32 {dimension_numbers = #tpu.dot_dimension_numbers<[1], [1], [0], [0], [0, 0, 1, 0], [], []>} : vector<8x64xbf16>, vector<64x64xbf16>, vector<8x64xf32> -> vector<8x64xf32>
    %131 = vector.extract_strided_slice %31 {offsets = [64, 16], sizes = [64, 8], strides = [1, 1]} : vector<128x32xf32> to vector<64x8xf32>
    %132 = arith.truncf %131 : vector<64x8xf32> to vector<64x8xbf16>
    %133 = vector.extract_strided_slice %32 {offsets = [16, 64], sizes = [8, 64], strides = [1, 1]} : vector<32x128xf32> to vector<8x64xf32>
    %134 = arith.truncf %133 : vector<8x64xf32> to vector<8x64xbf16>
    %135 = vector.extract_strided_slice %33 {offsets = [16, 64], sizes = [8, 64], strides = [1, 1]} : vector<32x128xf32> to vector<8x64xf32>
    %136 = arith.truncf %135 : vector<8x64xf32> to vector<8x64xbf16>
    %cst_33 = arith.constant dense<0.000000e+00> : vector<64x64xf32>
    %137 = tpu.matmul %132, %134, %cst_33 {dimension_numbers = #tpu.dot_dimension_numbers<[1], [0], [0], [1], [0, 0, 1, 1], [], []>} : vector<64x8xbf16>, vector<8x64xbf16>, vector<64x64xf32> -> vector<64x64xf32>
    %cst_34 = arith.constant dense<0xFF800000> : vector<64xf32>
    %138 = vector.multi_reduction <maximumf>, %137, %cst_34 [1] : vector<64x64xf32> to vector<64xf32>
    %139 = vector.shape_cast %138 : vector<64xf32> to vector<64x1xf32>
    %140 = vector.broadcast %139 : vector<64x1xf32> to vector<64x64xf32>
    %141 = arith.subf %137, %140 : vector<64x64xf32>
    %142 = math.exp %141 : vector<64x64xf32>
    %cst_35 = arith.constant dense<0.000000e+00> : vector<64xf32>
    %143 = vector.multi_reduction <add>, %142, %cst_35 [1] : vector<64x64xf32> to vector<64xf32>
    %144 = vector.shape_cast %143 : vector<64xf32> to vector<64x1xf32>
    %145 = tpu.reciprocal %144 {approx = true} : vector<64x1xf32> -> vector<64x1xf32>
    %146 = vector.broadcast %145 : vector<64x1xf32> to vector<64x64xf32>
    %147 = arith.mulf %142, %146 : vector<64x64xf32>
    %148 = arith.truncf %147 : vector<64x64xf32> to vector<64x64xbf16>
    %cst_36 = arith.constant dense<0.000000e+00> : vector<8x64xf32>
    %149 = tpu.matmul %136, %148, %cst_36 {dimension_numbers = #tpu.dot_dimension_numbers<[1], [1], [0], [0], [0, 0, 1, 0], [], []>} : vector<8x64xbf16>, vector<64x64xbf16>, vector<8x64xf32> -> vector<8x64xf32>
    %150 = tpu.concatenate %130, %149 in 1 : vector<8x64xf32>, vector<8x64xf32> -> vector<8x128xf32>
    %151 = vector.extract_strided_slice %31 {offsets = [0, 24], sizes = [64, 8], strides = [1, 1]} : vector<128x32xf32> to vector<64x8xf32>
    %152 = arith.truncf %151 : vector<64x8xf32> to vector<64x8xbf16>
    %153 = vector.extract_strided_slice %32 {offsets = [24, 0], sizes = [8, 64], strides = [1, 1]} : vector<32x128xf32> to vector<8x64xf32>
    %154 = arith.truncf %153 : vector<8x64xf32> to vector<8x64xbf16>
    %155 = vector.extract_strided_slice %33 {offsets = [24, 0], sizes = [8, 64], strides = [1, 1]} : vector<32x128xf32> to vector<8x64xf32>
    %156 = arith.truncf %155 : vector<8x64xf32> to vector<8x64xbf16>
    %cst_37 = arith.constant dense<0.000000e+00> : vector<64x64xf32>
    %157 = tpu.matmul %152, %154, %cst_37 {dimension_numbers = #tpu.dot_dimension_numbers<[1], [0], [0], [1], [0, 0, 1, 1], [], []>} : vector<64x8xbf16>, vector<8x64xbf16>, vector<64x64xf32> -> vector<64x64xf32>
    %cst_38 = arith.constant dense<0xFF800000> : vector<64xf32>
    %158 = vector.multi_reduction <maximumf>, %157, %cst_38 [1] : vector<64x64xf32> to vector<64xf32>
    %159 = vector.shape_cast %158 : vector<64xf32> to vector<64x1xf32>
    %160 = vector.broadcast %159 : vector<64x1xf32> to vector<64x64xf32>
    %161 = arith.subf %157, %160 : vector<64x64xf32>
    %162 = math.exp %161 : vector<64x64xf32>
    %cst_39 = arith.constant dense<0.000000e+00> : vector<64xf32>
    %163 = vector.multi_reduction <add>, %162, %cst_39 [1] : vector<64x64xf32> to vector<64xf32>
    %164 = vector.shape_cast %163 : vector<64xf32> to vector<64x1xf32>
    %165 = tpu.reciprocal %164 {approx = true} : vector<64x1xf32> -> vector<64x1xf32>
    %166 = vector.broadcast %165 : vector<64x1xf32> to vector<64x64xf32>
    %167 = arith.mulf %162, %166 : vector<64x64xf32>
    %168 = arith.truncf %167 : vector<64x64xf32> to vector<64x64xbf16>
    %cst_40 = arith.constant dense<0.000000e+00> : vector<8x64xf32>
    %169 = tpu.matmul %156, %168, %cst_40 {dimension_numbers = #tpu.dot_dimension_numbers<[1], [1], [0], [0], [0, 0, 1, 0], [], []>} : vector<8x64xbf16>, vector<64x64xbf16>, vector<8x64xf32> -> vector<8x64xf32>
    %170 = vector.extract_strided_slice %31 {offsets = [64, 24], sizes = [64, 8], strides = [1, 1]} : vector<128x32xf32> to vector<64x8xf32>
    %171 = arith.truncf %170 : vector<64x8xf32> to vector<64x8xbf16>
    %172 = vector.extract_strided_slice %32 {offsets = [24, 64], sizes = [8, 64], strides = [1, 1]} : vector<32x128xf32> to vector<8x64xf32>
    %173 = arith.truncf %172 : vector<8x64xf32> to vector<8x64xbf16>
    %174 = vector.extract_strided_slice %33 {offsets = [24, 64], sizes = [8, 64], strides = [1, 1]} : vector<32x128xf32> to vector<8x64xf32>
    %175 = arith.truncf %174 : vector<8x64xf32> to vector<8x64xbf16>
    %cst_41 = arith.constant dense<0.000000e+00> : vector<64x64xf32>
    %176 = tpu.matmul %171, %173, %cst_41 {dimension_numbers = #tpu.dot_dimension_numbers<[1], [0], [0], [1], [0, 0, 1, 1], [], []>} : vector<64x8xbf16>, vector<8x64xbf16>, vector<64x64xf32> -> vector<64x64xf32>
    %cst_42 = arith.constant dense<0xFF800000> : vector<64xf32>
    %177 = vector.multi_reduction <maximumf>, %176, %cst_42 [1] : vector<64x64xf32> to vector<64xf32>
    %178 = vector.shape_cast %177 : vector<64xf32> to vector<64x1xf32>
    %179 = vector.broadcast %178 : vector<64x1xf32> to vector<64x64xf32>
    %180 = arith.subf %176, %179 : vector<64x64xf32>
    %181 = math.exp %180 : vector<64x64xf32>
    %cst_43 = arith.constant dense<0.000000e+00> : vector<64xf32>
    %182 = vector.multi_reduction <add>, %181, %cst_43 [1] : vector<64x64xf32> to vector<64xf32>
    %183 = vector.shape_cast %182 : vector<64xf32> to vector<64x1xf32>
    %184 = tpu.reciprocal %183 {approx = true} : vector<64x1xf32> -> vector<64x1xf32>
    %185 = vector.broadcast %184 : vector<64x1xf32> to vector<64x64xf32>
    %186 = arith.mulf %181, %185 : vector<64x64xf32>
    %187 = arith.truncf %186 : vector<64x64xf32> to vector<64x64xbf16>
    %cst_44 = arith.constant dense<0.000000e+00> : vector<8x64xf32>
    %188 = tpu.matmul %175, %187, %cst_44 {dimension_numbers = #tpu.dot_dimension_numbers<[1], [1], [0], [0], [0, 0, 1, 0], [], []>} : vector<8x64xbf16>, vector<64x64xbf16>, vector<8x64xf32> -> vector<8x64xf32>
    %189 = tpu.concatenate %169, %188 in 1 : vector<8x64xf32>, vector<8x64xf32> -> vector<8x128xf32>
    %190 = tpu.concatenate %72, %111, %150, %189 in 0 : vector<8x128xf32>, vector<8x128xf32>, vector<8x128xf32>, vector<8x128xf32> -> vector<32x128xf32>
    %191 = arith.truncf %190 : vector<32x128xf32> to vector<32x128xbf16>
    %c0_45 = arith.constant 0 : index
    %c0_46 = arith.constant 0 : index
    %192 = vector.load %arg5[%c0_45, %c0_46] : memref<32x32xbf16, #tpu.memory_space<vmem>>, vector<32x32xbf16>
    %cst_47 = arith.constant dense<0.000000e+00> : vector<32x128xf32>
    %193 = tpu.matmul %192, %191, %cst_47 {dimension_numbers = #tpu.dot_dimension_numbers<[1], [0], [0], [1], [0, 0, 1, 1], [], []>} : vector<32x32xbf16>, vector<32x128xbf16>, vector<32x128xf32> -> vector<32x128xf32>
    %194 = arith.addf %2, %193 : vector<32x128xf32>
    %c0_48 = arith.constant 0 : index
    %c0_49 = arith.constant 0 : index
    %195 = vector.load %arg6[%c0_48, %c0_49] : memref<32x1xf32, #tpu.memory_space<vmem>>, vector<32x1xf32>
    %196 = vector.broadcast %195 : vector<32x1xf32> to vector<32x128xf32>
    %197 = arith.addf %194, %196 : vector<32x128xf32>
    %c0_50 = arith.constant 0 : index
    %c0_51 = arith.constant 0 : index
    %198 = vector.load %arg7[%c0_50, %c0_51] : memref<32x1xf32, #tpu.memory_space<vmem>>, vector<32x1xf32>
    %c0_52 = arith.constant 0 : index
    %c0_53 = arith.constant 0 : index
    %199 = vector.load %arg8[%c0_52, %c0_53] : memref<32x1xf32, #tpu.memory_space<vmem>>, vector<32x1xf32>
    %cst_54 = arith.constant dense<0.000000e+00> : vector<128xf32>
    %200 = vector.multi_reduction <add>, %197, %cst_54 [0] : vector<32x128xf32> to vector<128xf32>
    %201 = vector.shape_cast %200 : vector<128xf32> to vector<1x128xf32>
    %cst_55 = arith.constant 3.200000e+01 : f32
    %202 = vector.broadcast %cst_55 : f32 to vector<1x128xf32>
    %203 = arith.divf %201, %202 : vector<1x128xf32>
    %204 = vector.broadcast %203 : vector<1x128xf32> to vector<32x128xf32>
    %205 = arith.subf %197, %204 : vector<32x128xf32>
    %206 = arith.mulf %205, %205 : vector<32x128xf32>
    %cst_56 = arith.constant dense<0.000000e+00> : vector<128xf32>
    %207 = vector.multi_reduction <add>, %206, %cst_56 [0] : vector<32x128xf32> to vector<128xf32>
    %208 = vector.shape_cast %207 : vector<128xf32> to vector<1x128xf32>
    %cst_57 = arith.constant 3.200000e+01 : f32
    %209 = vector.broadcast %cst_57 : f32 to vector<1x128xf32>
    %210 = arith.divf %208, %209 : vector<1x128xf32>
    %211 = vector.broadcast %203 : vector<1x128xf32> to vector<32x128xf32>
    %212 = arith.subf %197, %211 : vector<32x128xf32>
    %cst_58 = arith.constant 9.99999974E-6 : f32
    %213 = vector.broadcast %cst_58 : f32 to vector<1x128xf32>
    %214 = arith.addf %210, %213 : vector<1x128xf32>
    %215 = math.rsqrt %214 : vector<1x128xf32>
    %216 = vector.broadcast %215 : vector<1x128xf32> to vector<32x128xf32>
    %217 = arith.mulf %212, %216 : vector<32x128xf32>
    %218 = vector.broadcast %198 : vector<32x1xf32> to vector<32x128xf32>
    %219 = arith.mulf %217, %218 : vector<32x128xf32>
    %220 = vector.broadcast %199 : vector<32x1xf32> to vector<32x128xf32>
    %221 = arith.addf %219, %220 : vector<32x128xf32>
    %222 = arith.truncf %221 : vector<32x128xf32> to vector<32x128xbf16>
    %c0_59 = arith.constant 0 : index
    %c0_60 = arith.constant 0 : index
    %223 = vector.load %arg9[%c0_59, %c0_60] : memref<128x32xbf16, #tpu.memory_space<vmem>>, vector<128x32xbf16>
    %cst_61 = arith.constant dense<0.000000e+00> : vector<128x128xf32>
    %224 = tpu.matmul %223, %222, %cst_61 {dimension_numbers = #tpu.dot_dimension_numbers<[1], [0], [0], [1], [0, 0, 1, 1], [], []>} : vector<128x32xbf16>, vector<32x128xbf16>, vector<128x128xf32> -> vector<128x128xf32>
    %c0_62 = arith.constant 0 : index
    %c0_63 = arith.constant 0 : index
    %225 = vector.load %arg10[%c0_62, %c0_63] : memref<128x1xf32, #tpu.memory_space<vmem>>, vector<128x1xf32>
    %226 = vector.broadcast %225 : vector<128x1xf32> to vector<128x128xf32>
    %227 = arith.addf %224, %226 : vector<128x128xf32>
    %cst_64 = arith.constant 5.000000e-01 : f32
    %228 = vector.broadcast %cst_64 : f32 to vector<128x128xf32>
    %229 = arith.mulf %228, %227 : vector<128x128xf32>
    %cst_65 = arith.constant 0.707106769 : f32
    %230 = vector.broadcast %cst_65 : f32 to vector<128x128xf32>
    %231 = arith.mulf %227, %230 : vector<128x128xf32>
    %232 = math.erf %231 : vector<128x128xf32>
    %cst_66 = arith.constant 1.000000e+00 : f32
    %233 = vector.broadcast %cst_66 : f32 to vector<128x128xf32>
    %234 = arith.addf %233, %232 : vector<128x128xf32>
    %235 = arith.mulf %229, %234 : vector<128x128xf32>
    %236 = arith.truncf %235 : vector<128x128xf32> to vector<128x128xbf16>
    %c0_67 = arith.constant 0 : index
    %c0_68 = arith.constant 0 : index
    %237 = vector.load %arg11[%c0_67, %c0_68] : memref<32x128xbf16, #tpu.memory_space<vmem>>, vector<32x128xbf16>
    %cst_69 = arith.constant dense<0.000000e+00> : vector<32x128xf32>
    %238 = tpu.matmul %237, %236, %cst_69 {dimension_numbers = #tpu.dot_dimension_numbers<[1], [0], [0], [1], [0, 0, 1, 1], [], []>} : vector<32x128xbf16>, vector<128x128xbf16>, vector<32x128xf32> -> vector<32x128xf32>
    %c0_70 = arith.constant 0 : index
    %c0_71 = arith.constant 0 : index
    %239 = vector.load %arg12[%c0_70, %c0_71] : memref<32x1xf32, #tpu.memory_space<vmem>>, vector<32x1xf32>
    %240 = vector.broadcast %239 : vector<32x1xf32> to vector<32x128xf32>
    %241 = arith.addf %238, %240 : vector<32x128xf32>
    %242 = arith.addf %197, %241 : vector<32x128xf32>
    %243 = tpu.transpose %242, [1, 0] : vector<32x128xf32> -> vector<128x32xf32>
    %244 = vector.shape_cast %243 : vector<128x32xf32> to vector<2x64x32xf32>
    %c0_72 = arith.constant 0 : index
    %c0_73 = arith.constant 0 : index
    %c0_74 = arith.constant 0 : index
    %245 = vector.load %arg13[%c0_72, %c0_73, %c0_74] : memref<2x64x32xf32, #tpu.memory_space<vmem>>, vector<2x64x32xf32>
    tpu.vector_store %arg13[%c0_72, %c0_73, %c0_74], %244 {strides = array<i32>} : memref<2x64x32xf32, #tpu.memory_space<vmem>>, vector<2x64x32xf32>,
    return
  }
  func.func @transform_0(%arg0: i32) -> (i32, i32, i32) {
    %c0_i32 = arith.constant 0 : i32
    %c0_i32_0 = arith.constant 0 : i32
    %c0_i32_1 = arith.constant 0 : i32
    return %arg0, %c0_i32, %c0_i32_0 : i32, i32, i32
  }
  func.func @transform_1(%arg0: i32) -> (i32, i32) {
    %c0_i32 = arith.constant 0 : i32
    %c0_i32_0 = arith.constant 0 : i32
    %c0_i32_1 = arith.constant 0 : i32
    return %c0_i32, %c0_i32_0 : i32, i32
  }
  func.func @transform_2(%arg0: i32) -> (i32, i32) {
    %c0_i32 = arith.constant 0 : i32
    %c0_i32_0 = arith.constant 0 : i32
    %c0_i32_1 = arith.constant 0 : i32
    return %c0_i32, %c0_i32_0 : i32, i32
  }
  func.func @transform_3(%arg0: i32) -> (i32, i32) {
    %c0_i32 = arith.constant 0 : i32
    %c0_i32_0 = arith.constant 0 : i32
    %c0_i32_1 = arith.constant 0 : i32
    return %c0_i32, %c0_i32_0 : i32, i32
  }
  func.func @transform_4(%arg0: i32) -> (i32, i32) {
    %c0_i32 = arith.constant 0 : i32
    %c0_i32_0 = arith.constant 0 : i32
    %c0_i32_1 = arith.constant 0 : i32
    return %c0_i32, %c0_i32_0 : i32, i32
  }
  func.func @transform_5(%arg0: i32) -> (i32, i32) {
    %c0_i32 = arith.constant 0 : i32
    %c0_i32_0 = arith.constant 0 : i32
    %c0_i32_1 = arith.constant 0 : i32
    return %c0_i32, %c0_i32_0 : i32, i32
  }
  func.func @transform_6(%arg0: i32) -> (i32, i32) {
    %c0_i32 = arith.constant 0 : i32
    %c0_i32_0 = arith.constant 0 : i32
    %c0_i32_1 = arith.constant 0 : i32
    return %c0_i32, %c0_i32_0 : i32, i32
  }
  func.func @transform_7(%arg0: i32) -> (i32, i32) {
    %c0_i32 = arith.constant 0 : i32
    %c0_i32_0 = arith.constant 0 : i32
    %c0_i32_1 = arith.constant 0 : i32
    return %c0_i32, %c0_i32_0 : i32, i32
  }
  func.func @transform_8(%arg0: i32) -> (i32, i32) {
    %c0_i32 = arith.constant 0 : i32
    %c0_i32_0 = arith.constant 0 : i32
    %c0_i32_1 = arith.constant 0 : i32
    return %c0_i32, %c0_i32_0 : i32, i32
  }
  func.func @transform_9(%arg0: i32) -> (i32, i32) {
    %c0_i32 = arith.constant 0 : i32
    %c0_i32_0 = arith.constant 0 : i32
    %c0_i32_1 = arith.constant 0 : i32
    return %c0_i32, %c0_i32_0 : i32, i32
  }
  func.func @transform_10(%arg0: i32) -> (i32, i32) {
    %c0_i32 = arith.constant 0 : i32
    %c0_i32_0 = arith.constant 0 : i32
    %c0_i32_1 = arith.constant 0 : i32
    return %c0_i32, %c0_i32_0 : i32, i32
  }
  func.func @transform_11(%arg0: i32) -> (i32, i32) {
    %c0_i32 = arith.constant 0 : i32
    %c0_i32_0 = arith.constant 0 : i32
    %c0_i32_1 = arith.constant 0 : i32
    return %c0_i32, %c0_i32_0 : i32, i32
  }
  func.func @transform_12(%arg0: i32) -> (i32, i32, i32) {
    %c0_i32 = arith.constant 0 : i32
    %c0_i32_0 = arith.constant 0 : i32
    %c0_i32_1 = arith.constant 0 : i32
    return %arg0, %c0_i32, %c0_i32_0 : i32, i32, i32
  }
}

</mosaic_0001>

<llo_original>
// kernel: tpu_custom_call.1
$region0: #{tpu_custom_call.1}
  #allocation0 [shape = 'u32[]', space=smem, size = 0x4, offset = 0x4, fixed_abs, tag = 'smem constant byte address 0x4 - core index']
  #allocation1 [shape = 'u32[144,128]{1,0:T(1,128)}', space=vmem, size = 0x12000, scoped, tag = 'internal scratch']
  %s0 = inlined_call_operand.vmem [shape: f32[2,64,32], index: 0, kind: input, shape index: {}]
  %s1 = inlined_call_operand.vmem [shape: f32[32,1], index: 1, kind: input, shape index: {}]
  %s2 = inlined_call_operand.vmem [shape: f32[32,1], index: 2, kind: input, shape index: {}]
  %s3 = inlined_call_operand.vmem [shape: bf16[96,32], index: 3, kind: input, shape index: {}]
  %s4 = inlined_call_operand.vmem [shape: bf16[32,32], index: 4, kind: input, shape index: {}]
  %s5 = inlined_call_operand.vmem [shape: f32[32,1], index: 5, kind: input, shape index: {}]
  %s6 = inlined_call_operand.vmem [shape: f32[32,1], index: 6, kind: input, shape index: {}]
  %s7 = inlined_call_operand.vmem [shape: f32[32,1], index: 7, kind: input, shape index: {}]
  %s8 = inlined_call_operand.vmem [shape: bf16[128,32], index: 8, kind: input, shape index: {}]
  %s9 = inlined_call_operand.vmem [shape: f32[128,1], index: 9, kind: input, shape index: {}]
  %s10 = inlined_call_operand.vmem [shape: bf16[32,128], index: 10, kind: input, shape index: {}]
  %s11 = inlined_call_operand.vmem [shape: f32[32,1], index: 11, kind: input, shape index: {}]
  %s12 = inlined_call_operand.vmem [shape: f32[2,64,32], index: 12, kind: output, shape index: {}]
  %s13 = sld [smem:[#allocation0]]
  $region58: #{tpu_custom_call.1} parent=0
    _
  %s15 = ssub.s32 1, %s13
  %s16 = scalar_select 0, %s15, %s13
  // Predicated region
  $region2: #{tpu_custom_call.1} parent=0 // pred_check
    _
  $region3: #{tpu_custom_call.1} parent=0 // pred_check_branch
    %18 = sbr.rel (0) target = $region5
  $region4: #{tpu_custom_call.1} parent=0 // pred_region
    _
  $region5: #{tpu_custom_call.1} parent=0 // pred_fallthru
    _
  // Predicated region
  $region6: #{tpu_custom_call.1} parent=0 // pred_check
    _
  $region7: #{tpu_custom_call.1} parent=0 // pred_check_branch
    %20 = sbr.rel (0) target = $region9
  $region8: #{tpu_custom_call.1} parent=0 // pred_region
    _
  $region9: #{tpu_custom_call.1} parent=0 // pred_fallthru
    _
  // Predicated region
  $region10: #{tpu_custom_call.1} parent=0 // pred_check
    _
  $region11: #{tpu_custom_call.1} parent=0 // pred_check_branch
    %22 = sbr.rel (0) target = $region13
  $region12: #{tpu_custom_call.1} parent=0 // pred_region
    _
  $region13: #{tpu_custom_call.1} parent=0 // pred_fallthru
    _
  // Predicated region
  $region14: #{tpu_custom_call.1} parent=0 // pred_check
    _
  $region15: #{tpu_custom_call.1} parent=0 // pred_check_branch
    %24 = sbr.rel (0) target = $region17
  $region16: #{tpu_custom_call.1} parent=0 // pred_region
    _
  $region17: #{tpu_custom_call.1} parent=0 // pred_fallthru
    _
  // Predicated region
  $region18: #{tpu_custom_call.1} parent=0 // pred_check
    _
  $region19: #{tpu_custom_call.1} parent=0 // pred_check_branch
    %26 = sbr.rel (0) target = $region21
  $region20: #{tpu_custom_call.1} parent=0 // pred_region
    _
  $region21: #{tpu_custom_call.1} parent=0 // pred_fallthru
    _
  // Predicated region
  $region22: #{tpu_custom_call.1} parent=0 // pred_check
    _
  $region23: #{tpu_custom_call.1} parent=0 // pred_check_branch
    %28 = sbr.rel (0) target = $region25
  $region24: #{tpu_custom_call.1} parent=0 // pred_region
    _
  $region25: #{tpu_custom_call.1} parent=0 // pred_fallthru
    _
  // Predicated region
  $region26: #{tpu_custom_call.1} parent=0 // pred_check
    _
  $region27: #{tpu_custom_call.1} parent=0 // pred_check_branch
    %30 = sbr.rel (0) target = $region29
  $region28: #{tpu_custom_call.1} parent=0 // pred_region
    _
  $region29: #{tpu_custom_call.1} parent=0 // pred_fallthru
    _
  // Predicated region
  $region30: #{tpu_custom_call.1} parent=0 // pred_check
    _
  $region31: #{tpu_custom_call.1} parent=0 // pred_check_branch
    %32 = sbr.rel (0) target = $region33
  $region32: #{tpu_custom_call.1} parent=0 // pred_region
    _
  $region33: #{tpu_custom_call.1} parent=0 // pred_fallthru
    _
  // Predicated region
  $region34: #{tpu_custom_call.1} parent=0 // pred_check
    _
  $region35: #{tpu_custom_call.1} parent=0 // pred_check_branch
    %34 = sbr.rel (0) target = $region37
  $region36: #{tpu_custom_call.1} parent=0 // pred_region
    _
  $region37: #{tpu_custom_call.1} parent=0 // pred_fallthru
    _
  // Predicated region
  $region38: #{tpu_custom_call.1} parent=0 // pred_check
    _
  $region39: #{tpu_custom_call.1} parent=0 // pred_check_branch
    %36 = sbr.rel (0) target = $region41
  $region40: #{tpu_custom_call.1} parent=0 // pred_region
    _
  $region41: #{tpu_custom_call.1} parent=0 // pred_fallthru
    _
  // Predicated region
  $region42: #{tpu_custom_call.1} parent=0 // pred_check
    _
  $region43: #{tpu_custom_call.1} parent=0 // pred_check_branch
    %38 = sbr.rel (0) target = $region45
  $region44: #{tpu_custom_call.1} parent=0 // pred_region
    _
  $region45: #{tpu_custom_call.1} parent=0 // pred_fallthru
    _
  // Predicated region
  $region46: #{tpu_custom_call.1} parent=0 // pred_check
    _
  $region47: #{tpu_custom_call.1} parent=0 // pred_check_branch
    %40 = sbr.rel (0) target = $region49
  $region48: #{tpu_custom_call.1} parent=0 // pred_region
    _
  $region49: #{tpu_custom_call.1} parent=0 // pred_fallthru
    _
  %v42 = vld [vmem:[%s0] sm:$0xff]
  %v43 = vld [vmem:[%s0 + $0x8] sm:$0xff]
  %v44 = vld [vmem:[%s0 + $0x10] sm:$0xff]
  %v45 = vld [vmem:[%s0 + $0x18] sm:$0xff]
  %v46 = vld [vmem:[%s0 + $0x20] sm:$0xff]
  %v47 = vld [vmem:[%s0 + $0x28] sm:$0xff]
  %v48 = vld [vmem:[%s0 + $0x30] sm:$0xff]
  %v49 = vld [vmem:[%s0 + $0x38] sm:$0xff]
  %v50 = vld [vmem:[%s0 + $0x40] sm:$0xff]
  %v51 = vld [vmem:[%s0 + $0x48] sm:$0xff]
  %v52 = vld [vmem:[%s0 + $0x50] sm:$0xff]
  %v53 = vld [vmem:[%s0 + $0x58] sm:$0xff]
  %v54 = vld [vmem:[%s0 + $0x60] sm:$0xff]
  %v55 = vld [vmem:[%s0 + $0x68] sm:$0xff]
  %v56 = vld [vmem:[%s0 + $0x70] sm:$0xff]
  %v57 = vld [vmem:[%s0 + $0x78] sm:$0xff]
  %58 = vxpose.xlu0.b32.start [1/16] %v42, 128
  %59 = vxpose.xlu0.b32.cont [2/16] %v43, 128
  %60 = vxpose.xlu0.b32.cont [3/16] %v44, 128
  %61 = vxpose.xlu0.b32.cont [4/16] %v45, 128
  %62 = vxpose.xlu0.b32.cont [5/16] %v46, 128
  %63 = vxpose.xlu0.b32.cont [6/16] %v47, 128
  %64 = vxpose.xlu0.b32.cont [7/16] %v48, 128
  %65 = vxpose.xlu0.b32.cont [8/16] %v49, 128
  %66 = vxpose.xlu0.b32.cont [9/16] %v50, 128
  %67 = vxpose.xlu0.b32.cont [10/16] %v51, 128
  %68 = vxpose.xlu0.b32.cont [11/16] %v52, 128
  %69 = vxpose.xlu0.b32.cont [12/16] %v53, 128
  %70 = vxpose.xlu0.b32.cont [13/16] %v54, 128
  %71 = vxpose.xlu0.b32.cont [14/16] %v55, 128
  %72 = vxpose.xlu0.b32.cont [15/16] %v56, 128
  %73 = vxpose.xlu0.b32.end [16/16] %v57, 128
  %v74 = vpop.trf.xlu0
  %v75 = vpop.trf.xlu0
  %v76 = vpop.trf.xlu0
  %v77 = vpop.trf.xlu0
  %v78 = vpop.trf.xlu0
  %v79 = vpop.trf.xlu0
  %v80 = vpop.trf.xlu0
  %v81 = vpop.trf.xlu0
  %v82 = vpop.trf.xlu0
  %v83 = vpop.trf.xlu0
  %v84 = vpop.trf.xlu0
  %v85 = vpop.trf.xlu0
  %v86 = vpop.trf.xlu0
  %v87 = vpop.trf.xlu0
  %v88 = vpop.trf.xlu0
  %v89 = vpop.trf.xlu0
  %v90 = vld [vmem:[%s1] sm:$0xff]
  %v91 = vld [vmem:[%s1 + $0x8] sm:$0xff]
  %v92 = vld [vmem:[%s1 + $0x10] sm:$0xff]
  %v93 = vld [vmem:[%s1 + $0x18] sm:$0xff]
  %v94 = vld [vmem:[%s2] sm:$0xff]
  %v95 = vld [vmem:[%s2 + $0x8] sm:$0xff]
  %v96 = vld [vmem:[%s2 + $0x10] sm:$0xff]
  %v97 = vld [vmem:[%s2 + $0x18] sm:$0xff]
  %v98 = vadd.f32 %v74, %v75
  %v99 = vadd.f32 %v98, %v76
  %v100 = vadd.f32 %v99, %v77
  %v101 = vrot.slane %v100, 4
  %v102 = vadd.f32 %v100, %v101
  %v103 = vrot.slane %v102, 2
  %v104 = vadd.f32 %v102, %v103
  %v105 = vrot.slane %v104, 1
  %v106 = vadd.f32 %v104, %v105
  %v107 = vrcp.pop 32.0
  %v108 = vmul.f32 %v106, %v107
  %v109 = vsub.f32 %v74, %v108
  %v110 = vsub.f32 %v75, %v108
  %v111 = vsub.f32 %v76, %v108
  %v112 = vsub.f32 %v77, %v108
  %v113 = vmul.f32 %v109, %v109
  %v114 = vmul.f32 %v110, %v110
  %v115 = vmul.f32 %v111, %v111
  %v116 = vmul.f32 %v112, %v112
  %v117 = vadd.f32 %v113, %v114
  %v118 = vadd.f32 %v117, %v115
  %v119 = vadd.f32 %v118, %v116
  %v120 = vrot.slane %v119, 4
  %v121 = vadd.f32 %v119, %v120
  %v122 = vrot.slane %v121, 2
  %v123 = vadd.f32 %v121, %v122
  %v124 = vrot.slane %v123, 1
  %v125 = vadd.f32 %v123, %v124
  %v126 = vmul.f32 %v125, %v107
  %v127 = vadd.f32 %v126, 1e-05
  %v128 = vrsqrt.pop %v127
  %v129 = vmul.f32 %v109, %v128
  %v130 = vmul.f32 %v110, %v128
  %v131 = vmul.f32 %v111, %v128
  %v132 = vmul.f32 %v112, %v128
  %134 = vset.pattern.permute.xlu0 0
  %135 = vperm.xlu0 %134, %v90
  %v136 = vpop.permute.xlu0 %135
  %139 = vset.pattern.permute.xlu0 0
  %140 = vperm.xlu0 %139, %v91
  %v141 = vpop.permute.xlu0 %140
  %144 = vset.pattern.permute.xlu0 0
  %145 = vperm.xlu0 %144, %v92
  %v146 = vpop.permute.xlu0 %145
  %149 = vset.pattern.permute.xlu0 0
  %150 = vperm.xlu0 %149, %v93
  %v151 = vpop.permute.xlu0 %150
  %v153 = vmul.f32 %v129, %v136
  %v154 = vmul.f32 %v130, %v141
  %v155 = vmul.f32 %v131, %v146
  %v156 = vmul.f32 %v132, %v151
  %158 = vset.pattern.permute.xlu0 0
  %159 = vperm.xlu0 %158, %v94
  %v160 = vpop.permute.xlu0 %159
  %163 = vset.pattern.permute.xlu0 0
  %164 = vperm.xlu0 %163, %v95
  %v165 = vpop.permute.xlu0 %164
  %168 = vset.pattern.permute.xlu0 0
  %169 = vperm.xlu0 %168, %v96
  %v170 = vpop.permute.xlu0 %169
  %173 = vset.pattern.permute.xlu0 0
  %174 = vperm.xlu0 %173, %v97
  %v175 = vpop.permute.xlu0 %174
  %v177 = vadd.f32 %v153, %v160
  %v178 = vadd.f32 %v154, %v165
  %v179 = vadd.f32 %v155, %v170
  %v180 = vadd.f32 %v156, %v175
  %v181 = vpack.c.bf16 %v178, %v177
  %v182 = vpack.c.bf16 %v180, %v179
  %v183 = vld [vmem:[%s3] sm:$0xf]
  %v184 = vld [vmem:[%s3 + $0x4] sm:$0xf]
  %v185 = vld [vmem:[%s3 + $0x8] sm:$0xf]
  %v186 = vld [vmem:[%s3 + $0xc] sm:$0xf]
  %v187 = vld [vmem:[%s3 + $0x10] sm:$0xf]
  %v188 = vld [vmem:[%s3 + $0x14] sm:$0xf]
  %v189 = vld [vmem:[%s3 + $0x18] sm:$0xf]
  %v190 = vld [vmem:[%s3 + $0x1c] sm:$0xf]
  %v191 = vld [vmem:[%s3 + $0x20] sm:$0xf]
  %v192 = vld [vmem:[%s3 + $0x24] sm:$0xf]
  %v193 = vld [vmem:[%s3 + $0x28] sm:$0xf]
  %v194 = vld [vmem:[%s3 + $0x2c] sm:$0xf]
  %v207 = vunpack.c.l.b16 %v183
  %v208 = vunpack.c.l.b16 %v184
  %v209 = vunpack.c.l.b16 %v185
  %v210 = vunpack.c.l.b16 %v186
  %v211 = vunpack.c.l.b16 %v187
  %v212 = vunpack.c.l.b16 %v188
  %v213 = vunpack.c.l.b16 %v189
  %v214 = vunpack.c.l.b16 %v190
  %v215 = vunpack.c.l.b16 %v191
  %v216 = vunpack.c.l.b16 %v192
  %v217 = vunpack.c.l.b16 %v193
  %v218 = vunpack.c.l.b16 %v194
  %v219 = vpack.c.b16 %v208, %v207
  %v220 = vpack.c.b16 %v210, %v209
  %v221 = vpack.c.b16 %v212, %v211
  %v222 = vpack.c.b16 %v214, %v213
  %v223 = vpack.c.b16 %v216, %v215
  %v224 = vpack.c.b16 %v218, %v217
  %vm225 = vcmask 261120
  %v227 = vsel %vm225, %v219, 0
  %v230 = vsel %vm225, %v220, 0
  %v233 = vsel %vm225, %v221, 0
  %v236 = vsel %vm225, %v222, 0
  %v239 = vsel %vm225, %v223, 0
  %v242 = vsel %vm225, %v224, 0
  %244 = vmatprep.subr.bf16.mxu0 0
  %245 = vmatpush1.bf16.msra.mxu0 %v181
  %246 = vmatprep.subr.bf16.mxu0 0
  %247 = vmatpush1.bf16.msra.mxu0 %v182
  %248 = vmatprep.subr.bf16.mxu0 0
  %249 = vmatpush1.bf16.msra.mxu0 0
  %250 = vmatprep.subr.bf16.mxu0 0
  %251 = vmatpush1.bf16.msra.mxu0 0
  %252 = vmatprep.subr.bf16.mxu0 0
  %253 = vmatpush1.bf16.msra.mxu0 0
  %254 = vmatprep.subr.bf16.mxu0 0
  %255 = vmatpush1.bf16.msra.mxu0 0
  %256 = vmatprep.subr.bf16.mxu0 0
  %257 = vmatpush1.bf16.msra.mxu0 0
  %258 = vmatprep.subr.bf16.mxu0 0
  %259 = vmatpush1.bf16.msra.mxu0 0
  %260 = vmatprep.subr.bf16.mxu0 0
  %261 = vmatpush1.bf16.msra.mxu0 0
  %262 = vmatprep.subr.bf16.mxu0 0
  %263 = vmatpush1.bf16.msra.mxu0 0
  %264 = vmatprep.subr.bf16.mxu0 0
  %265 = vmatpush1.bf16.msra.mxu0 0
  %266 = vmatprep.subr.bf16.mxu0 0
  %267 = vmatpush1.bf16.msra.mxu0 0
  %268 = vmatprep.subr.bf16.mxu0 0
  %269 = vmatpush1.bf16.msra.mxu0 0
  %270 = vmatprep.subr.bf16.mxu0 0
  %271 = vmatpush1.bf16.msra.mxu0 0
  %272 = vmatprep.subr.bf16.mxu0 0
  %273 = vmatpush1.bf16.msra.mxu0 0
  %274 = vmatprep.subr.bf16.mxu0 0
  %275 = vmatpush1.bf16.msra.mxu0 0
  %276 = vmatprep.mubr.bf16.mxu0 0
  %277 = vmatmul.mubr.bf16.gmra.mrb[0].mxu0 %v227
  %v278 = vpop.f32.mrb[0].mxu0
  %v279 = vadd.f32 0.0, %v278
  %v280 = vpop.f32.mrb[0].mxu0
  %v281 = vpop.f32.mrb[0].mxu0
  %v282 = vadd.f32 0.0, %v281
  %v283 = vpop.f32.mrb[0].mxu0
  %284 = vmatprep.mubr.bf16.mxu0 0
  %285 = vmatmul.mubr.bf16.gmra.mrb[0].mxu0 %v230
  %v286 = vpop.f32.mrb[0].mxu0
  %v287 = vadd.f32 0.0, %v286
  %v288 = vpop.f32.mrb[0].mxu0
  %v289 = vpop.f32.mrb[0].mxu0
  %v290 = vadd.f32 0.0, %v289
  %v291 = vpop.f32.mrb[0].mxu0
  %292 = vmatprep.mubr.bf16.mxu0 0
  %293 = vmatmul.mubr.bf16.gmra.mrb[0].mxu0 %v233
  %v294 = vpop.f32.mrb[0].mxu0
  %v295 = vadd.f32 0.0, %v294
  %v296 = vpop.f32.mrb[0].mxu0
  %v297 = vpop.f32.mrb[0].mxu0
  %v298 = vadd.f32 0.0, %v297
  %v299 = vpop.f32.mrb[0].mxu0
  %300 = vmatprep.mubr.bf16.mxu0 0
  %301 = vmatmul.mubr.bf16.gmra.mrb[0].mxu0 %v236
  %v302 = vpop.f32.mrb[0].mxu0
  %v303 = vadd.f32 0.0, %v302
  %v304 = vpop.f32.mrb[0].mxu0
  %v305 = vpop.f32.mrb[0].mxu0
  %v306 = vadd.f32 0.0, %v305
  %v307 = vpop.f32.mrb[0].mxu0
  %308 = vmatprep.mubr.bf16.mxu0 0
  %309 = vmatmul.mubr.bf16.gmra.mrb[0].mxu0 %v239
  %v310 = vpop.f32.mrb[0].mxu0
  %v311 = vadd.f32 0.0, %v310
  %v312 = vpop.f32.mrb[0].mxu0
  %v313 = vpop.f32.mrb[0].mxu0
  %v314 = vadd.f32 0.0, %v313
  %v315 = vpop.f32.mrb[0].mxu0
  %316 = vmatprep.mubr.bf16.mxu0 0
  %317 = vmatmul.mubr.bf16.gmra.mrb[0].mxu0 %v242
  %v318 = vpop.f32.mrb[0].mxu0
  %v319 = vadd.f32 0.0, %v318
  %v320 = vpop.f32.mrb[0].mxu0
  %v321 = vpop.f32.mrb[0].mxu0
  %v322 = vadd.f32 0.0, %v321
  %v323 = vpop.f32.mrb[0].mxu0
  %324 = vdwg.mxu0
  %325 = vxpose.xlu0.b32.start [1/16] %v279, 128
  %326 = vxpose.xlu0.b32.cont [2/16] %v282, 128
  %327 = vxpose.xlu0.b32.cont [3/16] %v287, 128
  %328 = vxpose.xlu0.b32.cont [4/16] %v290, 128
  %329 = vxpose.xlu0.b32.cont [5/16] 0.0, 128
  %330 = vxpose.xlu0.b32.cont [6/16] 0.0, 128
  %331 = vxpose.xlu0.b32.cont [7/16] 0.0, 128
  %332 = vxpose.xlu0.b32.cont [8/16] 0.0, 128
  %333 = vxpose.xlu0.b32.cont [9/16] 0.0, 128
  %334 = vxpose.xlu0.b32.cont [10/16] 0.0, 128
  %335 = vxpose.xlu0.b32.cont [11/16] 0.0, 128
  %336 = vxpose.xlu0.b32.cont [12/16] 0.0, 128
  %337 = vxpose.xlu0.b32.cont [13/16] 0.0, 128
  %338 = vxpose.xlu0.b32.cont [14/16] 0.0, 128
  %339 = vxpose.xlu0.b32.cont [15/16] 0.0, 128
  %340 = vxpose.xlu0.b32.end [16/16] 0.0, 128
  %v341 = vpop.trf.xlu0
  %v342 = vpop.trf.xlu0
  %v343 = vpop.trf.xlu0
  %v344 = vpop.trf.xlu0
  %v345 = vpop.trf.xlu0
  %v346 = vpop.trf.xlu0
  %v347 = vpop.trf.xlu0
  %v348 = vpop.trf.xlu0
  %v349 = vpop.trf.xlu0
  %v350 = vpop.trf.xlu0
  %v351 = vpop.trf.xlu0
  %v352 = vpop.trf.xlu0
  %v353 = vpop.trf.xlu0
  %v354 = vpop.trf.xlu0
  %v355 = vpop.trf.xlu0
  %v356 = vpop.trf.xlu0
  %v357 = vpack.c.bf16 %v342, %v341
  %v358 = vpack.c.bf16 %v344, %v343
  %v359 = vpack.c.bf16 %v346, %v345
  %v360 = vpack.c.bf16 %v348, %v347
  %v361 = vpack.c.bf16 %v295, %v295
  %v362 = vpack.c.bf16 %v311, %v311
  %vm363 = vcmask 64512
  %v365 = vsel %vm363, %v357, 0
  %v368 = vsel %vm363, %v358, 0
  %v371 = vsel %vm363, %v359, 0
  %v374 = vsel %vm363, %v360, 0
  %vm376 = vcmask 1043456
  %v378 = vsel %vm376, %v361, 0
  %380 = vmatprep.subr.bf16.mxu0 0
  %381 = vmatpush1.bf16.msra.mxu0 %v378
  %382 = vmatprep.subr.bf16.mxu0 0
  %383 = vmatpush1.bf16.msra.mxu0 0
  %384 = vmatprep.subr.bf16.mxu0 0
  %385 = vmatpush1.bf16.msra.mxu0 0
  %386 = vmatprep.subr.bf16.mxu0 0
  %387 = vmatpush1.bf16.msra.mxu0 0
  %388 = vmatprep.subr.bf16.mxu0 0
  %389 = vmatpush1.bf16.msra.mxu0 0
  %390 = vmatprep.subr.bf16.mxu0 0
  %391 = vmatpush1.bf16.msra.mxu0 0
  %392 = vmatprep.subr.bf16.mxu0 0
  %393 = vmatpush1.bf16.msra.mxu0 0
  %394 = vmatprep.subr.bf16.mxu0 0
  %395 = vmatpush1.bf16.msra.mxu0 0
  %396 = vmatprep.subr.bf16.mxu0 0
  %397 = vmatpush1.bf16.msra.mxu0 0
  %398 = vmatprep.subr.bf16.mxu0 0
  %399 = vmatpush1.bf16.msra.mxu0 0
  %400 = vmatprep.subr.bf16.mxu0 0
  %401 = vmatpush1.bf16.msra.mxu0 0
  %402 = vmatprep.subr.bf16.mxu0 0
  %403 = vmatpush1.bf16.msra.mxu0 0
  %404 = vmatprep.subr.bf16.mxu0 0
  %405 = vmatpush1.bf16.msra.mxu0 0
  %406 = vmatprep.subr.bf16.mxu0 0
  %407 = vmatpush1.bf16.msra.mxu0 0
  %408 = vmatprep.subr.bf16.mxu0 0
  %409 = vmatpush1.bf16.msra.mxu0 0
  %410 = vmatprep.subr.bf16.mxu0 0
  %411 = vmatpush1.bf16.msra.mxu0 0
  %412 = vmatprep.mubr.bf16.mxu0 0
  %413 = vmatmul.mubr.bf16.gmra.mrb[0].mxu0 %v365
  %v414 = vpop.f32.mrb[0].mxu0
  %v415 = vadd.f32 0.0, %v414
  %v416 = vpop.f32.mrb[0].mxu0
  %v417 = vpop.f32.mrb[0].mxu0
  %v418 = vadd.f32 0.0, %v417
  %v419 = vpop.f32.mrb[0].mxu0
  %420 = vmatprep.mubr.bf16.mxu0 0
  %421 = vmatmul.mubr.bf16.gmra.mrb[0].mxu0 %v368
  %v422 = vpop.f32.mrb[0].mxu0
  %v423 = vadd.f32 0.0, %v422
  %v424 = vpop.f32.mrb[0].mxu0
  %v425 = vpop.f32.mrb[0].mxu0
  %v426 = vadd.f32 0.0, %v425
  %v427 = vpop.f32.mrb[0].mxu0
  %428 = vmatprep.mubr.bf16.mxu0 0
  %429 = vmatmul.mubr.bf16.gmra.mrb[0].mxu0 %v371
  %v430 = vpop.f32.mrb[0].mxu0
  %v431 = vadd.f32 0.0, %v430
  %v432 = vpop.f32.mrb[0].mxu0
  %v433 = vpop.f32.mrb[0].mxu0
  %v434 = vadd.f32 0.0, %v433
  %v435 = vpop.f32.mrb[0].mxu0
  %436 = vmatprep.mubr.bf16.mxu0 0
  %437 = vmatmul.mubr.bf16.gmra.mrb[0].mxu0 %v374
  %v438 = vpop.f32.mrb[0].mxu0
  %v439 = vadd.f32 0.0, %v438
  %v440 = vpop.f32.mrb[0].mxu0
  %v441 = vpop.f32.mrb[0].mxu0
  %v442 = vadd.f32 0.0, %v441
  %v443 = vpop.f32.mrb[0].mxu0
  %444 = vdwg.mxu0
  %vm445 = vcmask 523264
  %v446 = vsel %vm445, %v415, -inf
  %447 = vmax.xlane.f32.xlu0 %v446
  %v448 = vpop.xlane.xlu0 %447
  %v449 = vsel %vm445, %v418, -inf
  %450 = vmax.xlane.f32.xlu0 %v449
  %v451 = vpop.xlane.xlu0 %450
  %v452 = vsel %vm445, %v423, -inf
  %453 = vmax.xlane.f32.xlu0 %v452
  %v454 = vpop.xlane.xlu0 %453
  %v455 = vsel %vm445, %v426, -inf
  %456 = vmax.xlane.f32.xlu0 %v455
  %v457 = vpop.xlane.xlu0 %456
  %v458 = vsel %vm445, %v431, -inf
  %459 = vmax.xlane.f32.xlu0 %v458
  %v460 = vpop.xlane.xlu0 %459
  %v461 = vsel %vm445, %v434, -inf
  %462 = vmax.xlane.f32.xlu0 %v461
  %v463 = vpop.xlane.xlu0 %462
  %v464 = vsel %vm445, %v439, -inf
  %465 = vmax.xlane.f32.xlu0 %v464
  %v466 = vpop.xlane.xlu0 %465
  %v467 = vsel %vm445, %v442, -inf
  %468 = vmax.xlane.f32.xlu0 %v467
  %v469 = vpop.xlane.xlu0 %468
  %v470 = vsub.f32 %v415, %v448
  %v471 = vsub.f32 %v418, %v451
  %v472 = vsub.f32 %v423, %v454
  %v473 = vsub.f32 %v426, %v457
  %v474 = vsub.f32 %v431, %v460
  %v475 = vsub.f32 %v434, %v463
  %v476 = vsub.f32 %v439, %v466
  %v477 = vsub.f32 %v442, %v469
  %v478 = vmul.f32 %v470, 1.442695
  %v479 = vpow.pop %v478
  %v480 = vmul.f32 %v471, 1.442695
  %v481 = vpow.pop %v480
  %v482 = vmul.f32 %v472, 1.442695
  %v483 = vpow.pop %v482
  %v484 = vmul.f32 %v473, 1.442695
  %v485 = vpow.pop %v484
  %v486 = vmul.f32 %v474, 1.442695
  %v487 = vpow.pop %v486
  %v488 = vmul.f32 %v475, 1.442695
  %v489 = vpow.pop %v488
  %v490 = vmul.f32 %v476, 1.442695
  %v491 = vpow.pop %v490
  %v492 = vmul.f32 %v477, 1.442695
  %v493 = vpow.pop %v492
  %v494 = vsel %vm445, %v479, 0.0
  %495 = vadd.xlane.f32.xlu0 %v494
  %v496 = vpop.xlane.xlu0 %495
  %v497 = vsel %vm445, %v481, 0.0
  %498 = vadd.xlane.f32.xlu0 %v497
  %v499 = vpop.xlane.xlu0 %498
  %v500 = vsel %vm445, %v483, 0.0
  %501 = vadd.xlane.f32.xlu0 %v500
  %v502 = vpop.xlane.xlu0 %501
  %v503 = vsel %vm445, %v485, 0.0
  %504 = vadd.xlane.f32.xlu0 %v503
  %v505 = vpop.xlane.xlu0 %504
  %v506 = vsel %vm445, %v487, 0.0
  %507 = vadd.xlane.f32.xlu0 %v506
  %v508 = vpop.xlane.xlu0 %507
  %v509 = vsel %vm445, %v489, 0.0
  %510 = vadd.xlane.f32.xlu0 %v509
  %v511 = vpop.xlane.xlu0 %510
  %v512 = vsel %vm445, %v491, 0.0
  %513 = vadd.xlane.f32.xlu0 %v512
  %v514 = vpop.xlane.xlu0 %513
  %v515 = vsel %vm445, %v493, 0.0
  %516 = vadd.xlane.f32.xlu0 %v515
  %v517 = vpop.xlane.xlu0 %516
  %v518 = vrcp.pop %v496
  %v519 = vrcp.pop %v499
  %v520 = vrcp.pop %v502
  %v521 = vrcp.pop %v505
  %v522 = vrcp.pop %v508
  %v523 = vrcp.pop %v511
  %v524 = vrcp.pop %v514
  %v525 = vrcp.pop %v517
  %v526 = vmul.f32 %v479, %v518
  %v527 = vmul.f32 %v481, %v519
  %v528 = vmul.f32 %v483, %v520
  %v529 = vmul.f32 %v485, %v521
  %v530 = vmul.f32 %v487, %v522
  %v531 = vmul.f32 %v489, %v523
  %v532 = vmul.f32 %v491, %v524
  %v533 = vmul.f32 %v493, %v525
  %v534 = vpack.c.bf16 %v527, %v526
  %v535 = vpack.c.bf16 %v529, %v528
  %v536 = vpack.c.bf16 %v531, %v530
  %v537 = vpack.c.bf16 %v533, %v532
  %v539 = vsel %vm445, %v362, 0
  %v542 = vsel %vm445, %v534, 0
  %v545 = vsel %vm445, %v535, 0
  %v548 = vsel %vm445, %v536, 0
  %v551 = vsel %vm445, %v537, 0
  %553 = vmatprep.subr.bf16.mxu0 0
  %554 = vmatpush1.bf16.xpose.msra.mxu0 %v542
  %555 = vmatprep.subr.bf16.mxu0 0
  %556 = vmatpush1.bf16.xpose.msra.mxu0 %v545
  %557 = vmatprep.subr.bf16.mxu0 0
  %558 = vmatpush1.bf16.xpose.msra.mxu0 %v548
  %559 = vmatprep.subr.bf16.mxu0 0
  %560 = vmatpush1.bf16.xpose.msra.mxu0 %v551
  %561 = vmatprep.subr.bf16.mxu0 0
  %562 = vmatpush1.bf16.xpose.msra.mxu0 0
  %563 = vmatprep.subr.bf16.mxu0 0
  %564 = vmatpush1.bf16.xpose.msra.mxu0 0
  %565 = vmatprep.subr.bf16.mxu0 0
  %566 = vmatpush1.bf16.xpose.msra.mxu0 0
  %567 = vmatprep.subr.bf16.mxu0 0
  %568 = vmatpush1.bf16.xpose.msra.mxu0 0
  %569 = vmatprep.subr.bf16.mxu0 0
  %570 = vmatpush1.bf16.xpose.msra.mxu0 0
  %571 = vmatprep.subr.bf16.mxu0 0
  %572 = vmatpush1.bf16.xpose.msra.mxu0 0
  %573 = vmatprep.subr.bf16.mxu0 0
  %574 = vmatpush1.bf16.xpose.msra.mxu0 0
  %575 = vmatprep.subr.bf16.mxu0 0
  %576 = vmatpush1.bf16.xpose.msra.mxu0 0
  %577 = vmatprep.subr.bf16.mxu0 0
  %578 = vmatpush1.bf16.xpose.msra.mxu0 0
  %579 = vmatprep.subr.bf16.mxu0 0
  %580 = vmatpush1.bf16.xpose.msra.mxu0 0
  %581 = vmatprep.subr.bf16.mxu0 0
  %582 = vmatpush1.bf16.xpose.msra.mxu0 0
  %583 = vmatprep.subr.bf16.mxu0 0
  %584 = vmatpush1.bf16.xpose.msra.mxu0 0
  %585 = vmatprep.mubr.bf16.mxu0 0
  %586 = vmatmul.mubr.bf16.gmra.mrb[0].mxu0 %v539
  %v587 = vpop.f32.mrb[0].mxu0
  %v588 = vadd.f32 0.0, %v587
  %v589 = vpop.f32.mrb[0].mxu0
  %v590 = vpop.f32.mrb[0].mxu0
  %v591 = vpop.f32.mrb[0].mxu0
  %592 = vdwg.mxu0
  %v593 = vpack.c.bf16 %v350, %v349
  %v594 = vpack.c.bf16 %v352, %v351
  %v595 = vpack.c.bf16 %v354, %v353
  %v596 = vpack.c.bf16 %v356, %v355
  %598 = vrot.lane.b32.xlu0 %v361, 64
  %v599 = vpop.permute.xlu0 %598
  %v601 = vsel %vm363, %v593, 0
  %v604 = vsel %vm363, %v594, 0
  %v607 = vsel %vm363, %v595, 0
  %v610 = vsel %vm363, %v596, 0
  %v613 = vsel %vm376, %v599, 0
  %615 = vmatprep.subr.bf16.mxu0 0
  %616 = vmatpush1.bf16.msra.mxu0 %v613
  %617 = vmatprep.subr.bf16.mxu0 0
  %618 = vmatpush1.bf16.msra.mxu0 0
  %619 = vmatprep.subr.bf16.mxu0 0
  %620 = vmatpush1.bf16.msra.mxu0 0
  %621 = vmatprep.subr.bf16.mxu0 0
  %622 = vmatpush1.bf16.msra.mxu0 0
  %623 = vmatprep.subr.bf16.mxu0 0
  %624 = vmatpush1.bf16.msra.mxu0 0
  %625 = vmatprep.subr.bf16.mxu0 0
  %626 = vmatpush1.bf16.msra.mxu0 0
  %627 = vmatprep.subr.bf16.mxu0 0
  %628 = vmatpush1.bf16.msra.mxu0 0
  %629 = vmatprep.subr.bf16.mxu0 0
  %630 = vmatpush1.bf16.msra.mxu0 0
  %631 = vmatprep.subr.bf16.mxu0 0
  %632 = vmatpush1.bf16.msra.mxu0 0
  %633 = vmatprep.subr.bf16.mxu0 0
  %634 = vmatpush1.bf16.msra.mxu0 0
  %635 = vmatprep.subr.bf16.mxu0 0
  %636 = vmatpush1.bf16.msra.mxu0 0
  %637 = vmatprep.subr.bf16.mxu0 0
  %638 = vmatpush1.bf16.msra.mxu0 0
  %639 = vmatprep.subr.bf16.mxu0 0
  %640 = vmatpush1.bf16.msra.mxu0 0
  %641 = vmatprep.subr.bf16.mxu0 0
  %642 = vmatpush1.bf16.msra.mxu0 0
  %643 = vmatprep.subr.bf16.mxu0 0
  %644 = vmatpush1.bf16.msra.mxu0 0
  %645 = vmatprep.subr.bf16.mxu0 0
  %646 = vmatpush1.bf16.msra.mxu0 0
  %647 = vmatprep.mubr.bf16.mxu0 0
  %648 = vmatmul.mubr.bf16.gmra.mrb[0].mxu0 %v601
  %v649 = vpop.f32.mrb[0].mxu0
  %v650 = vadd.f32 0.0, %v649
  %v651 = vpop.f32.mrb[0].mxu0
  %v652 = vpop.f32.mrb[0].mxu0
  %v653 = vadd.f32 0.0, %v652
  %v654 = vpop.f32.mrb[0].mxu0
  %655 = vmatprep.mubr.bf16.mxu0 0
  %656 = vmatmul.mubr.bf16.gmra.mrb[0].mxu0 %v604
  %v657 = vpop.f32.mrb[0].mxu0
  %v658 = vadd.f32 0.0, %v657
  %v659 = vpop.f32.mrb[0].mxu0
  %v660 = vpop.f32.mrb[0].mxu0
  %v661 = vadd.f32 0.0, %v660
  %v662 = vpop.f32.mrb[0].mxu0
  %663 = vmatprep.mubr.bf16.mxu0 0
  %664 = vmatmul.mubr.bf16.gmra.mrb[0].mxu0 %v607
  %v665 = vpop.f32.mrb[0].mxu0
  %v666 = vadd.f32 0.0, %v665
  %v667 = vpop.f32.mrb[0].mxu0
  %v668 = vpop.f32.mrb[0].mxu0
  %v669 = vadd.f32 0.0, %v668
  %v670 = vpop.f32.mrb[0].mxu0
  %671 = vmatprep.mubr.bf16.mxu0 0
  %672 = vmatmul.mubr.bf16.gmra.mrb[0].mxu0 %v610
  %v673 = vpop.f32.mrb[0].mxu0
  %v674 = vadd.f32 0.0, %v673
  %v675 = vpop.f32.mrb[0].mxu0
  %v676 = vpop.f32.mrb[0].mxu0
  %v677 = vadd.f32 0.0, %v676
  %v678 = vpop.f32.mrb[0].mxu0
  %679 = vdwg.mxu0
  %v680 = vsel %vm445, %v650, -inf
  %681 = vmax.xlane.f32.xlu0 %v680
  %v682 = vpop.xlane.xlu0 %681
  %v683 = vsel %vm445, %v653, -inf
  %684 = vmax.xlane.f32.xlu0 %v683
  %v685 = vpop.xlane.xlu0 %684
  %v686 = vsel %vm445, %v658, -inf
  %687 = vmax.xlane.f32.xlu0 %v686
  %v688 = vpop.xlane.xlu0 %687
  %v689 = vsel %vm445, %v661, -inf
  %690 = vmax.xlane.f32.xlu0 %v689
  %v691 = vpop.xlane.xlu0 %690
  %v692 = vsel %vm445, %v666, -inf
  %693 = vmax.xlane.f32.xlu0 %v692
  %v694 = vpop.xlane.xlu0 %693
  %v695 = vsel %vm445, %v669, -inf
  %696 = vmax.xlane.f32.xlu0 %v695
  %v697 = vpop.xlane.xlu0 %696
  %v698 = vsel %vm445, %v674, -inf
  %699 = vmax.xlane.f32.xlu0 %v698
  %v700 = vpop.xlane.xlu0 %699
  %v701 = vsel %vm445, %v677, -inf
  %702 = vmax.xlane.f32.xlu0 %v701
  %v703 = vpop.xlane.xlu0 %702
  %v704 = vsub.f32 %v650, %v682
  %v705 = vsub.f32 %v653, %v685
  %v706 = vsub.f32 %v658, %v688
  %v707 = vsub.f32 %v661, %v691
  %v708 = vsub.f32 %v666, %v694
  %v709 = vsub.f32 %v669, %v697
  %v710 = vsub.f32 %v674, %v700
  %v711 = vsub.f32 %v677, %v703
  %v712 = vmul.f32 %v704, 1.442695
  %v713 = vpow.pop %v712
  %v714 = vmul.f32 %v705, 1.442695
  %v715 = vpow.pop %v714
  %v716 = vmul.f32 %v706, 1.442695
  %v717 = vpow.pop %v716
  %v718 = vmul.f32 %v707, 1.442695
  %v719 = vpow.pop %v718
  %v720 = vmul.f32 %v708, 1.442695
  %v721 = vpow.pop %v720
  %v722 = vmul.f32 %v709, 1.442695
  %v723 = vpow.pop %v722
  %v724 = vmul.f32 %v710, 1.442695
  %v725 = vpow.pop %v724
  %v726 = vmul.f32 %v711, 1.442695
  %v727 = vpow.pop %v726
  %v728 = vsel %vm445, %v713, 0.0
  %729 = vadd.xlane.f32.xlu0 %v728
  %v730 = vpop.xlane.xlu0 %729
  %v731 = vsel %vm445, %v715, 0.0
  %732 = vadd.xlane.f32.xlu0 %v731
  %v733 = vpop.xlane.xlu0 %732
  %v734 = vsel %vm445, %v717, 0.0
  %735 = vadd.xlane.f32.xlu0 %v734
  %v736 = vpop.xlane.xlu0 %735
  %v737 = vsel %vm445, %v719, 0.0
  %738 = vadd.xlane.f32.xlu0 %v737
  %v739 = vpop.xlane.xlu0 %738
  %v740 = vsel %vm445, %v721, 0.0
  %741 = vadd.xlane.f32.xlu0 %v740
  %v742 = vpop.xlane.xlu0 %741
  %v743 = vsel %vm445, %v723, 0.0
  %744 = vadd.xlane.f32.xlu0 %v743
  %v745 = vpop.xlane.xlu0 %744
  %v746 = vsel %vm445, %v725, 0.0
  %747 = vadd.xlane.f32.xlu0 %v746
  %v748 = vpop.xlane.xlu0 %747
  %v749 = vsel %vm445, %v727, 0.0
  %750 = vadd.xlane.f32.xlu0 %v749
  %v751 = vpop.xlane.xlu0 %750
  %v752 = vrcp.pop %v730
  %v753 = vrcp.pop %v733
  %v754 = vrcp.pop %v736
  %v755 = vrcp.pop %v739
  %v756 = vrcp.pop %v742
  %v757 = vrcp.pop %v745
  %v758 = vrcp.pop %v748
  %v759 = vrcp.pop %v751
  %v760 = vmul.f32 %v713, %v752
  %v761 = vmul.f32 %v715, %v753
  %v762 = vmul.f32 %v717, %v754
  %v763 = vmul.f32 %v719, %v755
  %v764 = vmul.f32 %v721, %v756
  %v765 = vmul.f32 %v723, %v757
  %v766 = vmul.f32 %v725, %v758
  %v767 = vmul.f32 %v727, %v759
  %v768 = vpack.c.bf16 %v761, %v760
  %v769 = vpack.c.bf16 %v763, %v762
  %v770 = vpack.c.bf16 %v765, %v764
  %v771 = vpack.c.bf16 %v767, %v766
  %773 = vrot.lane.b32.xlu0 %v362, 64
  %v774 = vpop.permute.xlu0 %773
  %v776 = vsel %vm445, %v774, 0
  %v779 = vsel %vm445, %v768, 0
  %v782 = vsel %vm445, %v769, 0
  %v785 = vsel %vm445, %v770, 0
  %v788 = vsel %vm445, %v771, 0
  %790 = vmatprep.subr.bf16.mxu0 0
  %791 = vmatpush1.bf16.xpose.msra.mxu0 %v779
  %792 = vmatprep.subr.bf16.mxu0 0
  %793 = vmatpush1.bf16.xpose.msra.mxu0 %v782
  %794 = vmatprep.subr.bf16.mxu0 0
  %795 = vmatpush1.bf16.xpose.msra.mxu0 %v785
  %796 = vmatprep.subr.bf16.mxu0 0
  %797 = vmatpush1.bf16.xpose.msra.mxu0 %v788
  %798 = vmatprep.subr.bf16.mxu0 0
  %799 = vmatpush1.bf16.xpose.msra.mxu0 0
  %800 = vmatprep.subr.bf16.mxu0 0
  %801 = vmatpush1.bf16.xpose.msra.mxu0 0
  %802 = vmatprep.subr.bf16.mxu0 0
  %803 = vmatpush1.bf16.xpose.msra.mxu0 0
  %804 = vmatprep.subr.bf16.mxu0 0
  %805 = vmatpush1.bf16.xpose.msra.mxu0 0
  %806 = vmatprep.subr.bf16.mxu0 0
  %807 = vmatpush1.bf16.xpose.msra.mxu0 0
  %808 = vmatprep.subr.bf16.mxu0 0
  %809 = vmatpush1.bf16.xpose.msra.mxu0 0
  %810 = vmatprep.subr.bf16.mxu0 0
  %811 = vmatpush1.bf16.xpose.msra.mxu0 0
  %812 = vmatprep.subr.bf16.mxu0 0
  %813 = vmatpush1.bf16.xpose.msra.mxu0 0
  %814 = vmatprep.subr.bf16.mxu0 0
  %815 = vmatpush1.bf16.xpose.msra.mxu0 0
  %816 = vmatprep.subr.bf16.mxu0 0
  %817 = vmatpush1.bf16.xpose.msra.mxu0 0
  %818 = vmatprep.subr.bf16.mxu0 0
  %819 = vmatpush1.bf16.xpose.msra.mxu0 0
  %820 = vmatprep.subr.bf16.mxu0 0
  %821 = vmatpush1.bf16.xpose.msra.mxu0 0
  %822 = vmatprep.mubr.bf16.mxu0 0
  %823 = vmatmul.mubr.bf16.gmra.mrb[0].mxu0 %v776
  %v824 = vpop.f32.mrb[0].mxu0
  %v825 = vadd.f32 0.0, %v824
  %v826 = vpop.f32.mrb[0].mxu0
  %v827 = vpop.f32.mrb[0].mxu0
  %v828 = vpop.f32.mrb[0].mxu0
  %829 = vdwg.mxu0
  %831 = vrot.lane.b32.xlu0 %v825, 64
  %v832 = vpop.permute.xlu0 %831
  %v834 = vsel %vm445, %v588, %v832
  %v835 = vpack.c.bf16 %v298, %v298
  %v836 = vpack.c.bf16 %v314, %v314
  %841 = vrot.lane.b32.xlu0 %v357, 120
  %v842 = vpop.permute.xlu0 %841
  %843 = vrot.lane.b32.xlu0 %v358, 120
  %v844 = vpop.permute.xlu0 %843
  %845 = vrot.lane.b32.xlu0 %v359, 120
  %v846 = vpop.permute.xlu0 %845
  %847 = vrot.lane.b32.xlu0 %v360, 120
  %v848 = vpop.permute.xlu0 %847
  %v850 = vsel %vm363, %v842, 0
  %v853 = vsel %vm363, %v844, 0
  %v856 = vsel %vm363, %v846, 0
  %v859 = vsel %vm363, %v848, 0
  %v862 = vsel %vm376, %v835, 0
  %864 = vmatprep.subr.bf16.mxu0 0
  %865 = vmatpush1.bf16.msra.mxu0 %v862
  %866 = vmatprep.subr.bf16.mxu0 0
  %867 = vmatpush1.bf16.msra.mxu0 0
  %868 = vmatprep.subr.bf16.mxu0 0
  %869 = vmatpush1.bf16.msra.mxu0 0
  %870 = vmatprep.subr.bf16.mxu0 0
  %871 = vmatpush1.bf16.msra.mxu0 0
  %872 = vmatprep.subr.bf16.mxu0 0
  %873 = vmatpush1.bf16.msra.mxu0 0
  %874 = vmatprep.subr.bf16.mxu0 0
  %875 = vmatpush1.bf16.msra.mxu0 0
  %876 = vmatprep.subr.bf16.mxu0 0
  %877 = vmatpush1.bf16.msra.mxu0 0
  %878 = vmatprep.subr.bf16.mxu0 0
  %879 = vmatpush1.bf16.msra.mxu0 0
  %880 = vmatprep.subr.bf16.mxu0 0
  %881 = vmatpush1.bf16.msra.mxu0 0
  %882 = vmatprep.subr.bf16.mxu0 0
  %883 = vmatpush1.bf16.msra.mxu0 0
  %884 = vmatprep.subr.bf16.mxu0 0
  %885 = vmatpush1.bf16.msra.mxu0 0
  %886 = vmatprep.subr.bf16.mxu0 0
  %887 = vmatpush1.bf16.msra.mxu0 0
  %888 = vmatprep.subr.bf16.mxu0 0
  %889 = vmatpush1.bf16.msra.mxu0 0
  %890 = vmatprep.subr.bf16.mxu0 0
  %891 = vmatpush1.bf16.msra.mxu0 0
  %892 = vmatprep.subr.bf16.mxu0 0
  %893 = vmatpush1.bf16.msra.mxu0 0
  %894 = vmatprep.subr.bf16.mxu0 0
  %895 = vmatpush1.bf16.msra.mxu0 0
  %896 = vmatprep.mubr.bf16.mxu0 0
  %897 = vmatmul.mubr.bf16.gmra.mrb[0].mxu0 %v850
  %v898 = vpop.f32.mrb[0].mxu0
  %v899 = vadd.f32 0.0, %v898
  %v900 = vpop.f32.mrb[0].mxu0
  %v901 = vpop.f32.mrb[0].mxu0
  %v902 = vadd.f32 0.0, %v901
  %v903 = vpop.f32.mrb[0].mxu0
  %904 = vmatprep.mubr.bf16.mxu0 0
  %905 = vmatmul.mubr.bf16.gmra.mrb[0].mxu0 %v853
  %v906 = vpop.f32.mrb[0].mxu0
  %v907 = vadd.f32 0.0, %v906
  %v908 = vpop.f32.mrb[0].mxu0
  %v909 = vpop.f32.mrb[0].mxu0
  %v910 = vadd.f32 0.0, %v909
  %v911 = vpop.f32.mrb[0].mxu0
  %912 = vmatprep.mubr.bf16.mxu0 0
  %913 = vmatmul.mubr.bf16.gmra.mrb[0].mxu0 %v856
  %v914 = vpop.f32.mrb[0].mxu0
  %v915 = vadd.f32 0.0, %v914
  %v916 = vpop.f32.mrb[0].mxu0
  %v917 = vpop.f32.mrb[0].mxu0
  %v918 = vadd.f32 0.0, %v917
  %v919 = vpop.f32.mrb[0].mxu0
  %920 = vmatprep.mubr.bf16.mxu0 0
  %921 = vmatmul.mubr.bf16.gmra.mrb[0].mxu0 %v859
  %v922 = vpop.f32.mrb[0].mxu0
  %v923 = vadd.f32 0.0, %v922
  %v924 = vpop.f32.mrb[0].mxu0
  %v925 = vpop.f32.mrb[0].mxu0
  %v926 = vadd.f32 0.0, %v925
  %v927 = vpop.f32.mrb[0].mxu0
  %928 = vdwg.mxu0
  %v929 = vsel %vm445, %v899, -inf
  %930 = vmax.xlane.f32.xlu0 %v929
  %v931 = vpop.xlane.xlu0 %930
  %v932 = vsel %vm445, %v902, -inf
  %933 = vmax.xlane.f32.xlu0 %v932
  %v934 = vpop.xlane.xlu0 %933
  %v935 = vsel %vm445, %v907, -inf
  %936 = vmax.xlane.f32.xlu0 %v935
  %v937 = vpop.xlane.xlu0 %936
  %v938 = vsel %vm445, %v910, -inf
  %939 = vmax.xlane.f32.xlu0 %v938
  %v940 = vpop.xlane.xlu0 %939
  %v941 = vsel %vm445, %v915, -inf
  %942 = vmax.xlane.f32.xlu0 %v941
  %v943 = vpop.xlane.xlu0 %942
  %v944 = vsel %vm445, %v918, -inf
  %945 = vmax.xlane.f32.xlu0 %v944
  %v946 = vpop.xlane.xlu0 %945
  %v947 = vsel %vm445, %v923, -inf
  %948 = vmax.xlane.f32.xlu0 %v947
  %v949 = vpop.xlane.xlu0 %948
  %v950 = vsel %vm445, %v926, -inf
  %951 = vmax.xlane.f32.xlu0 %v950
  %v952 = vpop.xlane.xlu0 %951
  %v953 = vsub.f32 %v899, %v931
  %v954 = vsub.f32 %v902, %v934
  %v955 = vsub.f32 %v907, %v937
  %v956 = vsub.f32 %v910, %v940
  %v957 = vsub.f32 %v915, %v943
  %v958 = vsub.f32 %v918, %v946
  %v959 = vsub.f32 %v923, %v949
  %v960 = vsub.f32 %v926, %v952
  %v961 = vmul.f32 %v953, 1.442695
  %v962 = vpow.pop %v961
  %v963 = vmul.f32 %v954, 1.442695
  %v964 = vpow.pop %v963
  %v965 = vmul.f32 %v955, 1.442695
  %v966 = vpow.pop %v965
  %v967 = vmul.f32 %v956, 1.442695
  %v968 = vpow.pop %v967
  %v969 = vmul.f32 %v957, 1.442695
  %v970 = vpow.pop %v969
  %v971 = vmul.f32 %v958, 1.442695
  %v972 = vpow.pop %v971
  %v973 = vmul.f32 %v959, 1.442695
  %v974 = vpow.pop %v973
  %v975 = vmul.f32 %v960, 1.442695
  %v976 = vpow.pop %v975
  %v977 = vsel %vm445, %v962, 0.0
  %978 = vadd.xlane.f32.xlu0 %v977
  %v979 = vpop.xlane.xlu0 %978
  %v980 = vsel %vm445, %v964, 0.0
  %981 = vadd.xlane.f32.xlu0 %v980
  %v982 = vpop.xlane.xlu0 %981
  %v983 = vsel %vm445, %v966, 0.0
  %984 = vadd.xlane.f32.xlu0 %v983
  %v985 = vpop.xlane.xlu0 %984
  %v986 = vsel %vm445, %v968, 0.0
  %987 = vadd.xlane.f32.xlu0 %v986
  %v988 = vpop.xlane.xlu0 %987
  %v989 = vsel %vm445, %v970, 0.0
  %990 = vadd.xlane.f32.xlu0 %v989
  %v991 = vpop.xlane.xlu0 %990
  %v992 = vsel %vm445, %v972, 0.0
  %993 = vadd.xlane.f32.xlu0 %v992
  %v994 = vpop.xlane.xlu0 %993
  %v995 = vsel %vm445, %v974, 0.0
  %996 = vadd.xlane.f32.xlu0 %v995
  %v997 = vpop.xlane.xlu0 %996
  %v998 = vsel %vm445, %v976, 0.0
  %999 = vadd.xlane.f32.xlu0 %v998
  %v1000 = vpop.xlane.xlu0 %999
  %v1001 = vrcp.pop %v979
  %v1002 = vrcp.pop %v982
  %v1003 = vrcp.pop %v985
  %v1004 = vrcp.pop %v988
  %v1005 = vrcp.pop %v991
  %v1006 = vrcp.pop %v994
  %v1007 = vrcp.pop %v997
  %v1008 = vrcp.pop %v1000
  %v1009 = vmul.f32 %v962, %v1001
  %v1010 = vmul.f32 %v964, %v1002
  %v1011 = vmul.f32 %v966, %v1003
  %v1012 = vmul.f32 %v968, %v1004
  %v1013 = vmul.f32 %v970, %v1005
  %v1014 = vmul.f32 %v972, %v1006
  %v1015 = vmul.f32 %v974, %v1007
  %v1016 = vmul.f32 %v976, %v1008
  %v1017 = vpack.c.bf16 %v1010, %v1009
  %v1018 = vpack.c.bf16 %v1012, %v1011
  %v1019 = vpack.c.bf16 %v1014, %v1013
  %v1020 = vpack.c.bf16 %v1016, %v1015
  %v1022 = vsel %vm445, %v836, 0
  %v1025 = vsel %vm445, %v1017, 0
  %v1028 = vsel %vm445, %v1018, 0
  %v1031 = vsel %vm445, %v1019, 0
  %v1034 = vsel %vm445, %v1020, 0
  %1036 = vmatprep.subr.bf16.mxu0 0
  %1037 = vmatpush1.bf16.xpose.msra.mxu0 %v1025
  %1038 = vmatprep.subr.bf16.mxu0 0
  %1039 = vmatpush1.bf16.xpose.msra.mxu0 %v1028
  %1040 = vmatprep.subr.bf16.mxu0 0
  %1041 = vmatpush1.bf16.xpose.msra.mxu0 %v1031
  %1042 = vmatprep.subr.bf16.mxu0 0
  %1043 = vmatpush1.bf16.xpose.msra.mxu0 %v1034
  %1044 = vmatprep.subr.bf16.mxu0 0
  %1045 = vmatpush1.bf16.xpose.msra.mxu0 0
  %1046 = vmatprep.subr.bf16.mxu0 0
  %1047 = vmatpush1.bf16.xpose.msra.mxu0 0
  %1048 = vmatprep.subr.bf16.mxu0 0
  %1049 = vmatpush1.bf16.xpose.msra.mxu0 0
  %1050 = vmatprep.subr.bf16.mxu0 0
  %1051 = vmatpush1.bf16.xpose.msra.mxu0 0
  %1052 = vmatprep.subr.bf16.mxu0 0
  %1053 = vmatpush1.bf16.xpose.msra.mxu0 0
  %1054 = vmatprep.subr.bf16.mxu0 0
  %1055 = vmatpush1.bf16.xpose.msra.mxu0 0
  %1056 = vmatprep.subr.bf16.mxu0 0
  %1057 = vmatpush1.bf16.xpose.msra.mxu0 0
  %1058 = vmatprep.subr.bf16.mxu0 0
  %1059 = vmatpush1.bf16.xpose.msra.mxu0 0
  %1060 = vmatprep.subr.bf16.mxu0 0
  %1061 = vmatpush1.bf16.xpose.msra.mxu0 0
  %1062 = vmatprep.subr.bf16.mxu0 0
  %1063 = vmatpush1.bf16.xpose.msra.mxu0 0
  %1064 = vmatprep.subr.bf16.mxu0 0
  %1065 = vmatpush1.bf16.xpose.msra.mxu0 0
  %1066 = vmatprep.subr.bf16.mxu0 0
  %1067 = vmatpush1.bf16.xpose.msra.mxu0 0
  %1068 = vmatprep.mubr.bf16.mxu0 0
  %1069 = vmatmul.mubr.bf16.gmra.mrb[0].mxu0 %v1022
  %v1070 = vpop.f32.mrb[0].mxu0
  %v1071 = vadd.f32 0.0, %v1070
  %v1072 = vpop.f32.mrb[0].mxu0
  %v1073 = vpop.f32.mrb[0].mxu0
  %v1074 = vpop.f32.mrb[0].mxu0
  %1075 = vdwg.mxu0
  %1080 = vrot.lane.b32.xlu0 %v593, 120
  %v1081 = vpop.permute.xlu0 %1080
  %1082 = vrot.lane.b32.xlu0 %v594, 120
  %v1083 = vpop.permute.xlu0 %1082
  %1084 = vrot.lane.b32.xlu0 %v595, 120
  %v1085 = vpop.permute.xlu0 %1084
  %1086 = vrot.lane.b32.xlu0 %v596, 120
  %v1087 = vpop.permute.xlu0 %1086
  %1089 = vrot.lane.b32.xlu0 %v835, 64
  %v1090 = vpop.permute.xlu0 %1089
  %v1092 = vsel %vm363, %v1081, 0
  %v1095 = vsel %vm363, %v1083, 0
  %v1098 = vsel %vm363, %v1085, 0
  %v1101 = vsel %vm363, %v1087, 0
  %v1104 = vsel %vm376, %v1090, 0
  %1106 = vmatprep.subr.bf16.mxu0 0
  %1107 = vmatpush1.bf16.msra.mxu0 %v1104
  %1108 = vmatprep.subr.bf16.mxu0 0
  %1109 = vmatpush1.bf16.msra.mxu0 0
  %1110 = vmatprep.subr.bf16.mxu0 0
  %1111 = vmatpush1.bf16.msra.mxu0 0
  %1112 = vmatprep.subr.bf16.mxu0 0
  %1113 = vmatpush1.bf16.msra.mxu0 0
  %1114 = vmatprep.subr.bf16.mxu0 0
  %1115 = vmatpush1.bf16.msra.mxu0 0
  %1116 = vmatprep.subr.bf16.mxu0 0
  %1117 = vmatpush1.bf16.msra.mxu0 0
  %1118 = vmatprep.subr.bf16.mxu0 0
  %1119 = vmatpush1.bf16.msra.mxu0 0
  %1120 = vmatprep.subr.bf16.mxu0 0
  %1121 = vmatpush1.bf16.msra.mxu0 0
  %1122 = vmatprep.subr.bf16.mxu0 0
  %1123 = vmatpush1.bf16.msra.mxu0 0
  %1124 = vmatprep.subr.bf16.mxu0 0
  %1125 = vmatpush1.bf16.msra.mxu0 0
  %1126 = vmatprep.subr.bf16.mxu0 0
  %1127 = vmatpush1.bf16.msra.mxu0 0
  %1128 = vmatprep.subr.bf16.mxu0 0
  %1129 = vmatpush1.bf16.msra.mxu0 0
  %1130 = vmatprep.subr.bf16.mxu0 0
  %1131 = vmatpush1.bf16.msra.mxu0 0
  %1132 = vmatprep.subr.bf16.mxu0 0
  %1133 = vmatpush1.bf16.msra.mxu0 0
  %1134 = vmatprep.subr.bf16.mxu0 0
  %1135 = vmatpush1.bf16.msra.mxu0 0
  %1136 = vmatprep.subr.bf16.mxu0 0
  %1137 = vmatpush1.bf16.msra.mxu0 0
  %1138 = vmatprep.mubr.bf16.mxu0 0
  %1139 = vmatmul.mubr.bf16.gmra.mrb[0].mxu0 %v1092
  %v1140 = vpop.f32.mrb[0].mxu0
  %v1141 = vadd.f32 0.0, %v1140
  %v1142 = vpop.f32.mrb[0].mxu0
  %v1143 = vpop.f32.mrb[0].mxu0
  %v1144 = vadd.f32 0.0, %v1143
  %v1145 = vpop.f32.mrb[0].mxu0
  %1146 = vmatprep.mubr.bf16.mxu0 0
  %1147 = vmatmul.mubr.bf16.gmra.mrb[0].mxu0 %v1095
  %v1148 = vpop.f32.mrb[0].mxu0
  %v1149 = vadd.f32 0.0, %v1148
  %v1150 = vpop.f32.mrb[0].mxu0
  %v1151 = vpop.f32.mrb[0].mxu0
  %v1152 = vadd.f32 0.0, %v1151
  %v1153 = vpop.f32.mrb[0].mxu0
  %1154 = vmatprep.mubr.bf16.mxu0 0
  %1155 = vmatmul.mubr.bf16.gmra.mrb[0].mxu0 %v1098
  %v1156 = vpop.f32.mrb[0].mxu0
  %v1157 = vadd.f32 0.0, %v1156
  %v1158 = vpop.f32.mrb[0].mxu0
  %v1159 = vpop.f32.mrb[0].mxu0
  %v1160 = vadd.f32 0.0, %v1159
  %v1161 = vpop.f32.mrb[0].mxu0
  %1162 = vmatprep.mubr.bf16.mxu0 0
  %1163 = vmatmul.mubr.bf16.gmra.mrb[0].mxu0 %v1101
  %v1164 = vpop.f32.mrb[0].mxu0
  %v1165 = vadd.f32 0.0, %v1164
  %v1166 = vpop.f32.mrb[0].mxu0
  %v1167 = vpop.f32.mrb[0].mxu0
  %v1168 = vadd.f32 0.0, %v1167
  %v1169 = vpop.f32.mrb[0].mxu0
  %1170 = vdwg.mxu0
  %v1171 = vsel %vm445, %v1141, -inf
  %1172 = vmax.xlane.f32.xlu0 %v1171
  %v1173 = vpop.xlane.xlu0 %1172
  %v1174 = vsel %vm445, %v1144, -inf
  %1175 = vmax.xlane.f32.xlu0 %v1174
  %v1176 = vpop.xlane.xlu0 %1175
  %v1177 = vsel %vm445, %v1149, -inf
  %1178 = vmax.xlane.f32.xlu0 %v1177
  %v1179 = vpop.xlane.xlu0 %1178
  %v1180 = vsel %vm445, %v1152, -inf
  %1181 = vmax.xlane.f32.xlu0 %v1180
  %v1182 = vpop.xlane.xlu0 %1181
  %v1183 = vsel %vm445, %v1157, -inf
  %1184 = vmax.xlane.f32.xlu0 %v1183
  %v1185 = vpop.xlane.xlu0 %1184
  %v1186 = vsel %vm445, %v1160, -inf
  %1187 = vmax.xlane.f32.xlu0 %v1186
  %v1188 = vpop.xlane.xlu0 %1187
  %v1189 = vsel %vm445, %v1165, -inf
  %1190 = vmax.xlane.f32.xlu0 %v1189
  %v1191 = vpop.xlane.xlu0 %1190
  %v1192 = vsel %vm445, %v1168, -inf
  %1193 = vmax.xlane.f32.xlu0 %v1192
  %v1194 = vpop.xlane.xlu0 %1193
  %v1195 = vsub.f32 %v1141, %v1173
  %v1196 = vsub.f32 %v1144, %v1176
  %v1197 = vsub.f32 %v1149, %v1179
  %v1198 = vsub.f32 %v1152, %v1182
  %v1199 = vsub.f32 %v1157, %v1185
  %v1200 = vsub.f32 %v1160, %v1188
  %v1201 = vsub.f32 %v1165, %v1191
  %v1202 = vsub.f32 %v1168, %v1194
  %v1203 = vmul.f32 %v1195, 1.442695
  %v1204 = vpow.pop %v1203
  %v1205 = vmul.f32 %v1196, 1.442695
  %v1206 = vpow.pop %v1205
  %v1207 = vmul.f32 %v1197, 1.442695
  %v1208 = vpow.pop %v1207
  %v1209 = vmul.f32 %v1198, 1.442695
  %v1210 = vpow.pop %v1209
  %v1211 = vmul.f32 %v1199, 1.442695
  %v1212 = vpow.pop %v1211
  %v1213 = vmul.f32 %v1200, 1.442695
  %v1214 = vpow.pop %v1213
  %v1215 = vmul.f32 %v1201, 1.442695
  %v1216 = vpow.pop %v1215
  %v1217 = vmul.f32 %v1202, 1.442695
  %v1218 = vpow.pop %v1217
  %v1219 = vsel %vm445, %v1204, 0.0
  %1220 = vadd.xlane.f32.xlu0 %v1219
  %v1221 = vpop.xlane.xlu0 %1220
  %v1222 = vsel %vm445, %v1206, 0.0
  %1223 = vadd.xlane.f32.xlu0 %v1222
  %v1224 = vpop.xlane.xlu0 %1223
  %v1225 = vsel %vm445, %v1208, 0.0
  %1226 = vadd.xlane.f32.xlu0 %v1225
  %v1227 = vpop.xlane.xlu0 %1226
  %v1228 = vsel %vm445, %v1210, 0.0
  %1229 = vadd.xlane.f32.xlu0 %v1228
  %v1230 = vpop.xlane.xlu0 %1229
  %v1231 = vsel %vm445, %v1212, 0.0
  %1232 = vadd.xlane.f32.xlu0 %v1231
  %v1233 = vpop.xlane.xlu0 %1232
  %v1234 = vsel %vm445, %v1214, 0.0
  %1235 = vadd.xlane.f32.xlu0 %v1234
  %v1236 = vpop.xlane.xlu0 %1235
  %v1237 = vsel %vm445, %v1216, 0.0
  %1238 = vadd.xlane.f32.xlu0 %v1237
  %v1239 = vpop.xlane.xlu0 %1238
  %v1240 = vsel %vm445, %v1218, 0.0
  %1241 = vadd.xlane.f32.xlu0 %v1240
  %v1242 = vpop.xlane.xlu0 %1241
  %v1243 = vrcp.pop %v1221
  %v1244 = vrcp.pop %v1224
  %v1245 = vrcp.pop %v1227
  %v1246 = vrcp.pop %v1230
  %v1247 = vrcp.pop %v1233
  %v1248 = vrcp.pop %v1236
  %v1249 = vrcp.pop %v1239
  %v1250 = vrcp.pop %v1242
  %v1251 = vmul.f32 %v1204, %v1243
  %v1252 = vmul.f32 %v1206, %v1244
  %v1253 = vmul.f32 %v1208, %v1245
  %v1254 = vmul.f32 %v1210, %v1246
  %v1255 = vmul.f32 %v1212, %v1247
  %v1256 = vmul.f32 %v1214, %v1248
  %v1257 = vmul.f32 %v1216, %v1249
  %v1258 = vmul.f32 %v1218, %v1250
  %v1259 = vpack.c.bf16 %v1252, %v1251
  %v1260 = vpack.c.bf16 %v1254, %v1253
  %v1261 = vpack.c.bf16 %v1256, %v1255
  %v1262 = vpack.c.bf16 %v1258, %v1257
  %1264 = vrot.lane.b32.xlu0 %v836, 64
  %v1265 = vpop.permute.xlu0 %1264
  %v1267 = vsel %vm445, %v1265, 0
  %v1270 = vsel %vm445, %v1259, 0
  %v1273 = vsel %vm445, %v1260, 0
  %v1276 = vsel %vm445, %v1261, 0
  %v1279 = vsel %vm445, %v1262, 0
  %1281 = vmatprep.subr.bf16.mxu0 0
  %1282 = vmatpush1.bf16.xpose.msra.mxu0 %v1270
  %1283 = vmatprep.subr.bf16.mxu0 0
  %1284 = vmatpush1.bf16.xpose.msra.mxu0 %v1273
  %1285 = vmatprep.subr.bf16.mxu0 0
  %1286 = vmatpush1.bf16.xpose.msra.mxu0 %v1276
  %1287 = vmatprep.subr.bf16.mxu0 0
  %1288 = vmatpush1.bf16.xpose.msra.mxu0 %v1279
  %1289 = vmatprep.subr.bf16.mxu0 0
  %1290 = vmatpush1.bf16.xpose.msra.mxu0 0
  %1291 = vmatprep.subr.bf16.mxu0 0
  %1292 = vmatpush1.bf16.xpose.msra.mxu0 0
  %1293 = vmatprep.subr.bf16.mxu0 0
  %1294 = vmatpush1.bf16.xpose.msra.mxu0 0
  %1295 = vmatprep.subr.bf16.mxu0 0
  %1296 = vmatpush1.bf16.xpose.msra.mxu0 0
  %1297 = vmatprep.subr.bf16.mxu0 0
  %1298 = vmatpush1.bf16.xpose.msra.mxu0 0
  %1299 = vmatprep.subr.bf16.mxu0 0
  %1300 = vmatpush1.bf16.xpose.msra.mxu0 0
  %1301 = vmatprep.subr.bf16.mxu0 0
  %1302 = vmatpush1.bf16.xpose.msra.mxu0 0
  %1303 = vmatprep.subr.bf16.mxu0 0
  %1304 = vmatpush1.bf16.xpose.msra.mxu0 0
  %1305 = vmatprep.subr.bf16.mxu0 0
  %1306 = vmatpush1.bf16.xpose.msra.mxu0 0
  %1307 = vmatprep.subr.bf16.mxu0 0
  %1308 = vmatpush1.bf16.xpose.msra.mxu0 0
  %1309 = vmatprep.subr.bf16.mxu0 0
  %1310 = vmatpush1.bf16.xpose.msra.mxu0 0
  %1311 = vmatprep.subr.bf16.mxu0 0
  %1312 = vmatpush1.bf16.xpose.msra.mxu0 0
  %1313 = vmatprep.mubr.bf16.mxu0 0
  %1314 = vmatmul.mubr.bf16.gmra.mrb[0].mxu0 %v1267
  %v1315 = vpop.f32.mrb[0].mxu0
  %v1316 = vadd.f32 0.0, %v1315
  %v1317 = vpop.f32.mrb[0].mxu0
  %v1318 = vpop.f32.mrb[0].mxu0
  %v1319 = vpop.f32.mrb[0].mxu0
  %1320 = vdwg.mxu0
  %1322 = vrot.lane.b32.xlu0 %v1316, 64
  %v1323 = vpop.permute.xlu0 %1322
  %v1325 = vsel %vm445, %v1071, %v1323
  %v1326 = vpack.c.bf16 %v303, %v303
  %v1327 = vpack.c.bf16 %v319, %v319
  %1328 = vrot.lane.b32.xlu0 %v357, 112
  %v1329 = vpop.permute.xlu0 %1328
  %1330 = vrot.lane.b32.xlu0 %v358, 112
  %v1331 = vpop.permute.xlu0 %1330
  %1332 = vrot.lane.b32.xlu0 %v359, 112
  %v1333 = vpop.permute.xlu0 %1332
  %1334 = vrot.lane.b32.xlu0 %v360, 112
  %v1335 = vpop.permute.xlu0 %1334
  %v1337 = vsel %vm363, %v1329, 0
  %v1340 = vsel %vm363, %v1331, 0
  %v1343 = vsel %vm363, %v1333, 0
  %v1346 = vsel %vm363, %v1335, 0
  %v1349 = vsel %vm376, %v1326, 0
  %1351 = vmatprep.subr.bf16.mxu0 0
  %1352 = vmatpush1.bf16.msra.mxu0 %v1349
  %1353 = vmatprep.subr.bf16.mxu0 0
  %1354 = vmatpush1.bf16.msra.mxu0 0
  %1355 = vmatprep.subr.bf16.mxu0 0
  %1356 = vmatpush1.bf16.msra.mxu0 0
  %1357 = vmatprep.subr.bf16.mxu0 0
  %1358 = vmatpush1.bf16.msra.mxu0 0
  %1359 = vmatprep.subr.bf16.mxu0 0
  %1360 = vmatpush1.bf16.msra.mxu0 0
  %1361 = vmatprep.subr.bf16.mxu0 0
  %1362 = vmatpush1.bf16.msra.mxu0 0
  %1363 = vmatprep.subr.bf16.mxu0 0
  %1364 = vmatpush1.bf16.msra.mxu0 0
  %1365 = vmatprep.subr.bf16.mxu0 0
  %1366 = vmatpush1.bf16.msra.mxu0 0
  %1367 = vmatprep.subr.bf16.mxu0 0
  %1368 = vmatpush1.bf16.msra.mxu0 0
  %1369 = vmatprep.subr.bf16.mxu0 0
  %1370 = vmatpush1.bf16.msra.mxu0 0
  %1371 = vmatprep.subr.bf16.mxu0 0
  %1372 = vmatpush1.bf16.msra.mxu0 0
  %1373 = vmatprep.subr.bf16.mxu0 0
  %1374 = vmatpush1.bf16.msra.mxu0 0
  %1375 = vmatprep.subr.bf16.mxu0 0
  %1376 = vmatpush1.bf16.msra.mxu0 0
  %1377 = vmatprep.subr.bf16.mxu0 0
  %1378 = vmatpush1.bf16.msra.mxu0 0
  %1379 = vmatprep.subr.bf16.mxu0 0
  %1380 = vmatpush1.bf16.msra.mxu0 0
  %1381 = vmatprep.subr.bf16.mxu0 0
  %1382 = vmatpush1.bf16.msra.mxu0 0
  %1383 = vmatprep.mubr.bf16.mxu0 0
  %1384 = vmatmul.mubr.bf16.gmra.mrb[0].mxu0 %v1337
  %v1385 = vpop.f32.mrb[0].mxu0
  %v1386 = vadd.f32 0.0, %v1385
  %v1387 = vpop.f32.mrb[0].mxu0
  %v1388 = vpop.f32.mrb[0].mxu0
  %v1389 = vadd.f32 0.0, %v1388
  %v1390 = vpop.f32.mrb[0].mxu0
  %1391 = vmatprep.mubr.bf16.mxu0 0
  %1392 = vmatmul.mubr.bf16.gmra.mrb[0].mxu0 %v1340
  %v1393 = vpop.f32.mrb[0].mxu0
  %v1394 = vadd.f32 0.0, %v1393
  %v1395 = vpop.f32.mrb[0].mxu0
  %v1396 = vpop.f32.mrb[0].mxu0
  %v1397 = vadd.f32 0.0, %v1396
  %v1398 = vpop.f32.mrb[0].mxu0
  %1399 = vmatprep.mubr.bf16.mxu0 0
  %1400 = vmatmul.mubr.bf16.gmra.mrb[0].mxu0 %v1343
  %v1401 = vpop.f32.mrb[0].mxu0
  %v1402 = vadd.f32 0.0, %v1401
  %v1403 = vpop.f32.mrb[0].mxu0
  %v1404 = vpop.f32.mrb[0].mxu0
  %v1405 = vadd.f32 0.0, %v1404
  %v1406 = vpop.f32.mrb[0].mxu0
  %1407 = vmatprep.mubr.bf16.mxu0 0
  %1408 = vmatmul.mubr.bf16.gmra.mrb[0].mxu0 %v1346
  %v1409 = vpop.f32.mrb[0].mxu0
  %v1410 = vadd.f32 0.0, %v1409
  %v1411 = vpop.f32.mrb[0].mxu0
  %v1412 = vpop.f32.mrb[0].mxu0
  %v1413 = vadd.f32 0.0, %v1412
  %v1414 = vpop.f32.mrb[0].mxu0
  %1415 = vdwg.mxu0
  %v1416 = vsel %vm445, %v1386, -inf
  %1417 = vmax.xlane.f32.xlu0 %v1416
  %v1418 = vpop.xlane.xlu0 %1417
  %v1419 = vsel %vm445, %v1389, -inf
  %1420 = vmax.xlane.f32.xlu0 %v1419
  %v1421 = vpop.xlane.xlu0 %1420
  %v1422 = vsel %vm445, %v1394, -inf
  %1423 = vmax.xlane.f32.xlu0 %v1422
  %v1424 = vpop.xlane.xlu0 %1423
  %v1425 = vsel %vm445, %v1397, -inf
  %1426 = vmax.xlane.f32.xlu0 %v1425
  %v1427 = vpop.xlane.xlu0 %1426
  %v1428 = vsel %vm445, %v1402, -inf
  %1429 = vmax.xlane.f32.xlu0 %v1428
  %v1430 = vpop.xlane.xlu0 %1429
  %v1431 = vsel %vm445, %v1405, -inf
  %1432 = vmax.xlane.f32.xlu0 %v1431
  %v1433 = vpop.xlane.xlu0 %1432
  %v1434 = vsel %vm445, %v1410, -inf
  %1435 = vmax.xlane.f32.xlu0 %v1434
  %v1436 = vpop.xlane.xlu0 %1435
  %v1437 = vsel %vm445, %v1413, -inf
  %1438 = vmax.xlane.f32.xlu0 %v1437
  %v1439 = vpop.xlane.xlu0 %1438
  %v1440 = vsub.f32 %v1386, %v1418
  %v1441 = vsub.f32 %v1389, %v1421
  %v1442 = vsub.f32 %v1394, %v1424
  %v1443 = vsub.f32 %v1397, %v1427
  %v1444 = vsub.f32 %v1402, %v1430
  %v1445 = vsub.f32 %v1405, %v1433
  %v1446 = vsub.f32 %v1410, %v1436
  %v1447 = vsub.f32 %v1413, %v1439
  %v1448 = vmul.f32 %v1440, 1.442695
  %v1449 = vpow.pop %v1448
  %v1450 = vmul.f32 %v1441, 1.442695
  %v1451 = vpow.pop %v1450
  %v1452 = vmul.f32 %v1442, 1.442695
  %v1453 = vpow.pop %v1452
  %v1454 = vmul.f32 %v1443, 1.442695
  %v1455 = vpow.pop %v1454
  %v1456 = vmul.f32 %v1444, 1.442695
  %v1457 = vpow.pop %v1456
  %v1458 = vmul.f32 %v1445, 1.442695
  %v1459 = vpow.pop %v1458
  %v1460 = vmul.f32 %v1446, 1.442695
  %v1461 = vpow.pop %v1460
  %v1462 = vmul.f32 %v1447, 1.442695
  %v1463 = vpow.pop %v1462
  %v1464 = vsel %vm445, %v1449, 0.0
  %1465 = vadd.xlane.f32.xlu0 %v1464
  %v1466 = vpop.xlane.xlu0 %1465
  %v1467 = vsel %vm445, %v1451, 0.0
  %1468 = vadd.xlane.f32.xlu0 %v1467
  %v1469 = vpop.xlane.xlu0 %1468
  %v1470 = vsel %vm445, %v1453, 0.0
  %1471 = vadd.xlane.f32.xlu0 %v1470
  %v1472 = vpop.xlane.xlu0 %1471
  %v1473 = vsel %vm445, %v1455, 0.0
  %1474 = vadd.xlane.f32.xlu0 %v1473
  %v1475 = vpop.xlane.xlu0 %1474
  %v1476 = vsel %vm445, %v1457, 0.0
  %1477 = vadd.xlane.f32.xlu0 %v1476
  %v1478 = vpop.xlane.xlu0 %1477
  %v1479 = vsel %vm445, %v1459, 0.0
  %1480 = vadd.xlane.f32.xlu0 %v1479
  %v1481 = vpop.xlane.xlu0 %1480
  %v1482 = vsel %vm445, %v1461, 0.0
  %1483 = vadd.xlane.f32.xlu0 %v1482
  %v1484 = vpop.xlane.xlu0 %1483
  %v1485 = vsel %vm445, %v1463, 0.0
  %1486 = vadd.xlane.f32.xlu0 %v1485
  %v1487 = vpop.xlane.xlu0 %1486
  %v1488 = vrcp.pop %v1466
  %v1489 = vrcp.pop %v1469
  %v1490 = vrcp.pop %v1472
  %v1491 = vrcp.pop %v1475
  %v1492 = vrcp.pop %v1478
  %v1493 = vrcp.pop %v1481
  %v1494 = vrcp.pop %v1484
  %v1495 = vrcp.pop %v1487
  %v1496 = vmul.f32 %v1449, %v1488
  %v1497 = vmul.f32 %v1451, %v1489
  %v1498 = vmul.f32 %v1453, %v1490
  %v1499 = vmul.f32 %v1455, %v1491
  %v1500 = vmul.f32 %v1457, %v1492
  %v1501 = vmul.f32 %v1459, %v1493
  %v1502 = vmul.f32 %v1461, %v1494
  %v1503 = vmul.f32 %v1463, %v1495
  %v1504 = vpack.c.bf16 %v1497, %v1496
  %v1505 = vpack.c.bf16 %v1499, %v1498
  %v1506 = vpack.c.bf16 %v1501, %v1500
  %v1507 = vpack.c.bf16 %v1503, %v1502
  %v1509 = vsel %vm445, %v1327, 0
  %v1512 = vsel %vm445, %v1504, 0
  %v1515 = vsel %vm445, %v1505, 0
  %v1518 = vsel %vm445, %v1506, 0
  %v1521 = vsel %vm445, %v1507, 0
  %1523 = vmatprep.subr.bf16.mxu0 0
  %1524 = vmatpush1.bf16.xpose.msra.mxu0 %v1512
  %1525 = vmatprep.subr.bf16.mxu0 0
  %1526 = vmatpush1.bf16.xpose.msra.mxu0 %v1515
  %1527 = vmatprep.subr.bf16.mxu0 0
  %1528 = vmatpush1.bf16.xpose.msra.mxu0 %v1518
  %1529 = vmatprep.subr.bf16.mxu0 0
  %1530 = vmatpush1.bf16.xpose.msra.mxu0 %v1521
  %1531 = vmatprep.subr.bf16.mxu0 0
  %1532 = vmatpush1.bf16.xpose.msra.mxu0 0
  %1533 = vmatprep.subr.bf16.mxu0 0
  %1534 = vmatpush1.bf16.xpose.msra.mxu0 0
  %1535 = vmatprep.subr.bf16.mxu0 0
  %1536 = vmatpush1.bf16.xpose.msra.mxu0 0
  %1537 = vmatprep.subr.bf16.mxu0 0
  %1538 = vmatpush1.bf16.xpose.msra.mxu0 0
  %1539 = vmatprep.subr.bf16.mxu0 0
  %1540 = vmatpush1.bf16.xpose.msra.mxu0 0
  %1541 = vmatprep.subr.bf16.mxu0 0
  %1542 = vmatpush1.bf16.xpose.msra.mxu0 0
  %1543 = vmatprep.subr.bf16.mxu0 0
  %1544 = vmatpush1.bf16.xpose.msra.mxu0 0
  %1545 = vmatprep.subr.bf16.mxu0 0
  %1546 = vmatpush1.bf16.xpose.msra.mxu0 0
  %1547 = vmatprep.subr.bf16.mxu0 0
  %1548 = vmatpush1.bf16.xpose.msra.mxu0 0
  %1549 = vmatprep.subr.bf16.mxu0 0
  %1550 = vmatpush1.bf16.xpose.msra.mxu0 0
  %1551 = vmatprep.subr.bf16.mxu0 0
  %1552 = vmatpush1.bf16.xpose.msra.mxu0 0
  %1553 = vmatprep.subr.bf16.mxu0 0
  %1554 = vmatpush1.bf16.xpose.msra.mxu0 0
  %1555 = vmatprep.mubr.bf16.mxu0 0
  %1556 = vmatmul.mubr.bf16.gmra.mrb[0].mxu0 %v1509
  %v1557 = vpop.f32.mrb[0].mxu0
  %v1558 = vadd.f32 0.0, %v1557
  %v1559 = vpop.f32.mrb[0].mxu0
  %v1560 = vpop.f32.mrb[0].mxu0
  %v1561 = vpop.f32.mrb[0].mxu0
  %1562 = vdwg.mxu0
  %1563 = vrot.lane.b32.xlu0 %v593, 112
  %v1564 = vpop.permute.xlu0 %1563
  %1565 = vrot.lane.b32.xlu0 %v594, 112
  %v1566 = vpop.permute.xlu0 %1565
  %1567 = vrot.lane.b32.xlu0 %v595, 112
  %v1568 = vpop.permute.xlu0 %1567
  %1569 = vrot.lane.b32.xlu0 %v596, 112
  %v1570 = vpop.permute.xlu0 %1569
  %1572 = vrot.lane.b32.xlu0 %v1326, 64
  %v1573 = vpop.permute.xlu0 %1572
  %v1575 = vsel %vm363, %v1564, 0
  %v1578 = vsel %vm363, %v1566, 0
  %v1581 = vsel %vm363, %v1568, 0
  %v1584 = vsel %vm363, %v1570, 0
  %v1587 = vsel %vm376, %v1573, 0
  %1589 = vmatprep.subr.bf16.mxu0 0
  %1590 = vmatpush1.bf16.msra.mxu0 %v1587
  %1591 = vmatprep.subr.bf16.mxu0 0
  %1592 = vmatpush1.bf16.msra.mxu0 0
  %1593 = vmatprep.subr.bf16.mxu0 0
  %1594 = vmatpush1.bf16.msra.mxu0 0
  %1595 = vmatprep.subr.bf16.mxu0 0
  %1596 = vmatpush1.bf16.msra.mxu0 0
  %1597 = vmatprep.subr.bf16.mxu0 0
  %1598 = vmatpush1.bf16.msra.mxu0 0
  %1599 = vmatprep.subr.bf16.mxu0 0
  %1600 = vmatpush1.bf16.msra.mxu0 0
  %1601 = vmatprep.subr.bf16.mxu0 0
  %1602 = vmatpush1.bf16.msra.mxu0 0
  %1603 = vmatprep.subr.bf16.mxu0 0
  %1604 = vmatpush1.bf16.msra.mxu0 0
  %1605 = vmatprep.subr.bf16.mxu0 0
  %1606 = vmatpush1.bf16.msra.mxu0 0
  %1607 = vmatprep.subr.bf16.mxu0 0
  %1608 = vmatpush1.bf16.msra.mxu0 0
  %1609 = vmatprep.subr.bf16.mxu0 0
  %1610 = vmatpush1.bf16.msra.mxu0 0
  %1611 = vmatprep.subr.bf16.mxu0 0
  %1612 = vmatpush1.bf16.msra.mxu0 0
  %1613 = vmatprep.subr.bf16.mxu0 0
  %1614 = vmatpush1.bf16.msra.mxu0 0
  %1615 = vmatprep.subr.bf16.mxu0 0
  %1616 = vmatpush1.bf16.msra.mxu0 0
  %1617 = vmatprep.subr.bf16.mxu0 0
  %1618 = vmatpush1.bf16.msra.mxu0 0
  %1619 = vmatprep.subr.bf16.mxu0 0
  %1620 = vmatpush1.bf16.msra.mxu0 0
  %1621 = vmatprep.mubr.bf16.mxu0 0
  %1622 = vmatmul.mubr.bf16.gmra.mrb[0].mxu0 %v1575
  %v1623 = vpop.f32.mrb[0].mxu0
  %v1624 = vadd.f32 0.0, %v1623
  %v1625 = vpop.f32.mrb[0].mxu0
  %v1626 = vpop.f32.mrb[0].mxu0
  %v1627 = vadd.f32 0.0, %v1626
  %v1628 = vpop.f32.mrb[0].mxu0
  %1629 = vmatprep.mubr.bf16.mxu0 0
  %1630 = vmatmul.mubr.bf16.gmra.mrb[0].mxu0 %v1578
  %v1631 = vpop.f32.mrb[0].mxu0
  %v1632 = vadd.f32 0.0, %v1631
  %v1633 = vpop.f32.mrb[0].mxu0
  %v1634 = vpop.f32.mrb[0].mxu0
  %v1635 = vadd.f32 0.0, %v1634
  %v1636 = vpop.f32.mrb[0].mxu0
  %1637 = vmatprep.mubr.bf16.mxu0 0
  %1638 = vmatmul.mubr.bf16.gmra.mrb[0].mxu0 %v1581
  %v1639 = vpop.f32.mrb[0].mxu0
  %v1640 = vadd.f32 0.0, %v1639
  %v1641 = vpop.f32.mrb[0].mxu0
  %v1642 = vpop.f32.mrb[0].mxu0
  %v1643 = vadd.f32 0.0, %v1642
  %v1644 = vpop.f32.mrb[0].mxu0
  %1645 = vmatprep.mubr.bf16.mxu0 0
  %1646 = vmatmul.mubr.bf16.gmra.mrb[0].mxu0 %v1584
  %v1647 = vpop.f32.mrb[0].mxu0
  %v1648 = vadd.f32 0.0, %v1647
  %v1649 = vpop.f32.mrb[0].mxu0
  %v1650 = vpop.f32.mrb[0].mxu0
  %v1651 = vadd.f32 0.0, %v1650
  %v1652 = vpop.f32.mrb[0].mxu0
  %1653 = vdwg.mxu0
  %v1654 = vsel %vm445, %v1624, -inf
  %1655 = vmax.xlane.f32.xlu0 %v1654
  %v1656 = vpop.xlane.xlu0 %1655
  %v1657 = vsel %vm445, %v1627, -inf
  %1658 = vmax.xlane.f32.xlu0 %v1657
  %v1659 = vpop.xlane.xlu0 %1658
  %v1660 = vsel %vm445, %v1632, -inf
  %1661 = vmax.xlane.f32.xlu0 %v1660
  %v1662 = vpop.xlane.xlu0 %1661
  %v1663 = vsel %vm445, %v1635, -inf
  %1664 = vmax.xlane.f32.xlu0 %v1663
  %v1665 = vpop.xlane.xlu0 %1664
  %v1666 = vsel %vm445, %v1640, -inf
  %1667 = vmax.xlane.f32.xlu0 %v1666
  %v1668 = vpop.xlane.xlu0 %1667
  %v1669 = vsel %vm445, %v1643, -inf
  %1670 = vmax.xlane.f32.xlu0 %v1669
  %v1671 = vpop.xlane.xlu0 %1670
  %v1672 = vsel %vm445, %v1648, -inf
  %1673 = vmax.xlane.f32.xlu0 %v1672
  %v1674 = vpop.xlane.xlu0 %1673
  %v1675 = vsel %vm445, %v1651, -inf
  %1676 = vmax.xlane.f32.xlu0 %v1675
  %v1677 = vpop.xlane.xlu0 %1676
  %v1678 = vsub.f32 %v1624, %v1656
  %v1679 = vsub.f32 %v1627, %v1659
  %v1680 = vsub.f32 %v1632, %v1662
  %v1681 = vsub.f32 %v1635, %v1665
  %v1682 = vsub.f32 %v1640, %v1668
  %v1683 = vsub.f32 %v1643, %v1671
  %v1684 = vsub.f32 %v1648, %v1674
  %v1685 = vsub.f32 %v1651, %v1677
  %v1686 = vmul.f32 %v1678, 1.442695
  %v1687 = vpow.pop %v1686
  %v1688 = vmul.f32 %v1679, 1.442695
  %v1689 = vpow.pop %v1688
  %v1690 = vmul.f32 %v1680, 1.442695
  %v1691 = vpow.pop %v1690
  %v1692 = vmul.f32 %v1681, 1.442695
  %v1693 = vpow.pop %v1692
  %v1694 = vmul.f32 %v1682, 1.442695
  %v1695 = vpow.pop %v1694
  %v1696 = vmul.f32 %v1683, 1.442695
  %v1697 = vpow.pop %v1696
  %v1698 = vmul.f32 %v1684, 1.442695
  %v1699 = vpow.pop %v1698
  %v1700 = vmul.f32 %v1685, 1.442695
  %v1701 = vpow.pop %v1700
  %v1702 = vsel %vm445, %v1687, 0.0
  %1703 = vadd.xlane.f32.xlu0 %v1702
  %v1704 = vpop.xlane.xlu0 %1703
  %v1705 = vsel %vm445, %v1689, 0.0
  %1706 = vadd.xlane.f32.xlu0 %v1705
  %v1707 = vpop.xlane.xlu0 %1706
  %v1708 = vsel %vm445, %v1691, 0.0
  %1709 = vadd.xlane.f32.xlu0 %v1708
  %v1710 = vpop.xlane.xlu0 %1709
  %v1711 = vsel %vm445, %v1693, 0.0
  %1712 = vadd.xlane.f32.xlu0 %v1711
  %v1713 = vpop.xlane.xlu0 %1712
  %v1714 = vsel %vm445, %v1695, 0.0
  %1715 = vadd.xlane.f32.xlu0 %v1714
  %v1716 = vpop.xlane.xlu0 %1715
  %v1717 = vsel %vm445, %v1697, 0.0
  %1718 = vadd.xlane.f32.xlu0 %v1717
  %v1719 = vpop.xlane.xlu0 %1718
  %v1720 = vsel %vm445, %v1699, 0.0
  %1721 = vadd.xlane.f32.xlu0 %v1720
  %v1722 = vpop.xlane.xlu0 %1721
  %v1723 = vsel %vm445, %v1701, 0.0
  %1724 = vadd.xlane.f32.xlu0 %v1723
  %v1725 = vpop.xlane.xlu0 %1724
  %v1726 = vrcp.pop %v1704
  %v1727 = vrcp.pop %v1707
  %v1728 = vrcp.pop %v1710
  %v1729 = vrcp.pop %v1713
  %v1730 = vrcp.pop %v1716
  %v1731 = vrcp.pop %v1719
  %v1732 = vrcp.pop %v1722
  %v1733 = vrcp.pop %v1725
  %v1734 = vmul.f32 %v1687, %v1726
  %v1735 = vmul.f32 %v1689, %v1727
  %v1736 = vmul.f32 %v1691, %v1728
  %v1737 = vmul.f32 %v1693, %v1729
  %v1738 = vmul.f32 %v1695, %v1730
  %v1739 = vmul.f32 %v1697, %v1731
  %v1740 = vmul.f32 %v1699, %v1732
  %v1741 = vmul.f32 %v1701, %v1733
  %v1742 = vpack.c.bf16 %v1735, %v1734
  %v1743 = vpack.c.bf16 %v1737, %v1736
  %v1744 = vpack.c.bf16 %v1739, %v1738
  %v1745 = vpack.c.bf16 %v1741, %v1740
  %1747 = vrot.lane.b32.xlu0 %v1327, 64
  %v1748 = vpop.permute.xlu0 %1747
  %v1750 = vsel %vm445, %v1748, 0
  %v1753 = vsel %vm445, %v1742, 0
  %v1756 = vsel %vm445, %v1743, 0
  %v1759 = vsel %vm445, %v1744, 0
  %v1762 = vsel %vm445, %v1745, 0
  %1764 = vmatprep.subr.bf16.mxu0 0
  %1765 = vmatpush1.bf16.xpose.msra.mxu0 %v1753
  %1766 = vmatprep.subr.bf16.mxu0 0
  %1767 = vmatpush1.bf16.xpose.msra.mxu0 %v1756
  %1768 = vmatprep.subr.bf16.mxu0 0
  %1769 = vmatpush1.bf16.xpose.msra.mxu0 %v1759
  %1770 = vmatprep.subr.bf16.mxu0 0
  %1771 = vmatpush1.bf16.xpose.msra.mxu0 %v1762
  %1772 = vmatprep.subr.bf16.mxu0 0
  %1773 = vmatpush1.bf16.xpose.msra.mxu0 0
  %1774 = vmatprep.subr.bf16.mxu0 0
  %1775 = vmatpush1.bf16.xpose.msra.mxu0 0
  %1776 = vmatprep.subr.bf16.mxu0 0
  %1777 = vmatpush1.bf16.xpose.msra.mxu0 0
  %1778 = vmatprep.subr.bf16.mxu0 0
  %1779 = vmatpush1.bf16.xpose.msra.mxu0 0
  %1780 = vmatprep.subr.bf16.mxu0 0
  %1781 = vmatpush1.bf16.xpose.msra.mxu0 0
  %1782 = vmatprep.subr.bf16.mxu0 0
  %1783 = vmatpush1.bf16.xpose.msra.mxu0 0
  %1784 = vmatprep.subr.bf16.mxu0 0
  %1785 = vmatpush1.bf16.xpose.msra.mxu0 0
  %1786 = vmatprep.subr.bf16.mxu0 0
  %1787 = vmatpush1.bf16.xpose.msra.mxu0 0
  %1788 = vmatprep.subr.bf16.mxu0 0
  %1789 = vmatpush1.bf16.xpose.msra.mxu0 0
  %1790 = vmatprep.subr.bf16.mxu0 0
  %1791 = vmatpush1.bf16.xpose.msra.mxu0 0
  %1792 = vmatprep.subr.bf16.mxu0 0
  %1793 = vmatpush1.bf16.xpose.msra.mxu0 0
  %1794 = vmatprep.subr.bf16.mxu0 0
  %1795 = vmatpush1.bf16.xpose.msra.mxu0 0
  %1796 = vmatprep.mubr.bf16.mxu0 0
  %1797 = vmatmul.mubr.bf16.gmra.mrb[0].mxu0 %v1750
  %v1798 = vpop.f32.mrb[0].mxu0
  %v1799 = vadd.f32 0.0, %v1798
  %v1800 = vpop.f32.mrb[0].mxu0
  %v1801 = vpop.f32.mrb[0].mxu0
  %v1802 = vpop.f32.mrb[0].mxu0
  %1803 = vdwg.mxu0
  %1805 = vrot.lane.b32.xlu0 %v1799, 64
  %v1806 = vpop.permute.xlu0 %1805
  %v1808 = vsel %vm445, %v1558, %v1806
  %v1809 = vpack.c.bf16 %v306, %v306
  %v1810 = vpack.c.bf16 %v322, %v322
  %1811 = vrot.lane.b32.xlu0 %v357, 104
  %v1812 = vpop.permute.xlu0 %1811
  %1813 = vrot.lane.b32.xlu0 %v358, 104
  %v1814 = vpop.permute.xlu0 %1813
  %1815 = vrot.lane.b32.xlu0 %v359, 104
  %v1816 = vpop.permute.xlu0 %1815
  %1817 = vrot.lane.b32.xlu0 %v360, 104
  %v1818 = vpop.permute.xlu0 %1817
  %v1820 = vsel %vm363, %v1812, 0
  %v1823 = vsel %vm363, %v1814, 0
  %v1826 = vsel %vm363, %v1816, 0
  %v1829 = vsel %vm363, %v1818, 0
  %v1832 = vsel %vm376, %v1809, 0
  %1834 = vmatprep.subr.bf16.mxu0 0
  %1835 = vmatpush1.bf16.msra.mxu0 %v1832
  %1836 = vmatprep.subr.bf16.mxu0 0
  %1837 = vmatpush1.bf16.msra.mxu0 0
  %1838 = vmatprep.subr.bf16.mxu0 0
  %1839 = vmatpush1.bf16.msra.mxu0 0
  %1840 = vmatprep.subr.bf16.mxu0 0
  %1841 = vmatpush1.bf16.msra.mxu0 0
  %1842 = vmatprep.subr.bf16.mxu0 0
  %1843 = vmatpush1.bf16.msra.mxu0 0
  %1844 = vmatprep.subr.bf16.mxu0 0
  %1845 = vmatpush1.bf16.msra.mxu0 0
  %1846 = vmatprep.subr.bf16.mxu0 0
  %1847 = vmatpush1.bf16.msra.mxu0 0
  %1848 = vmatprep.subr.bf16.mxu0 0
  %1849 = vmatpush1.bf16.msra.mxu0 0
  %1850 = vmatprep.subr.bf16.mxu0 0
  %1851 = vmatpush1.bf16.msra.mxu0 0
  %1852 = vmatprep.subr.bf16.mxu0 0
  %1853 = vmatpush1.bf16.msra.mxu0 0
  %1854 = vmatprep.subr.bf16.mxu0 0
  %1855 = vmatpush1.bf16.msra.mxu0 0
  %1856 = vmatprep.subr.bf16.mxu0 0
  %1857 = vmatpush1.bf16.msra.mxu0 0
  %1858 = vmatprep.subr.bf16.mxu0 0
  %1859 = vmatpush1.bf16.msra.mxu0 0
  %1860 = vmatprep.subr.bf16.mxu0 0
  %1861 = vmatpush1.bf16.msra.mxu0 0
  %1862 = vmatprep.subr.bf16.mxu0 0
  %1863 = vmatpush1.bf16.msra.mxu0 0
  %1864 = vmatprep.subr.bf16.mxu0 0
  %1865 = vmatpush1.bf16.msra.mxu0 0
  %1866 = vmatprep.mubr.bf16.mxu0 0
  %1867 = vmatmul.mubr.bf16.gmra.mrb[0].mxu0 %v1820
  %v1868 = vpop.f32.mrb[0].mxu0
  %v1869 = vadd.f32 0.0, %v1868
  %v1870 = vpop.f32.mrb[0].mxu0
  %v1871 = vpop.f32.mrb[0].mxu0
  %v1872 = vadd.f32 0.0, %v1871
  %v1873 = vpop.f32.mrb[0].mxu0
  %1874 = vmatprep.mubr.bf16.mxu0 0
  %1875 = vmatmul.mubr.bf16.gmra.mrb[0].mxu0 %v1823
  %v1876 = vpop.f32.mrb[0].mxu0
  %v1877 = vadd.f32 0.0, %v1876
  %v1878 = vpop.f32.mrb[0].mxu0
  %v1879 = vpop.f32.mrb[0].mxu0
  %v1880 = vadd.f32 0.0, %v1879
  %v1881 = vpop.f32.mrb[0].mxu0
  %1882 = vmatprep.mubr.bf16.mxu0 0
  %1883 = vmatmul.mubr.bf16.gmra.mrb[0].mxu0 %v1826
  %v1884 = vpop.f32.mrb[0].mxu0
  %v1885 = vadd.f32 0.0, %v1884
  %v1886 = vpop.f32.mrb[0].mxu0
  %v1887 = vpop.f32.mrb[0].mxu0
  %v1888 = vadd.f32 0.0, %v1887
  %v1889 = vpop.f32.mrb[0].mxu0
  %1890 = vmatprep.mubr.bf16.mxu0 0
  %1891 = vmatmul.mubr.bf16.gmra.mrb[0].mxu0 %v1829
  %v1892 = vpop.f32.mrb[0].mxu0
  %v1893 = vadd.f32 0.0, %v1892
  %v1894 = vpop.f32.mrb[0].mxu0
  %v1895 = vpop.f32.mrb[0].mxu0
  %v1896 = vadd.f32 0.0, %v1895
  %v1897 = vpop.f32.mrb[0].mxu0
  %1898 = vdwg.mxu0
  %v1899 = vsel %vm445, %v1869, -inf
  %1900 = vmax.xlane.f32.xlu0 %v1899
  %v1901 = vpop.xlane.xlu0 %1900
  %v1902 = vsel %vm445, %v1872, -inf
  %1903 = vmax.xlane.f32.xlu0 %v1902
  %v1904 = vpop.xlane.xlu0 %1903
  %v1905 = vsel %vm445, %v1877, -inf
  %1906 = vmax.xlane.f32.xlu0 %v1905
  %v1907 = vpop.xlane.xlu0 %1906
  %v1908 = vsel %vm445, %v1880, -inf
  %1909 = vmax.xlane.f32.xlu0 %v1908
  %v1910 = vpop.xlane.xlu0 %1909
  %v1911 = vsel %vm445, %v1885, -inf
  %1912 = vmax.xlane.f32.xlu0 %v1911
  %v1913 = vpop.xlane.xlu0 %1912
  %v1914 = vsel %vm445, %v1888, -inf
  %1915 = vmax.xlane.f32.xlu0 %v1914
  %v1916 = vpop.xlane.xlu0 %1915
  %v1917 = vsel %vm445, %v1893, -inf
  %1918 = vmax.xlane.f32.xlu0 %v1917
  %v1919 = vpop.xlane.xlu0 %1918
  %v1920 = vsel %vm445, %v1896, -inf
  %1921 = vmax.xlane.f32.xlu0 %v1920
  %v1922 = vpop.xlane.xlu0 %1921
  %v1923 = vsub.f32 %v1869, %v1901
  %v1924 = vsub.f32 %v1872, %v1904
  %v1925 = vsub.f32 %v1877, %v1907
  %v1926 = vsub.f32 %v1880, %v1910
  %v1927 = vsub.f32 %v1885, %v1913
  %v1928 = vsub.f32 %v1888, %v1916
  %v1929 = vsub.f32 %v1893, %v1919
  %v1930 = vsub.f32 %v1896, %v1922
  %v1931 = vmul.f32 %v1923, 1.442695
  %v1932 = vpow.pop %v1931
  %v1933 = vmul.f32 %v1924, 1.442695
  %v1934 = vpow.pop %v1933
  %v1935 = vmul.f32 %v1925, 1.442695
  %v1936 = vpow.pop %v1935
  %v1937 = vmul.f32 %v1926, 1.442695
  %v1938 = vpow.pop %v1937
  %v1939 = vmul.f32 %v1927, 1.442695
  %v1940 = vpow.pop %v1939
  %v1941 = vmul.f32 %v1928, 1.442695
  %v1942 = vpow.pop %v1941
  %v1943 = vmul.f32 %v1929, 1.442695
  %v1944 = vpow.pop %v1943
  %v1945 = vmul.f32 %v1930, 1.442695
  %v1946 = vpow.pop %v1945
  %v1947 = vsel %vm445, %v1932, 0.0
  %1948 = vadd.xlane.f32.xlu0 %v1947
  %v1949 = vpop.xlane.xlu0 %1948
  %v1950 = vsel %vm445, %v1934, 0.0
  %1951 = vadd.xlane.f32.xlu0 %v1950
  %v1952 = vpop.xlane.xlu0 %1951
  %v1953 = vsel %vm445, %v1936, 0.0
  %1954 = vadd.xlane.f32.xlu0 %v1953
  %v1955 = vpop.xlane.xlu0 %1954
  %v1956 = vsel %vm445, %v1938, 0.0
  %1957 = vadd.xlane.f32.xlu0 %v1956
  %v1958 = vpop.xlane.xlu0 %1957
  %v1959 = vsel %vm445, %v1940, 0.0
  %1960 = vadd.xlane.f32.xlu0 %v1959
  %v1961 = vpop.xlane.xlu0 %1960
  %v1962 = vsel %vm445, %v1942, 0.0
  %1963 = vadd.xlane.f32.xlu0 %v1962
  %v1964 = vpop.xlane.xlu0 %1963
  %v1965 = vsel %vm445, %v1944, 0.0
  %1966 = vadd.xlane.f32.xlu0 %v1965
  %v1967 = vpop.xlane.xlu0 %1966
  %v1968 = vsel %vm445, %v1946, 0.0
  %1969 = vadd.xlane.f32.xlu0 %v1968
  %v1970 = vpop.xlane.xlu0 %1969
  %v1971 = vrcp.pop %v1949
  %v1972 = vrcp.pop %v1952
  %v1973 = vrcp.pop %v1955
  %v1974 = vrcp.pop %v1958
  %v1975 = vrcp.pop %v1961
  %v1976 = vrcp.pop %v1964
  %v1977 = vrcp.pop %v1967
  %v1978 = vrcp.pop %v1970
  %v1979 = vmul.f32 %v1932, %v1971
  %v1980 = vmul.f32 %v1934, %v1972
  %v1981 = vmul.f32 %v1936, %v1973
  %v1982 = vmul.f32 %v1938, %v1974
  %v1983 = vmul.f32 %v1940, %v1975
  %v1984 = vmul.f32 %v1942, %v1976
  %v1985 = vmul.f32 %v1944, %v1977
  %v1986 = vmul.f32 %v1946, %v1978
  %v1987 = vpack.c.bf16 %v1980, %v1979
  %v1988 = vpack.c.bf16 %v1982, %v1981
  %v1989 = vpack.c.bf16 %v1984, %v1983
  %v1990 = vpack.c.bf16 %v1986, %v1985
  %v1992 = vsel %vm445, %v1810, 0
  %v1995 = vsel %vm445, %v1987, 0
  %v1998 = vsel %vm445, %v1988, 0
  %v2001 = vsel %vm445, %v1989, 0
  %v2004 = vsel %vm445, %v1990, 0
  %2006 = vmatprep.subr.bf16.mxu0 0
  %2007 = vmatpush1.bf16.xpose.msra.mxu0 %v1995
  %2008 = vmatprep.subr.bf16.mxu0 0
  %2009 = vmatpush1.bf16.xpose.msra.mxu0 %v1998
  %2010 = vmatprep.subr.bf16.mxu0 0
  %2011 = vmatpush1.bf16.xpose.msra.mxu0 %v2001
  %2012 = vmatprep.subr.bf16.mxu0 0
  %2013 = vmatpush1.bf16.xpose.msra.mxu0 %v2004
  %2014 = vmatprep.subr.bf16.mxu0 0
  %2015 = vmatpush1.bf16.xpose.msra.mxu0 0
  %2016 = vmatprep.subr.bf16.mxu0 0
  %2017 = vmatpush1.bf16.xpose.msra.mxu0 0
  %2018 = vmatprep.subr.bf16.mxu0 0
  %2019 = vmatpush1.bf16.xpose.msra.mxu0 0
  %2020 = vmatprep.subr.bf16.mxu0 0
  %2021 = vmatpush1.bf16.xpose.msra.mxu0 0
  %2022 = vmatprep.subr.bf16.mxu0 0
  %2023 = vmatpush1.bf16.xpose.msra.mxu0 0
  %2024 = vmatprep.subr.bf16.mxu0 0
  %2025 = vmatpush1.bf16.xpose.msra.mxu0 0
  %2026 = vmatprep.subr.bf16.mxu0 0
  %2027 = vmatpush1.bf16.xpose.msra.mxu0 0
  %2028 = vmatprep.subr.bf16.mxu0 0
  %2029 = vmatpush1.bf16.xpose.msra.mxu0 0
  %2030 = vmatprep.subr.bf16.mxu0 0
  %2031 = vmatpush1.bf16.xpose.msra.mxu0 0
  %2032 = vmatprep.subr.bf16.mxu0 0
  %2033 = vmatpush1.bf16.xpose.msra.mxu0 0
  %2034 = vmatprep.subr.bf16.mxu0 0
  %2035 = vmatpush1.bf16.xpose.msra.mxu0 0
  %2036 = vmatprep.subr.bf16.mxu0 0
  %2037 = vmatpush1.bf16.xpose.msra.mxu0 0
  %2038 = vmatprep.mubr.bf16.mxu0 0
  %2039 = vmatmul.mubr.bf16.gmra.mrb[0].mxu0 %v1992
  %v2040 = vpop.f32.mrb[0].mxu0
  %v2041 = vadd.f32 0.0, %v2040
  %v2042 = vpop.f32.mrb[0].mxu0
  %v2043 = vpop.f32.mrb[0].mxu0
  %v2044 = vpop.f32.mrb[0].mxu0
  %2045 = vdwg.mxu0
  %2046 = vrot.lane.b32.xlu0 %v593, 104
  %v2047 = vpop.permute.xlu0 %2046
  %2048 = vrot.lane.b32.xlu0 %v594, 104
  %v2049 = vpop.permute.xlu0 %2048
  %2050 = vrot.lane.b32.xlu0 %v595, 104
  %v2051 = vpop.permute.xlu0 %2050
  %2052 = vrot.lane.b32.xlu0 %v596, 104
  %v2053 = vpop.permute.xlu0 %2052
  %2055 = vrot.lane.b32.xlu0 %v1809, 64
  %v2056 = vpop.permute.xlu0 %2055
  %v2058 = vsel %vm363, %v2047, 0
  %v2061 = vsel %vm363, %v2049, 0
  %v2064 = vsel %vm363, %v2051, 0
  %v2067 = vsel %vm363, %v2053, 0
  %v2070 = vsel %vm376, %v2056, 0
  %2072 = vmatprep.subr.bf16.mxu0 0
  %2073 = vmatpush1.bf16.msra.mxu0 %v2070
  %2074 = vmatprep.subr.bf16.mxu0 0
  %2075 = vmatpush1.bf16.msra.mxu0 0
  %2076 = vmatprep.subr.bf16.mxu0 0
  %2077 = vmatpush1.bf16.msra.mxu0 0
  %2078 = vmatprep.subr.bf16.mxu0 0
  %2079 = vmatpush1.bf16.msra.mxu0 0
  %2080 = vmatprep.subr.bf16.mxu0 0
  %2081 = vmatpush1.bf16.msra.mxu0 0
  %2082 = vmatprep.subr.bf16.mxu0 0
  %2083 = vmatpush1.bf16.msra.mxu0 0
  %2084 = vmatprep.subr.bf16.mxu0 0
  %2085 = vmatpush1.bf16.msra.mxu0 0
  %2086 = vmatprep.subr.bf16.mxu0 0
  %2087 = vmatpush1.bf16.msra.mxu0 0
  %2088 = vmatprep.subr.bf16.mxu0 0
  %2089 = vmatpush1.bf16.msra.mxu0 0
  %2090 = vmatprep.subr.bf16.mxu0 0
  %2091 = vmatpush1.bf16.msra.mxu0 0
  %2092 = vmatprep.subr.bf16.mxu0 0
  %2093 = vmatpush1.bf16.msra.mxu0 0
  %2094 = vmatprep.subr.bf16.mxu0 0
  %2095 = vmatpush1.bf16.msra.mxu0 0
  %2096 = vmatprep.subr.bf16.mxu0 0
  %2097 = vmatpush1.bf16.msra.mxu0 0
  %2098 = vmatprep.subr.bf16.mxu0 0
  %2099 = vmatpush1.bf16.msra.mxu0 0
  %2100 = vmatprep.subr.bf16.mxu0 0
  %2101 = vmatpush1.bf16.msra.mxu0 0
  %2102 = vmatprep.subr.bf16.mxu0 0
  %2103 = vmatpush1.bf16.msra.mxu0 0
  %2104 = vmatprep.mubr.bf16.mxu0 0
  %2105 = vmatmul.mubr.bf16.gmra.mrb[0].mxu0 %v2058
  %v2106 = vpop.f32.mrb[0].mxu0
  %v2107 = vadd.f32 0.0, %v2106
  %v2108 = vpop.f32.mrb[0].mxu0
  %v2109 = vpop.f32.mrb[0].mxu0
  %v2110 = vadd.f32 0.0, %v2109
  %v2111 = vpop.f32.mrb[0].mxu0
  %2112 = vmatprep.mubr.bf16.mxu0 0
  %2113 = vmatmul.mubr.bf16.gmra.mrb[0].mxu0 %v2061
  %v2114 = vpop.f32.mrb[0].mxu0
  %v2115 = vadd.f32 0.0, %v2114
  %v2116 = vpop.f32.mrb[0].mxu0
  %v2117 = vpop.f32.mrb[0].mxu0
  %v2118 = vadd.f32 0.0, %v2117
  %v2119 = vpop.f32.mrb[0].mxu0
  %2120 = vmatprep.mubr.bf16.mxu0 0
  %2121 = vmatmul.mubr.bf16.gmra.mrb[0].mxu0 %v2064
  %v2122 = vpop.f32.mrb[0].mxu0
  %v2123 = vadd.f32 0.0, %v2122
  %v2124 = vpop.f32.mrb[0].mxu0
  %v2125 = vpop.f32.mrb[0].mxu0
  %v2126 = vadd.f32 0.0, %v2125
  %v2127 = vpop.f32.mrb[0].mxu0
  %2128 = vmatprep.mubr.bf16.mxu0 0
  %2129 = vmatmul.mubr.bf16.gmra.mrb[0].mxu0 %v2067
  %v2130 = vpop.f32.mrb[0].mxu0
  %v2131 = vadd.f32 0.0, %v2130
  %v2132 = vpop.f32.mrb[0].mxu0
  %v2133 = vpop.f32.mrb[0].mxu0
  %v2134 = vadd.f32 0.0, %v2133
  %v2135 = vpop.f32.mrb[0].mxu0
  %2136 = vdwg.mxu0
  %v2137 = vsel %vm445, %v2107, -inf
  %2138 = vmax.xlane.f32.xlu0 %v2137
  %v2139 = vpop.xlane.xlu0 %2138
  %v2140 = vsel %vm445, %v2110, -inf
  %2141 = vmax.xlane.f32.xlu0 %v2140
  %v2142 = vpop.xlane.xlu0 %2141
  %v2143 = vsel %vm445, %v2115, -inf
  %2144 = vmax.xlane.f32.xlu0 %v2143
  %v2145 = vpop.xlane.xlu0 %2144
  %v2146 = vsel %vm445, %v2118, -inf
  %2147 = vmax.xlane.f32.xlu0 %v2146
  %v2148 = vpop.xlane.xlu0 %2147
  %v2149 = vsel %vm445, %v2123, -inf
  %2150 = vmax.xlane.f32.xlu0 %v2149
  %v2151 = vpop.xlane.xlu0 %2150
  %v2152 = vsel %vm445, %v2126, -inf
  %2153 = vmax.xlane.f32.xlu0 %v2152
  %v2154 = vpop.xlane.xlu0 %2153
  %v2155 = vsel %vm445, %v2131, -inf
  %2156 = vmax.xlane.f32.xlu0 %v2155
  %v2157 = vpop.xlane.xlu0 %2156
  %v2158 = vsel %vm445, %v2134, -inf
  %2159 = vmax.xlane.f32.xlu0 %v2158
  %v2160 = vpop.xlane.xlu0 %2159
  %v2161 = vsub.f32 %v2107, %v2139
  %v2162 = vsub.f32 %v2110, %v2142
  %v2163 = vsub.f32 %v2115, %v2145
  %v2164 = vsub.f32 %v2118, %v2148
  %v2165 = vsub.f32 %v2123, %v2151
  %v2166 = vsub.f32 %v2126, %v2154
  %v2167 = vsub.f32 %v2131, %v2157
  %v2168 = vsub.f32 %v2134, %v2160
  %v2169 = vmul.f32 %v2161, 1.442695
  %v2170 = vpow.pop %v2169
  %v2171 = vmul.f32 %v2162, 1.442695
  %v2172 = vpow.pop %v2171
  %v2173 = vmul.f32 %v2163, 1.442695
  %v2174 = vpow.pop %v2173
  %v2175 = vmul.f32 %v2164, 1.442695
  %v2176 = vpow.pop %v2175
  %v2177 = vmul.f32 %v2165, 1.442695
  %v2178 = vpow.pop %v2177
  %v2179 = vmul.f32 %v2166, 1.442695
  %v2180 = vpow.pop %v2179
  %v2181 = vmul.f32 %v2167, 1.442695
  %v2182 = vpow.pop %v2181
  %v2183 = vmul.f32 %v2168, 1.442695
  %v2184 = vpow.pop %v2183
  %v2185 = vsel %vm445, %v2170, 0.0
  %2186 = vadd.xlane.f32.xlu0 %v2185
  %v2187 = vpop.xlane.xlu0 %2186
  %v2188 = vsel %vm445, %v2172, 0.0
  %2189 = vadd.xlane.f32.xlu0 %v2188
  %v2190 = vpop.xlane.xlu0 %2189
  %v2191 = vsel %vm445, %v2174, 0.0
  %2192 = vadd.xlane.f32.xlu0 %v2191
  %v2193 = vpop.xlane.xlu0 %2192
  %v2194 = vsel %vm445, %v2176, 0.0
  %2195 = vadd.xlane.f32.xlu0 %v2194
  %v2196 = vpop.xlane.xlu0 %2195
  %v2197 = vsel %vm445, %v2178, 0.0
  %2198 = vadd.xlane.f32.xlu0 %v2197
  %v2199 = vpop.xlane.xlu0 %2198
  %v2200 = vsel %vm445, %v2180, 0.0
  %2201 = vadd.xlane.f32.xlu0 %v2200
  %v2202 = vpop.xlane.xlu0 %2201
  %v2203 = vsel %vm445, %v2182, 0.0
  %2204 = vadd.xlane.f32.xlu0 %v2203
  %v2205 = vpop.xlane.xlu0 %2204
  %v2206 = vsel %vm445, %v2184, 0.0
  %2207 = vadd.xlane.f32.xlu0 %v2206
  %v2208 = vpop.xlane.xlu0 %2207
  %v2209 = vrcp.pop %v2187
  %v2210 = vrcp.pop %v2190
  %v2211 = vrcp.pop %v2193
  %v2212 = vrcp.pop %v2196
  %v2213 = vrcp.pop %v2199
  %v2214 = vrcp.pop %v2202
  %v2215 = vrcp.pop %v2205
  %v2216 = vrcp.pop %v2208
  %v2217 = vmul.f32 %v2170, %v2209
  %v2218 = vmul.f32 %v2172, %v2210
  %v2219 = vmul.f32 %v2174, %v2211
  %v2220 = vmul.f32 %v2176, %v2212
  %v2221 = vmul.f32 %v2178, %v2213
  %v2222 = vmul.f32 %v2180, %v2214
  %v2223 = vmul.f32 %v2182, %v2215
  %v2224 = vmul.f32 %v2184, %v2216
  %v2225 = vpack.c.bf16 %v2218, %v2217
  %v2226 = vpack.c.bf16 %v2220, %v2219
  %v2227 = vpack.c.bf16 %v2222, %v2221
  %v2228 = vpack.c.bf16 %v2224, %v2223
  %2230 = vrot.lane.b32.xlu0 %v1810, 64
  %v2231 = vpop.permute.xlu0 %2230
  %v2233 = vsel %vm445, %v2231, 0
  %v2236 = vsel %vm445, %v2225, 0
  %v2239 = vsel %vm445, %v2226, 0
  %v2242 = vsel %vm445, %v2227, 0
  %v2245 = vsel %vm445, %v2228, 0
  %2247 = vmatprep.subr.bf16.mxu0 0
  %2248 = vmatpush1.bf16.xpose.msra.mxu0 %v2236
  %2249 = vmatprep.subr.bf16.mxu0 0
  %2250 = vmatpush1.bf16.xpose.msra.mxu0 %v2239
  %2251 = vmatprep.subr.bf16.mxu0 0
  %2252 = vmatpush1.bf16.xpose.msra.mxu0 %v2242
  %2253 = vmatprep.subr.bf16.mxu0 0
  %2254 = vmatpush1.bf16.xpose.msra.mxu0 %v2245
  %2255 = vmatprep.subr.bf16.mxu0 0
  %2256 = vmatpush1.bf16.xpose.msra.mxu0 0
  %2257 = vmatprep.subr.bf16.mxu0 0
  %2258 = vmatpush1.bf16.xpose.msra.mxu0 0
  %2259 = vmatprep.subr.bf16.mxu0 0
  %2260 = vmatpush1.bf16.xpose.msra.mxu0 0
  %2261 = vmatprep.subr.bf16.mxu0 0
  %2262 = vmatpush1.bf16.xpose.msra.mxu0 0
  %2263 = vmatprep.subr.bf16.mxu0 0
  %2264 = vmatpush1.bf16.xpose.msra.mxu0 0
  %2265 = vmatprep.subr.bf16.mxu0 0
  %2266 = vmatpush1.bf16.xpose.msra.mxu0 0
  %2267 = vmatprep.subr.bf16.mxu0 0
  %2268 = vmatpush1.bf16.xpose.msra.mxu0 0
  %2269 = vmatprep.subr.bf16.mxu0 0
  %2270 = vmatpush1.bf16.xpose.msra.mxu0 0
  %2271 = vmatprep.subr.bf16.mxu0 0
  %2272 = vmatpush1.bf16.xpose.msra.mxu0 0
  %2273 = vmatprep.subr.bf16.mxu0 0
  %2274 = vmatpush1.bf16.xpose.msra.mxu0 0
  %2275 = vmatprep.subr.bf16.mxu0 0
  %2276 = vmatpush1.bf16.xpose.msra.mxu0 0
  %2277 = vmatprep.subr.bf16.mxu0 0
  %2278 = vmatpush1.bf16.xpose.msra.mxu0 0
  %2279 = vmatprep.mubr.bf16.mxu0 0
  %2280 = vmatmul.mubr.bf16.gmra.mrb[0].mxu0 %v2233
  %v2281 = vpop.f32.mrb[0].mxu0
  %v2282 = vadd.f32 0.0, %v2281
  %v2283 = vpop.f32.mrb[0].mxu0
  %v2284 = vpop.f32.mrb[0].mxu0
  %v2285 = vpop.f32.mrb[0].mxu0
  %2286 = vdwg.mxu0
  %2288 = vrot.lane.b32.xlu0 %v2282, 64
  %v2289 = vpop.permute.xlu0 %2288
  %v2291 = vsel %vm445, %v2041, %v2289
  %v2292 = vpack.c.bf16 %v1325, %v834
  %v2293 = vpack.c.bf16 %v2291, %v1808
  %v2294 = vld [vmem:[%s4] sm:$0xf]
  %v2295 = vld [vmem:[%s4 + $0x4] sm:$0xf]
  %v2296 = vld [vmem:[%s4 + $0x8] sm:$0xf]
  %v2297 = vld [vmem:[%s4 + $0xc] sm:$0xf]
  %v2302 = vunpack.c.l.b16 %v2294
  %v2303 = vunpack.c.l.b16 %v2295
  %v2304 = vunpack.c.l.b16 %v2296
  %v2305 = vunpack.c.l.b16 %v2297
  %v2306 = vpack.c.b16 %v2303, %v2302
  %v2307 = vpack.c.b16 %v2305, %v2304
  %v2309 = vsel %vm225, %v2306, 0
  %v2312 = vsel %vm225, %v2307, 0
  %2314 = vmatprep.subr.bf16.mxu0 0
  %2315 = vmatpush1.bf16.msra.mxu0 %v2292
  %2316 = vmatprep.subr.bf16.mxu0 0
  %2317 = vmatpush1.bf16.msra.mxu0 %v2293
  %2318 = vmatprep.subr.bf16.mxu0 0
  %2319 = vmatpush1.bf16.msra.mxu0 0
  %2320 = vmatprep.subr.bf16.mxu0 0
  %2321 = vmatpush1.bf16.msra.mxu0 0
  %2322 = vmatprep.subr.bf16.mxu0 0
  %2323 = vmatpush1.bf16.msra.mxu0 0
  %2324 = vmatprep.subr.bf16.mxu0 0
  %2325 = vmatpush1.bf16.msra.mxu0 0
  %2326 = vmatprep.subr.bf16.mxu0 0
  %2327 = vmatpush1.bf16.msra.mxu0 0
  %2328 = vmatprep.subr.bf16.mxu0 0
  %2329 = vmatpush1.bf16.msra.mxu0 0
  %2330 = vmatprep.subr.bf16.mxu0 0
  %2331 = vmatpush1.bf16.msra.mxu0 0
  %2332 = vmatprep.subr.bf16.mxu0 0
  %2333 = vmatpush1.bf16.msra.mxu0 0
  %2334 = vmatprep.subr.bf16.mxu0 0
  %2335 = vmatpush1.bf16.msra.mxu0 0
  %2336 = vmatprep.subr.bf16.mxu0 0
  %2337 = vmatpush1.bf16.msra.mxu0 0
  %2338 = vmatprep.subr.bf16.mxu0 0
  %2339 = vmatpush1.bf16.msra.mxu0 0
  %2340 = vmatprep.subr.bf16.mxu0 0
  %2341 = vmatpush1.bf16.msra.mxu0 0
  %2342 = vmatprep.subr.bf16.mxu0 0
  %2343 = vmatpush1.bf16.msra.mxu0 0
  %2344 = vmatprep.subr.bf16.mxu0 0
  %2345 = vmatpush1.bf16.msra.mxu0 0
  %2346 = vmatprep.mubr.bf16.mxu0 0
  %2347 = vmatmul.mubr.bf16.gmra.mrb[0].mxu0 %v2309
  %v2348 = vpop.f32.mrb[0].mxu0
  %v2349 = vadd.f32 0.0, %v2348
  %v2350 = vpop.f32.mrb[0].mxu0
  %v2351 = vpop.f32.mrb[0].mxu0
  %v2352 = vadd.f32 0.0, %v2351
  %v2353 = vpop.f32.mrb[0].mxu0
  %2354 = vmatprep.mubr.bf16.mxu0 0
  %2355 = vmatmul.mubr.bf16.gmra.mrb[0].mxu0 %v2312
  %v2356 = vpop.f32.mrb[0].mxu0
  %v2357 = vadd.f32 0.0, %v2356
  %v2358 = vpop.f32.mrb[0].mxu0
  %v2359 = vpop.f32.mrb[0].mxu0
  %v2360 = vadd.f32 0.0, %v2359
  %v2361 = vpop.f32.mrb[0].mxu0
  %2362 = vdwg.mxu0
  %v2363 = vadd.f32 %v74, %v2349
  %v2364 = vadd.f32 %v75, %v2352
  %v2365 = vadd.f32 %v76, %v2357
  %v2366 = vadd.f32 %v77, %v2360
  %v2367 = vld [vmem:[%s5] sm:$0xff]
  %v2368 = vld [vmem:[%s5 + $0x8] sm:$0xff]
  %v2369 = vld [vmem:[%s5 + $0x10] sm:$0xff]
  %v2370 = vld [vmem:[%s5 + $0x18] sm:$0xff]
  %2372 = vset.pattern.permute.xlu0 0
  %2373 = vperm.xlu0 %2372, %v2367
  %v2374 = vpop.permute.xlu0 %2373
  %2377 = vset.pattern.permute.xlu0 0
  %2378 = vperm.xlu0 %2377, %v2368
  %v2379 = vpop.permute.xlu0 %2378
  %2382 = vset.pattern.permute.xlu0 0
  %2383 = vperm.xlu0 %2382, %v2369
  %v2384 = vpop.permute.xlu0 %2383
  %2387 = vset.pattern.permute.xlu0 0
  %2388 = vperm.xlu0 %2387, %v2370
  %v2389 = vpop.permute.xlu0 %2388
  %v2391 = vadd.f32 %v2363, %v2374
  %v2392 = vadd.f32 %v2364, %v2379
  %v2393 = vadd.f32 %v2365, %v2384
  %v2394 = vadd.f32 %v2366, %v2389
  %v2395 = vld [vmem:[%s6] sm:$0xff]
  %v2396 = vld [vmem:[%s6 + $0x8] sm:$0xff]
  %v2397 = vld [vmem:[%s6 + $0x10] sm:$0xff]
  %v2398 = vld [vmem:[%s6 + $0x18] sm:$0xff]
  %v2399 = vld [vmem:[%s7] sm:$0xff]
  %v2400 = vld [vmem:[%s7 + $0x8] sm:$0xff]
  %v2401 = vld [vmem:[%s7 + $0x10] sm:$0xff]
  %v2402 = vld [vmem:[%s7 + $0x18] sm:$0xff]
  %v2403 = vadd.f32 %v2391, %v2392
  %v2404 = vadd.f32 %v2403, %v2393
  %v2405 = vadd.f32 %v2404, %v2394
  %v2406 = vrot.slane %v2405, 4
  %v2407 = vadd.f32 %v2405, %v2406
  %v2408 = vrot.slane %v2407, 2
  %v2409 = vadd.f32 %v2407, %v2408
  %v2410 = vrot.slane %v2409, 1
  %v2411 = vadd.f32 %v2409, %v2410
  %v2412 = vmul.f32 %v2411, %v107
  %v2413 = vsub.f32 %v2391, %v2412
  %v2414 = vsub.f32 %v2392, %v2412
  %v2415 = vsub.f32 %v2393, %v2412
  %v2416 = vsub.f32 %v2394, %v2412
  %v2417 = vmul.f32 %v2413, %v2413
  %v2418 = vmul.f32 %v2414, %v2414
  %v2419 = vmul.f32 %v2415, %v2415
  %v2420 = vmul.f32 %v2416, %v2416
  %v2421 = vadd.f32 %v2417, %v2418
  %v2422 = vadd.f32 %v2421, %v2419
  %v2423 = vadd.f32 %v2422, %v2420
  %v2424 = vrot.slane %v2423, 4
  %v2425 = vadd.f32 %v2423, %v2424
  %v2426 = vrot.slane %v2425, 2
  %v2427 = vadd.f32 %v2425, %v2426
  %v2428 = vrot.slane %v2427, 1
  %v2429 = vadd.f32 %v2427, %v2428
  %v2430 = vmul.f32 %v2429, %v107
  %v2431 = vadd.f32 %v2430, 1e-05
  %v2432 = vrsqrt.pop %v2431
  %v2433 = vmul.f32 %v2413, %v2432
  %v2434 = vmul.f32 %v2414, %v2432
  %v2435 = vmul.f32 %v2415, %v2432
  %v2436 = vmul.f32 %v2416, %v2432
  %2438 = vset.pattern.permute.xlu0 0
  %2439 = vperm.xlu0 %2438, %v2395
  %v2440 = vpop.permute.xlu0 %2439
  %2443 = vset.pattern.permute.xlu0 0
  %2444 = vperm.xlu0 %2443, %v2396
  %v2445 = vpop.permute.xlu0 %2444
  %2448 = vset.pattern.permute.xlu0 0
  %2449 = vperm.xlu0 %2448, %v2397
  %v2450 = vpop.permute.xlu0 %2449
  %2453 = vset.pattern.permute.xlu0 0
  %2454 = vperm.xlu0 %2453, %v2398
  %v2455 = vpop.permute.xlu0 %2454
  %v2457 = vmul.f32 %v2433, %v2440
  %v2458 = vmul.f32 %v2434, %v2445
  %v2459 = vmul.f32 %v2435, %v2450
  %v2460 = vmul.f32 %v2436, %v2455
  %2462 = vset.pattern.permute.xlu0 0
  %2463 = vperm.xlu0 %2462, %v2399
  %v2464 = vpop.permute.xlu0 %2463
  %2467 = vset.pattern.permute.xlu0 0
  %2468 = vperm.xlu0 %2467, %v2400
  %v2469 = vpop.permute.xlu0 %2468
  %2472 = vset.pattern.permute.xlu0 0
  %2473 = vperm.xlu0 %2472, %v2401
  %v2474 = vpop.permute.xlu0 %2473
  %2477 = vset.pattern.permute.xlu0 0
  %2478 = vperm.xlu0 %2477, %v2402
  %v2479 = vpop.permute.xlu0 %2478
  %v2481 = vadd.f32 %v2457, %v2464
  %v2482 = vadd.f32 %v2458, %v2469
  %v2483 = vadd.f32 %v2459, %v2474
  %v2484 = vadd.f32 %v2460, %v2479
  %v2485 = vpack.c.bf16 %v2482, %v2481
  %v2486 = vpack.c.bf16 %v2484, %v2483
  %v2487 = vld [vmem:[%s8] sm:$0xf]
  %v2488 = vld [vmem:[%s8 + $0x4] sm:$0xf]
  %v2489 = vld [vmem:[%s8 + $0x8] sm:$0xf]
  %v2490 = vld [vmem:[%s8 + $0xc] sm:$0xf]
  %v2491 = vld [vmem:[%s8 + $0x10] sm:$0xf]
  %v2492 = vld [vmem:[%s8 + $0x14] sm:$0xf]
  %v2493 = vld [vmem:[%s8 + $0x18] sm:$0xf]
  %v2494 = vld [vmem:[%s8 + $0x1c] sm:$0xf]
  %v2495 = vld [vmem:[%s8 + $0x20] sm:$0xf]
  %v2496 = vld [vmem:[%s8 + $0x24] sm:$0xf]
  %v2497 = vld [vmem:[%s8 + $0x28] sm:$0xf]
  %v2498 = vld [vmem:[%s8 + $0x2c] sm:$0xf]
  %v2499 = vld [vmem:[%s8 + $0x30] sm:$0xf]
  %v2500 = vld [vmem:[%s8 + $0x34] sm:$0xf]
  %v2501 = vld [vmem:[%s8 + $0x38] sm:$0xf]
  %v2502 = vld [vmem:[%s8 + $0x3c] sm:$0xf]
  %v2503 = vld [vmem:[%s9] sm:$0xff]
  %v2504 = vld [vmem:[%s9 + $0x8] sm:$0xff]
  %v2505 = vld [vmem:[%s9 + $0x10] sm:$0xff]
  %v2506 = vld [vmem:[%s9 + $0x18] sm:$0xff]
  %v2507 = vld [vmem:[%s9 + $0x20] sm:$0xff]
  %v2508 = vld [vmem:[%s9 + $0x28] sm:$0xff]
  %v2509 = vld [vmem:[%s9 + $0x30] sm:$0xff]
  %v2510 = vld [vmem:[%s9 + $0x38] sm:$0xff]
  %v2511 = vld [vmem:[%s9 + $0x40] sm:$0xff]
  %v2512 = vld [vmem:[%s9 + $0x48] sm:$0xff]
  %v2513 = vld [vmem:[%s9 + $0x50] sm:$0xff]
  %v2514 = vld [vmem:[%s9 + $0x58] sm:$0xff]
  %v2515 = vld [vmem:[%s9 + $0x60] sm:$0xff]
  %v2516 = vld [vmem:[%s9 + $0x68] sm:$0xff]
  %v2517 = vld [vmem:[%s9 + $0x70] sm:$0xff]
  %v2518 = vld [vmem:[%s9 + $0x78] sm:$0xff]
  %2520 = vset.pattern.permute.xlu0 0
  %2521 = vperm.xlu0 %2520, %v2503
  %v2522 = vpop.permute.xlu0 %2521
  %2525 = vset.pattern.permute.xlu0 0
  %2526 = vperm.xlu0 %2525, %v2504
  %v2527 = vpop.permute.xlu0 %2526
  %2530 = vset.pattern.permute.xlu0 0
  %2531 = vperm.xlu0 %2530, %v2505
  %v2532 = vpop.permute.xlu0 %2531
  %2535 = vset.pattern.permute.xlu0 0
  %2536 = vperm.xlu0 %2535, %v2506
  %v2537 = vpop.permute.xlu0 %2536
  %2540 = vset.pattern.permute.xlu0 0
  %2541 = vperm.xlu0 %2540, %v2507
  %v2542 = vpop.permute.xlu0 %2541
  %2545 = vset.pattern.permute.xlu0 0
  %2546 = vperm.xlu0 %2545, %v2508
  %v2547 = vpop.permute.xlu0 %2546
  %2550 = vset.pattern.permute.xlu0 0
  %2551 = vperm.xlu0 %2550, %v2509
  %v2552 = vpop.permute.xlu0 %2551
  %2555 = vset.pattern.permute.xlu0 0
  %2556 = vperm.xlu0 %2555, %v2510
  %v2557 = vpop.permute.xlu0 %2556
  %2560 = vset.pattern.permute.xlu0 0
  %2561 = vperm.xlu0 %2560, %v2511
  %v2562 = vpop.permute.xlu0 %2561
  %2565 = vset.pattern.permute.xlu0 0
  %2566 = vperm.xlu0 %2565, %v2512
  %v2567 = vpop.permute.xlu0 %2566
  %2570 = vset.pattern.permute.xlu0 0
  %2571 = vperm.xlu0 %2570, %v2513
  %v2572 = vpop.permute.xlu0 %2571
  %2575 = vset.pattern.permute.xlu0 0
  %2576 = vperm.xlu0 %2575, %v2514
  %v2577 = vpop.permute.xlu0 %2576
  %2580 = vset.pattern.permute.xlu0 0
  %2581 = vperm.xlu0 %2580, %v2515
  %v2582 = vpop.permute.xlu0 %2581
  %2585 = vset.pattern.permute.xlu0 0
  %2586 = vperm.xlu0 %2585, %v2516
  %v2587 = vpop.permute.xlu0 %2586
  %2590 = vset.pattern.permute.xlu0 0
  %2591 = vperm.xlu0 %2590, %v2517
  %v2592 = vpop.permute.xlu0 %2591
  %2595 = vset.pattern.permute.xlu0 0
  %2596 = vperm.xlu0 %2595, %v2518
  %v2597 = vpop.permute.xlu0 %2596
  %v2615 = vunpack.c.l.b16 %v2487
  %v2616 = vunpack.c.l.b16 %v2488
  %v2617 = vunpack.c.l.b16 %v2489
  %v2618 = vunpack.c.l.b16 %v2490
  %v2619 = vunpack.c.l.b16 %v2491
  %v2620 = vunpack.c.l.b16 %v2492
  %v2621 = vunpack.c.l.b16 %v2493
  %v2622 = vunpack.c.l.b16 %v2494
  %v2623 = vunpack.c.l.b16 %v2495
  %v2624 = vunpack.c.l.b16 %v2496
  %v2625 = vunpack.c.l.b16 %v2497
  %v2626 = vunpack.c.l.b16 %v2498
  %v2627 = vunpack.c.l.b16 %v2499
  %v2628 = vunpack.c.l.b16 %v2500
  %v2629 = vunpack.c.l.b16 %v2501
  %v2630 = vunpack.c.l.b16 %v2502
  %v2631 = vpack.c.b16 %v2616, %v2615
  %v2632 = vpack.c.b16 %v2618, %v2617
  %v2633 = vpack.c.b16 %v2620, %v2619
  %v2634 = vpack.c.b16 %v2622, %v2621
  %v2635 = vpack.c.b16 %v2624, %v2623
  %v2636 = vpack.c.b16 %v2626, %v2625
  %v2637 = vpack.c.b16 %v2628, %v2627
  %v2638 = vpack.c.b16 %v2630, %v2629
  %v2640 = vsel %vm225, %v2631, 0
  %v2643 = vsel %vm225, %v2632, 0
  %v2646 = vsel %vm225, %v2633, 0
  %v2649 = vsel %vm225, %v2634, 0
  %v2652 = vsel %vm225, %v2635, 0
  %v2655 = vsel %vm225, %v2636, 0
  %v2658 = vsel %vm225, %v2637, 0
  %v2661 = vsel %vm225, %v2638, 0
  %2663 = vmatprep.subr.bf16.mxu0 0
  %2664 = vmatpush1.bf16.msra.mxu0 %v2485
  %2665 = vmatprep.subr.bf16.mxu0 0
  %2666 = vmatpush1.bf16.msra.mxu0 %v2486
  %2667 = vmatprep.subr.bf16.mxu0 0
  %2668 = vmatpush1.bf16.msra.mxu0 0
  %2669 = vmatprep.subr.bf16.mxu0 0
  %2670 = vmatpush1.bf16.msra.mxu0 0
  %2671 = vmatprep.subr.bf16.mxu0 0
  %2672 = vmatpush1.bf16.msra.mxu0 0
  %2673 = vmatprep.subr.bf16.mxu0 0
  %2674 = vmatpush1.bf16.msra.mxu0 0
  %2675 = vmatprep.subr.bf16.mxu0 0
  %2676 = vmatpush1.bf16.msra.mxu0 0
  %2677 = vmatprep.subr.bf16.mxu0 0
  %2678 = vmatpush1.bf16.msra.mxu0 0
  %2679 = vmatprep.subr.bf16.mxu0 0
  %2680 = vmatpush1.bf16.msra.mxu0 0
  %2681 = vmatprep.subr.bf16.mxu0 0
  %2682 = vmatpush1.bf16.msra.mxu0 0
  %2683 = vmatprep.subr.bf16.mxu0 0
  %2684 = vmatpush1.bf16.msra.mxu0 0
  %2685 = vmatprep.subr.bf16.mxu0 0
  %2686 = vmatpush1.bf16.msra.mxu0 0
  %2687 = vmatprep.subr.bf16.mxu0 0
  %2688 = vmatpush1.bf16.msra.mxu0 0
  %2689 = vmatprep.subr.bf16.mxu0 0
  %2690 = vmatpush1.bf16.msra.mxu0 0
  %2691 = vmatprep.subr.bf16.mxu0 0
  %2692 = vmatpush1.bf16.msra.mxu0 0
  %2693 = vmatprep.subr.bf16.mxu0 0
  %2694 = vmatpush1.bf16.msra.mxu0 0
  %2695 = vmatprep.mubr.bf16.mxu0 0
  %2696 = vmatmul.mubr.bf16.gmra.mrb[0].mxu0 %v2640
  %v2697 = vpop.f32.mrb[0].mxu0
  %v2698 = vadd.f32 %v2522, %v2697
  %v2699 = vpop.f32.mrb[0].mxu0
  %v2700 = vpop.f32.mrb[0].mxu0
  %v2701 = vadd.f32 %v2527, %v2700
  %v2702 = vpop.f32.mrb[0].mxu0
  %2703 = vmatprep.mubr.bf16.mxu0 0
  %2704 = vmatmul.mubr.bf16.gmra.mrb[0].mxu0 %v2643
  %v2705 = vpop.f32.mrb[0].mxu0
  %v2706 = vadd.f32 %v2532, %v2705
  %v2707 = vpop.f32.mrb[0].mxu0
  %v2708 = vpop.f32.mrb[0].mxu0
  %v2709 = vadd.f32 %v2537, %v2708
  %v2710 = vpop.f32.mrb[0].mxu0
  %2711 = vmatprep.mubr.bf16.mxu0 0
  %2712 = vmatmul.mubr.bf16.gmra.mrb[0].mxu0 %v2646
  %v2713 = vpop.f32.mrb[0].mxu0
  %v2714 = vadd.f32 %v2542, %v2713
  %v2715 = vpop.f32.mrb[0].mxu0
  %v2716 = vpop.f32.mrb[0].mxu0
  %v2717 = vadd.f32 %v2547, %v2716
  %v2718 = vpop.f32.mrb[0].mxu0
  %2719 = vmatprep.mubr.bf16.mxu0 0
  %2720 = vmatmul.mubr.bf16.gmra.mrb[0].mxu0 %v2649
  %v2721 = vpop.f32.mrb[0].mxu0
  %v2722 = vadd.f32 %v2552, %v2721
  %v2723 = vpop.f32.mrb[0].mxu0
  %v2724 = vpop.f32.mrb[0].mxu0
  %v2725 = vadd.f32 %v2557, %v2724
  %v2726 = vpop.f32.mrb[0].mxu0
  %2727 = vmatprep.mubr.bf16.mxu0 0
  %2728 = vmatmul.mubr.bf16.gmra.mrb[0].mxu0 %v2652
  %v2729 = vpop.f32.mrb[0].mxu0
  %v2730 = vadd.f32 %v2562, %v2729
  %v2731 = vpop.f32.mrb[0].mxu0
  %v2732 = vpop.f32.mrb[0].mxu0
  %v2733 = vadd.f32 %v2567, %v2732
  %v2734 = vpop.f32.mrb[0].mxu0
  %2735 = vmatprep.mubr.bf16.mxu0 0
  %2736 = vmatmul.mubr.bf16.gmra.mrb[0].mxu0 %v2655
  %v2737 = vpop.f32.mrb[0].mxu0
  %v2738 = vadd.f32 %v2572, %v2737
  %v2739 = vpop.f32.mrb[0].mxu0
  %v2740 = vpop.f32.mrb[0].mxu0
  %v2741 = vadd.f32 %v2577, %v2740
  %v2742 = vpop.f32.mrb[0].mxu0
  %2743 = vmatprep.mubr.bf16.mxu0 0
  %2744 = vmatmul.mubr.bf16.gmra.mrb[0].mxu0 %v2658
  %v2745 = vpop.f32.mrb[0].mxu0
  %v2746 = vadd.f32 %v2582, %v2745
  %v2747 = vpop.f32.mrb[0].mxu0
  %v2748 = vpop.f32.mrb[0].mxu0
  %v2749 = vadd.f32 %v2587, %v2748
  %v2750 = vpop.f32.mrb[0].mxu0
  %2751 = vmatprep.mubr.bf16.mxu0 0
  %2752 = vmatmul.mubr.bf16.gmra.mrb[0].mxu0 %v2661
  %v2753 = vpop.f32.mrb[0].mxu0
  %v2754 = vadd.f32 %v2592, %v2753
  %v2755 = vpop.f32.mrb[0].mxu0
  %v2756 = vpop.f32.mrb[0].mxu0
  %v2757 = vadd.f32 %v2597, %v2756
  %v2758 = vpop.f32.mrb[0].mxu0
  %2759 = vdwg.mxu0
  %v2760 = vmul.f32 %v2698, 0.5
  %v2761 = vmul.f32 %v2701, 0.5
  %v2762 = vmul.f32 %v2706, 0.5
  %v2763 = vmul.f32 %v2709, 0.5
  %v2764 = vmul.f32 %v2714, 0.5
  %v2765 = vmul.f32 %v2717, 0.5
  %v2766 = vmul.f32 %v2722, 0.5
  %v2767 = vmul.f32 %v2725, 0.5
  %v2768 = vmul.f32 %v2730, 0.5
  %v2769 = vmul.f32 %v2733, 0.5
  %v2770 = vmul.f32 %v2738, 0.5
  %v2771 = vmul.f32 %v2741, 0.5
  %v2772 = vmul.f32 %v2746, 0.5
  %v2773 = vmul.f32 %v2749, 0.5
  %v2774 = vmul.f32 %v2754, 0.5
  %v2775 = vmul.f32 %v2757, 0.5
  %v2776 = vmul.f32 %v2698, 0.70710677
  %v2777 = vmul.f32 %v2701, 0.70710677
  %v2778 = vmul.f32 %v2706, 0.70710677
  %v2779 = vmul.f32 %v2709, 0.70710677
  %v2780 = vmul.f32 %v2714, 0.70710677
  %v2781 = vmul.f32 %v2717, 0.70710677
  %v2782 = vmul.f32 %v2722, 0.70710677
  %v2783 = vmul.f32 %v2725, 0.70710677
  %v2784 = vmul.f32 %v2730, 0.70710677
  %v2785 = vmul.f32 %v2733, 0.70710677
  %v2786 = vmul.f32 %v2738, 0.70710677
  %v2787 = vmul.f32 %v2741, 0.70710677
  %v2788 = vmul.f32 %v2746, 0.70710677
  %v2789 = vmul.f32 %v2749, 0.70710677
  %v2790 = vmul.f32 %v2754, 0.70710677
  %v2791 = vmul.f32 %v2757, 0.70710677
  %v2792 = verf.f32.pop %v2776
  %v2793 = verf.f32.pop %v2777
  %v2794 = verf.f32.pop %v2778
  %v2795 = verf.f32.pop %v2779
  %v2796 = verf.f32.pop %v2780
  %v2797 = verf.f32.pop %v2781
  %v2798 = verf.f32.pop %v2782
  %v2799 = verf.f32.pop %v2783
  %v2800 = verf.f32.pop %v2784
  %v2801 = verf.f32.pop %v2785
  %v2802 = verf.f32.pop %v2786
  %v2803 = verf.f32.pop %v2787
  %v2804 = verf.f32.pop %v2788
  %v2805 = verf.f32.pop %v2789
  %v2806 = verf.f32.pop %v2790
  %v2807 = verf.f32.pop %v2791
  %v2808 = vadd.f32 %v2792, 1.0
  %v2809 = vadd.f32 %v2793, 1.0
  %v2810 = vadd.f32 %v2794, 1.0
  %v2811 = vadd.f32 %v2795, 1.0
  %v2812 = vadd.f32 %v2796, 1.0
  %v2813 = vadd.f32 %v2797, 1.0
  %v2814 = vadd.f32 %v2798, 1.0
  %v2815 = vadd.f32 %v2799, 1.0
  %v2816 = vadd.f32 %v2800, 1.0
  %v2817 = vadd.f32 %v2801, 1.0
  %v2818 = vadd.f32 %v2802, 1.0
  %v2819 = vadd.f32 %v2803, 1.0
  %v2820 = vadd.f32 %v2804, 1.0
  %v2821 = vadd.f32 %v2805, 1.0
  %v2822 = vadd.f32 %v2806, 1.0
  %v2823 = vadd.f32 %v2807, 1.0
  %v2824 = vmul.f32 %v2760, %v2808
  %v2825 = vmul.f32 %v2761, %v2809
  %v2826 = vmul.f32 %v2762, %v2810
  %v2827 = vmul.f32 %v2763, %v2811
  %v2828 = vmul.f32 %v2764, %v2812
  %v2829 = vmul.f32 %v2765, %v2813
  %v2830 = vmul.f32 %v2766, %v2814
  %v2831 = vmul.f32 %v2767, %v2815
  %v2832 = vmul.f32 %v2768, %v2816
  %v2833 = vmul.f32 %v2769, %v2817
  %v2834 = vmul.f32 %v2770, %v2818
  %v2835 = vmul.f32 %v2771, %v2819
  %v2836 = vmul.f32 %v2772, %v2820
  %v2837 = vmul.f32 %v2773, %v2821
  %v2838 = vmul.f32 %v2774, %v2822
  %v2839 = vmul.f32 %v2775, %v2823
  %v2840 = vpack.c.bf16 %v2825, %v2824
  %v2841 = vpack.c.bf16 %v2827, %v2826
  %v2842 = vpack.c.bf16 %v2829, %v2828
  %v2843 = vpack.c.bf16 %v2831, %v2830
  %v2844 = vpack.c.bf16 %v2833, %v2832
  %v2845 = vpack.c.bf16 %v2835, %v2834
  %v2846 = vpack.c.bf16 %v2837, %v2836
  %v2847 = vpack.c.bf16 %v2839, %v2838
  %v2848 = vld [vmem:[%s10] sm:$0xf]
  %v2849 = vld [vmem:[%s10 + $0x4] sm:$0xf]
  %v2850 = vld [vmem:[%s10 + $0x8] sm:$0xf]
  %v2851 = vld [vmem:[%s10 + $0xc] sm:$0xf]
  %v2852 = vld [vmem:[%s11] sm:$0xff]
  %v2853 = vld [vmem:[%s11 + $0x8] sm:$0xff]
  %v2854 = vld [vmem:[%s11 + $0x10] sm:$0xff]
  %v2855 = vld [vmem:[%s11 + $0x18] sm:$0xff]
  %2857 = vset.pattern.permute.xlu0 0
  %2858 = vperm.xlu0 %2857, %v2852
  %v2859 = vpop.permute.xlu0 %2858
  %2862 = vset.pattern.permute.xlu0 0
  %2863 = vperm.xlu0 %2862, %v2853
  %v2864 = vpop.permute.xlu0 %2863
  %2867 = vset.pattern.permute.xlu0 0
  %2868 = vperm.xlu0 %2867, %v2854
  %v2869 = vpop.permute.xlu0 %2868
  %2872 = vset.pattern.permute.xlu0 0
  %2873 = vperm.xlu0 %2872, %v2855
  %v2874 = vpop.permute.xlu0 %2873
  %v2880 = vunpack.c.l.b16 %v2848
  %v2881 = vunpack.c.l.b16 %v2849
  %v2882 = vunpack.c.l.b16 %v2850
  %v2883 = vunpack.c.l.b16 %v2851
  %v2884 = vpack.c.b16 %v2881, %v2880
  %v2885 = vpack.c.b16 %v2883, %v2882
  %2888 = vmatprep.subr.bf16.mxu0 0
  %2889 = vmatpush1.bf16.msra.mxu0 %v2840
  %2890 = vmatprep.subr.bf16.mxu0 0
  %2891 = vmatpush1.bf16.msra.mxu0 %v2841
  %2892 = vmatprep.subr.bf16.mxu0 0
  %2893 = vmatpush1.bf16.msra.mxu0 %v2842
  %2894 = vmatprep.subr.bf16.mxu0 0
  %2895 = vmatpush1.bf16.msra.mxu0 %v2843
  %2896 = vmatprep.subr.bf16.mxu0 0
  %2897 = vmatpush1.bf16.msra.mxu0 %v2844
  %2898 = vmatprep.subr.bf16.mxu0 0
  %2899 = vmatpush1.bf16.msra.mxu0 %v2845
  %2900 = vmatprep.subr.bf16.mxu0 0
  %2901 = vmatpush1.bf16.msra.mxu0 %v2846
  %2902 = vmatprep.subr.bf16.mxu0 0
  %2903 = vmatpush1.bf16.msra.mxu0 %v2847
  %2904 = vmatprep.subr.bf16.mxu0 0
  %2905 = vmatpush1.bf16.msra.mxu0 0
  %2906 = vmatprep.subr.bf16.mxu0 0
  %2907 = vmatpush1.bf16.msra.mxu0 0
  %2908 = vmatprep.subr.bf16.mxu0 0
  %2909 = vmatpush1.bf16.msra.mxu0 0
  %2910 = vmatprep.subr.bf16.mxu0 0
  %2911 = vmatpush1.bf16.msra.mxu0 0
  %2912 = vmatprep.subr.bf16.mxu0 0
  %2913 = vmatpush1.bf16.msra.mxu0 0
  %2914 = vmatprep.subr.bf16.mxu0 0
  %2915 = vmatpush1.bf16.msra.mxu0 0
  %2916 = vmatprep.subr.bf16.mxu0 0
  %2917 = vmatpush1.bf16.msra.mxu0 0
  %2918 = vmatprep.subr.bf16.mxu0 0
  %2919 = vmatpush1.bf16.msra.mxu0 0
  %2920 = vmatprep.mubr.bf16.mxu0 0
  %2921 = vmatmul.mubr.bf16.gmra.mrb[0].mxu0 %v2884
  %v2922 = vpop.f32.mrb[0].mxu0
  %v2923 = vadd.f32 %v2859, %v2922
  %v2924 = vpop.f32.mrb[0].mxu0
  %v2925 = vpop.f32.mrb[0].mxu0
  %v2926 = vadd.f32 %v2864, %v2925
  %v2927 = vpop.f32.mrb[0].mxu0
  %2928 = vmatprep.mubr.bf16.mxu0 0
  %2929 = vmatmul.mubr.bf16.gmra.mrb[0].mxu0 %v2885
  %v2930 = vpop.f32.mrb[0].mxu0
  %v2931 = vadd.f32 %v2869, %v2930
  %v2932 = vpop.f32.mrb[0].mxu0
  %v2933 = vpop.f32.mrb[0].mxu0
  %v2934 = vadd.f32 %v2874, %v2933
  %v2935 = vpop.f32.mrb[0].mxu0
  %2936 = vdwg.mxu0
  %v2937 = vadd.f32 %v2391, %v2923
  %v2938 = vadd.f32 %v2392, %v2926
  %v2939 = vadd.f32 %v2393, %v2931
  %v2940 = vadd.f32 %v2394, %v2934
  %2941 = vxpose.xlu0.b32.start [1/16] %v2937, 128
  %2942 = vxpose.xlu0.b32.cont [2/16] %v2938, 128
  %2943 = vxpose.xlu0.b32.cont [3/16] %v2939, 128
  %2944 = vxpose.xlu0.b32.cont [4/16] %v2940, 128
  %2945 = vxpose.xlu0.b32.cont [5/16] 0.0, 128
  %2946 = vxpose.xlu0.b32.cont [6/16] 0.0, 128
  %2947 = vxpose.xlu0.b32.cont [7/16] 0.0, 128
  %2948 = vxpose.xlu0.b32.cont [8/16] 0.0, 128
  %2949 = vxpose.xlu0.b32.cont [9/16] 0.0, 128
  %2950 = vxpose.xlu0.b32.cont [10/16] 0.0, 128
  %2951 = vxpose.xlu0.b32.cont [11/16] 0.0, 128
  %2952 = vxpose.xlu0.b32.cont [12/16] 0.0, 128
  %2953 = vxpose.xlu0.b32.cont [13/16] 0.0, 128
  %2954 = vxpose.xlu0.b32.cont [14/16] 0.0, 128
  %2955 = vxpose.xlu0.b32.cont [15/16] 0.0, 128
  %2956 = vxpose.xlu0.b32.end [16/16] 0.0, 128
  %v2957 = vpop.trf.xlu0
  %v2958 = vpop.trf.xlu0
  %v2959 = vpop.trf.xlu0
  %v2960 = vpop.trf.xlu0
  %v2961 = vpop.trf.xlu0
  %v2962 = vpop.trf.xlu0
  %v2963 = vpop.trf.xlu0
  %v2964 = vpop.trf.xlu0
  %v2965 = vpop.trf.xlu0
  %v2966 = vpop.trf.xlu0
  %v2967 = vpop.trf.xlu0
  %v2968 = vpop.trf.xlu0
  %v2969 = vpop.trf.xlu0
  %v2970 = vpop.trf.xlu0
  %v2971 = vpop.trf.xlu0
  %v2972 = vpop.trf.xlu0
  %2973 = vst.msk [vmem:[%s12] sm:$0xff] %vm225, %v2957
  %2974 = vst.msk [vmem:[%s12 + $0x8] sm:$0xff] %vm225, %v2958
  %2975 = vst.msk [vmem:[%s12 + $0x10] sm:$0xff] %vm225, %v2959
  %2976 = vst.msk [vmem:[%s12 + $0x18] sm:$0xff] %vm225, %v2960
  %2977 = vst.msk [vmem:[%s12 + $0x20] sm:$0xff] %vm225, %v2961
  %2978 = vst.msk [vmem:[%s12 + $0x28] sm:$0xff] %vm225, %v2962
  %2979 = vst.msk [vmem:[%s12 + $0x30] sm:$0xff] %vm225, %v2963
  %2980 = vst.msk [vmem:[%s12 + $0x38] sm:$0xff] %vm225, %v2964
  %2981 = vst.msk [vmem:[%s12 + $0x40] sm:$0xff] %vm225, %v2965
  %2982 = vst.msk [vmem:[%s12 + $0x48] sm:$0xff] %vm225, %v2966
  %2983 = vst.msk [vmem:[%s12 + $0x50] sm:$0xff] %vm225, %v2967
  %2984 = vst.msk [vmem:[%s12 + $0x58] sm:$0xff] %vm225, %v2968
  %2985 = vst.msk [vmem:[%s12 + $0x60] sm:$0xff] %vm225, %v2969
  %2986 = vst.msk [vmem:[%s12 + $0x68] sm:$0xff] %vm225, %v2970
  %2987 = vst.msk [vmem:[%s12 + $0x70] sm:$0xff] %vm225, %v2971
  %2988 = vst.msk [vmem:[%s12 + $0x78] sm:$0xff] %vm225, %v2972
  // Predicated region
  $region50: #{tpu_custom_call.1} parent=0 // pred_check
    _
  $region51: #{tpu_custom_call.1} parent=0 // pred_check_branch
    %2990 = sbr.rel (0) target = $region53
  $region52: #{tpu_custom_call.1} parent=0 // pred_region
    _
  $region53: #{tpu_custom_call.1} parent=0 // pred_fallthru
    _
  // Predicated region
  $region54: #{tpu_custom_call.1} parent=0 // pred_check
    _
  $region55: #{tpu_custom_call.1} parent=0 // pred_check_branch
    %2992 = sbr.rel (0) target = $region57
  $region56: #{tpu_custom_call.1} parent=0 // pred_region
    _
  $region57: #{tpu_custom_call.1} parent=0 // pred_fallthru
    _

</llo_original>
